<compile_context>
chip_gen: v5e
topology: v5e:2x2
jax: 0.10.0
libtpu: 0.0.40
codegen_flags: <defaults>
</compile_context>

<pallas_src>
import functools

import jax
import jax.numpy as jnp
from jax import lax
from jax.experimental import pallas as pl
from jax.experimental.pallas import tpu as pltpu


def _round_up(v, m):
    return ((v + m - 1) // m) * m


# --------------------------------------------------------------------------------
# Kernel
# --------------------------------------------------------------------------------
def _dagcn_kernel(erow_ref, ecol_ref, x_ref, theta_ref, bias_ref, out_ref, *,
                  num_nodes, cheb_k, in_dims, out_dims, batch, t_block, out_pad):
    """One grid step == one block of `t_block` time steps (all resident in VMEM)."""
    N, K, C_in, C_out, B = num_nodes, cheb_k, in_dims, out_dims, batch
    OUT = B * C_out

    # Hoisted constant (avoid re-materialising the broadcast in every unrolled iter).
    zero_pad = (jnp.zeros((N, out_pad - OUT), jnp.float32)
                if out_pad > OUT else None)

    def step(tt, carry):
        # ---- adaptive support S_t = softmax(relu(e e^T)): VPU outer product + EUP --
        e_row = erow_ref[tt]                                   # (1, N) f32
        e_col = ecol_ref[tt]                                   # (N, 1) f32
        a = jnp.maximum(e_col * e_row, 0.0)                    # (N, N)
        a_max = jnp.max(a, axis=-1, keepdims=True)             # (N, 1)
        ex = jnp.exp(a - a_max)
        inv_den = pl.reciprocal(jnp.sum(ex, axis=-1, keepdims=True), approx=True)

        # ---- graph conv: y_k = cheb_k @ x_t ---------------------------------------
        # k = 0: identity -> y0 = x_t (no GEMM, no eye).                       [R3]
        # k = 1: single MXU GEMM S @ x_t (x packed 128-wide).                  [R5]
        # k >= 2: the reference recurrence scales ROWS by 2*diag(S); row scaling
        #         commutes with right-multiplication by x_t, so it is applied to
        #         the GEMM results directly (no further MXU work).             [R3]
        x_t = x_ref[tt]                                        # (N, X_PAD) bf16
        ys = [x_t.astype(jnp.float32)]
        if K >= 2:
            supports = ex * inv_den                            # (N, N) f32
            ys.append(jnp.dot(supports.astype(x_t.dtype), x_t,
                              preferred_element_type=jnp.float32))   # (N, X_PAD) f32
            if K >= 3:
                # diag(S)[n] analytically: relu(e_n^2) == e_n^2 -> no masked reduce.
                diag_s = jnp.exp(e_col * e_col - a_max) * inv_den     # (N, 1)
                two_d = 2.0 * diag_s
                for _ in range(2, K):
                    ys.append(two_d * ys[-1] - ys[-2])

        # ---- per-node combination with theta (lane-dense, reduction-free) ----------
        # acc[b][n, o] = bias[n, o] + sum_{k,i} y_k[n, b*C_in+i] * theta[n, k, i, o]
        # implemented as K*C_in rank-1 style updates of (N, C_out) tiles.      [R4]
        theta_t = theta_ref[tt]                                # (N, TH_PAD)  [R1]
        bias_t = bias_ref[tt].astype(jnp.float32)              # (N, C_out)
        accs = [bias_t] * B
        for k in range(K):
            yk = ys[k]
            for i in range(C_in):
                off = (k * C_in + i) * C_out
                th = theta_t[:, off:off + C_out].astype(jnp.float32)   # (N, C_out)
                for b in range(B):
                    col = yk[:, b * C_in + i:b * C_in + i + 1]         # (N, 1)
                    accs[b] = accs[b] + col * th

        # single unmasked, full-width (lane-dense) store per time step          [R2]
        pieces = list(accs)
        if zero_pad is not None:
            pieces.append(zero_pad)
        result = pieces[0] if len(pieces) == 1 else jnp.concatenate(pieces, axis=-1)
        out_ref[tt] = result.astype(out_ref.dtype)
        return carry

    # bounded live ranges across the t-block                                    [R6]
    lax.fori_loop(0, t_block, step, 0, unroll=min(t_block, 8))


# --------------------------------------------------------------------------------
# Sizing helpers
# --------------------------------------------------------------------------------
def _tpu_budget():
    """(per-core VMEM capacity, TensorCores sharing the parallel grid axis)."""
    vmem_cap, cores = 64 * 1024 * 1024, 1      # conservative default (v7x per-core)
    get_info = getattr(pltpu, "get_tpu_info", None)
    if get_info is not None:
        try:
            info = get_info()
            vmem_cap = int(getattr(info, "vmem_capacity_bytes", vmem_cap)) or vmem_cap
            for attr in ("tensorcores_per_chip", "num_tensorcores", "cores_per_chip"):
                v = getattr(info, attr, None)
                if v:
                    cores = int(v)
                    break
            else:
                # v7x exposes 64 MiB per TensorCore and has 2 TCs sharing the grid.
                if vmem_cap <= 64 * 1024 * 1024:
                    cores = 2
        except Exception:
            pass
    return vmem_cap, cores


def _pick_t_block(T, bytes_per_t, budget, min_grid_steps):
    """Largest divisor of T that fits the budget and keeps >= min_grid_steps."""
    best = 1
    for tt in range(1, T + 1):
        if T % tt:
            continue
        if tt > 1 and (T // tt) < min_grid_steps:
            continue
        if tt * bytes_per_t <= budget:
            best = max(best, tt)
    return best


# --------------------------------------------------------------------------------
# Wrapper
# --------------------------------------------------------------------------------
def dagcn_full(x, dn_embeddings, weights_pool, bias_pool, *, cheb_k,
               spatial_attention=False, activation_dtype=jnp.bfloat16,
               param_dtype=jnp.float32):
    """Pallas implementation of DAGCN_full.forward.

    x:             (B, T, N, C_in)   float32
    dn_embeddings: (T, N)
    weights_pool:  (T, N, K, C_in, C_out)
    bias_pool:     (T, N, C_out)
    returns (x_gconv (B, T, N, C_out), supports-or-None)
    """
    B, T, N, C_in = x.shape
    C_out = weights_pool.shape[-1]
    assert dn_embeddings.shape == (T, N)
    assert weights_pool.shape == (T, N, cheb_k, C_in, C_out)
    assert bias_pool.shape == (T, N, C_out)

    X = B * C_in
    TH = cheb_k * C_in * C_out
    OUT = B * C_out
    X_PAD = _round_up(X, 128)        # [R5] wide, unmasked MXU output columns
    TH_PAD = _round_up(TH, 128)      # [R1] lane-dense theta
    OUT_PAD = _round_up(OUT, 128)    # [R2] lane-dense output store

    # ---- wrapper-side layout glue: everything the kernel touches is lane-dense ----
    erow = dn_embeddings.astype(jnp.float32).reshape(T, 1, N)
    ecol = dn_embeddings.astype(jnp.float32).reshape(T, N, 1)
    x_packed = jnp.transpose(x, (1, 2, 0, 3)).reshape(T, N, X)
    x_packed = jnp.pad(x_packed, ((0, 0), (0, 0), (0, X_PAD - X))).astype(activation_dtype)
    theta_flat = weights_pool.reshape(T, N, TH)                      # (k,i,o) flattened
    theta_flat = jnp.pad(theta_flat, ((0, 0), (0, 0), (0, TH_PAD - TH))).astype(param_dtype)
    bias = bias_pool.astype(jnp.float32)

    # ---- VMEM accounting with padded tiles, double buffering, intermediates [R7] --
    act_b = jnp.dtype(activation_dtype).itemsize
    par_b = jnp.dtype(param_dtype).itemsize
    r8N, r128N, r128Co = _round_up(N, 8), _round_up(N, 128), _round_up(C_out, 128)
    per_t_io = (8 * r128N * 4              # e row view  (1, N) tile
                + r8N * 128 * 4            # e col view  (N, 1) tile (lane padded)
                + r8N * X_PAD * act_b      # x
                + r8N * TH_PAD * par_b     # theta (lane dense)
                + r8N * r128Co * 4         # bias
                + r8N * OUT_PAD * 4)       # out
    intermediates = (4 * r8N * r128N * 4                 # a / exp / supports
                     + (cheb_k + 2) * r8N * X_PAD * 4    # y_k terms + temporaries
                     + (B + 2) * r8N * r128Co * 4        # per-batch accumulators
                     + r8N * OUT_PAD * 4)                # concatenated store value

    vmem_cap, n_cores = _tpu_budget()
    vmem_limit = int(min(vmem_cap * 3 // 4, 96 * 1024 * 1024))   # <=48MiB v7x, <=96MiB v5e/v6e
    budget = max(vmem_limit - intermediates - (2 << 20), 0)
    min_steps = 2 * n_cores                      # >= 2 pipelined grid steps per core
    TT = _pick_t_block(T, 2 * per_t_io, budget, min_steps)
    grid = (T // TT,)

    kernel = functools.partial(
        _dagcn_kernel, num_nodes=N, cheb_k=cheb_k, in_dims=C_in, out_dims=C_out,
        batch=B, t_block=TT, out_pad=OUT_PAD)

    out_packed = pl.pallas_call(
        kernel,
        out_shape=jax.ShapeDtypeStruct((T, N, OUT_PAD), jnp.float32),
        grid=grid,
        in_specs=[
            pl.BlockSpec((TT, 1, N), lambda g: (g, 0, 0)),        # e row views
            pl.BlockSpec((TT, N, 1), lambda g: (g, 0, 0)),        # e col views
            pl.BlockSpec((TT, N, X_PAD), lambda g: (g, 0, 0)),    # x, lane-dense
            pl.BlockSpec((TT, N, TH_PAD), lambda g: (g, 0, 0)),   # theta, lane-dense
            pl.BlockSpec((TT, N, C_out), lambda g: (g, 0, 0)),    # bias
        ],
        out_specs=pl.BlockSpec((TT, N, OUT_PAD), lambda g: (g, 0, 0)),
        compiler_params=pltpu.CompilerParams(
            dimension_semantics=("parallel",),
            vmem_limit_bytes=vmem_limit),
    )(erow, ecol, x_packed, theta_flat, bias)

    out = out_packed[:, :, :OUT].reshape(T, N, B, C_out)
    out = jnp.transpose(out, (2, 0, 1, 3))                        # (B, T, N, C_out)

    if spatial_attention:
        # Parameter-only quantity; computed in plain JAX (full precision).
        supports = jax.nn.softmax(
            jax.nn.relu(jnp.einsum('tn,ts->tns', dn_embeddings, dn_embeddings)),
            axis=-1)
        return out, supports
    return out, None


# --------------------------------------------------------------------------------
# Pure-JAX reference (for correctness check)
# --------------------------------------------------------------------------------
def _supports_stacked_reference(emb, cheb_k):
    T, N = emb.shape
    supports = jax.nn.softmax(
        jax.nn.relu(jnp.einsum('tn,ts->tns', emb, emb)), axis=-1)
    unit = jnp.broadcast_to(jnp.eye(N, dtype=emb.dtype), (T, N, N))
    support_set = [unit, supports]
    diag = jnp.einsum('tnn->tn', supports)            # diagonal, as in 'tnn,tns->tns'
    for _ in range(2, cheb_k):
        support_set.append(2.0 * diag[:, :, None] * support_set[-1] - support_set[-2])
    return jnp.stack(support_set[:cheb_k], axis=1)    # (T, K, N, N)


def dagcn_full_reference(x, emb, weights_pool, bias_pool, cheb_k):
    supports_k = _supports_stacked_reference(emb, cheb_k)
    x_g = jnp.einsum('tknm,btmc->btknc', supports_k, x,
                     precision=lax.Precision.HIGHEST)
    x_gconv = jnp.einsum('btkni,tnkio->btno', x_g, weights_pool,
                         precision=lax.Precision.HIGHEST) + bias_pool
    return x_gconv


if __name__ == "__main__":
    B, T, N, C_in, C_out, K = 2, 8, 16, 4, 8, 3

    key = jax.random.PRNGKey(0)
    k1, k2, k3, k4 = jax.random.split(key, 4)
    dn_embeddings = jax.random.normal(k1, (T, N), jnp.float32)
    weights_pool = jax.random.normal(k2, (T, N, K, C_in, C_out), jnp.float32)
    bias_pool = jax.random.normal(k3, (T, N, C_out), jnp.float32)
    x = jax.random.normal(k4, (B, T, N, C_in), jnp.float32)

    out, _ = dagcn_full(x, dn_embeddings, weights_pool, bias_pool, cheb_k=K)
    out = jax.block_until_ready(out)

    ref = dagcn_full_reference(x, dn_embeddings, weights_pool, bias_pool, K)
    assert out.shape == (B, T, N, C_out)
    # bf16 activations/supports on the MXU path + approx reciprocal -> loose tolerance.
    if not jnp.allclose(out, ref, rtol=3e-2, atol=1e-1):
        raise AssertionError(
            f"mismatch vs reference, max abs err = {jnp.max(jnp.abs(out - ref))}")

    print("KERNEL_OK")
</pallas_src>

<mosaic_0001>
module attributes {stable_mosaic.version = 11 : i64} {
  func.func @_dagcn_kernel(%arg0: i32, %arg1: memref<4x1x16xf32, #tpu.memory_space<vmem>>, %arg2: memref<4x16x1xf32, #tpu.memory_space<vmem>>, %arg3: memref<4x16x128xbf16, #tpu.memory_space<vmem>>, %arg4: memref<4x16x128xf32, #tpu.memory_space<vmem>>, %arg5: memref<4x16x8xf32, #tpu.memory_space<vmem>>, %arg6: memref<4x16x128xf32, #tpu.memory_space<vmem>>) attributes {dimension_semantics = [#tpu.dimension_semantics<parallel>], iteration_bounds = array<i64: 2>, scalar_prefetch = 0 : i64, scratch_operands = 0 : i64, tpu.core_type = #tpu.core_type<tc>, window_params = [{transform_indices = @transform_0, window_bounds = array<i64: 4, 1, 16>}, {transform_indices = @transform_1, window_bounds = array<i64: 4, 16, 1>}, {transform_indices = @transform_2, window_bounds = array<i64: 4, 16, 128>}, {transform_indices = @transform_3, window_bounds = array<i64: 4, 16, 128>}, {transform_indices = @transform_4, window_bounds = array<i64: 4, 16, 8>}, {transform_indices = @transform_5, window_bounds = array<i64: 4, 16, 128>}]} {
    %cst = arith.constant 0.000000e+00 : f32
    %0 = vector.broadcast %cst : f32 to vector<16x112xf32>
    %c0_i32 = arith.constant 0 : i32
    %1 = arith.index_cast %c0_i32 : i32 to index
    %c0 = arith.constant 0 : index
    %c0_0 = arith.constant 0 : index
    %2 = vector.load %arg1[%1, %c0, %c0_0] : memref<4x1x16xf32, #tpu.memory_space<vmem>>, vector<1x1x16xf32>
    %3 = vector.shape_cast %2 : vector<1x1x16xf32> to vector<1x16xf32>
    %4 = arith.index_cast %c0_i32 : i32 to index
    %c0_1 = arith.constant 0 : index
    %c0_2 = arith.constant 0 : index
    %5 = vector.load %arg2[%4, %c0_1, %c0_2] : memref<4x16x1xf32, #tpu.memory_space<vmem>>, vector<1x16x1xf32>
    %6 = vector.shape_cast %5 : vector<1x16x1xf32> to vector<16x1xf32>
    %7 = vector.broadcast %6 : vector<16x1xf32> to vector<16x16xf32>
    %8 = vector.broadcast %3 : vector<1x16xf32> to vector<16x16xf32>
    %9 = arith.mulf %7, %8 : vector<16x16xf32>
    %cst_3 = arith.constant 0.000000e+00 : f32
    %10 = vector.broadcast %cst_3 : f32 to vector<16x16xf32>
    %11 = arith.maximumf %9, %10 : vector<16x16xf32>
    %cst_4 = arith.constant dense<0xFF800000> : vector<16xf32>
    %12 = vector.multi_reduction <maximumf>, %11, %cst_4 [1] : vector<16x16xf32> to vector<16xf32>
    %13 = vector.shape_cast %12 : vector<16xf32> to vector<16x1xf32>
    %14 = vector.broadcast %13 : vector<16x1xf32> to vector<16x16xf32>
    %15 = arith.subf %11, %14 : vector<16x16xf32>
    %16 = math.exp %15 : vector<16x16xf32>
    %cst_5 = arith.constant dense<0.000000e+00> : vector<16xf32>
    %17 = vector.multi_reduction <add>, %16, %cst_5 [1] : vector<16x16xf32> to vector<16xf32>
    %18 = vector.shape_cast %17 : vector<16xf32> to vector<16x1xf32>
    %19 = tpu.reciprocal %18 {approx = true} : vector<16x1xf32> -> vector<16x1xf32>
    %20 = arith.index_cast %c0_i32 : i32 to index
    %c0_6 = arith.constant 0 : index
    %c0_7 = arith.constant 0 : index
    %21 = vector.load %arg3[%20, %c0_6, %c0_7] : memref<4x16x128xbf16, #tpu.memory_space<vmem>>, vector<1x16x128xbf16>
    %22 = vector.shape_cast %21 : vector<1x16x128xbf16> to vector<16x128xbf16>
    %23 = arith.extf %22 : vector<16x128xbf16> to vector<16x128xf32>
    %24 = vector.broadcast %19 : vector<16x1xf32> to vector<16x16xf32>
    %25 = arith.mulf %16, %24 : vector<16x16xf32>
    %26 = arith.truncf %25 : vector<16x16xf32> to vector<16x16xbf16>
    %cst_8 = arith.constant dense<0.000000e+00> : vector<16x128xf32>
    %27 = tpu.matmul %26, %22, %cst_8 {dimension_numbers = #tpu.dot_dimension_numbers<[1], [0], [0], [1], [0, 0, 1, 1], [], []>} : vector<16x16xbf16>, vector<16x128xbf16>, vector<16x128xf32> -> vector<16x128xf32>
    %28 = arith.mulf %6, %6 : vector<16x1xf32>
    %29 = arith.subf %28, %13 : vector<16x1xf32>
    %30 = math.exp %29 : vector<16x1xf32>
    %31 = arith.mulf %30, %19 : vector<16x1xf32>
    %cst_9 = arith.constant 2.000000e+00 : f32
    %32 = vector.broadcast %cst_9 : f32 to vector<16x1xf32>
    %33 = arith.mulf %32, %31 : vector<16x1xf32>
    %34 = vector.broadcast %33 : vector<16x1xf32> to vector<16x128xf32>
    %35 = arith.mulf %34, %27 : vector<16x128xf32>
    %36 = arith.subf %35, %23 : vector<16x128xf32>
    %37 = arith.index_cast %c0_i32 : i32 to index
    %c0_10 = arith.constant 0 : index
    %c0_11 = arith.constant 0 : index
    %38 = vector.load %arg4[%37, %c0_10, %c0_11] : memref<4x16x128xf32, #tpu.memory_space<vmem>>, vector<1x16x128xf32>
    %39 = vector.shape_cast %38 : vector<1x16x128xf32> to vector<16x128xf32>
    %40 = arith.index_cast %c0_i32 : i32 to index
    %c0_12 = arith.constant 0 : index
    %c0_13 = arith.constant 0 : index
    %41 = vector.load %arg5[%40, %c0_12, %c0_13] : memref<4x16x8xf32, #tpu.memory_space<vmem>>, vector<1x16x8xf32>
    %42 = vector.shape_cast %41 : vector<1x16x8xf32> to vector<16x8xf32>
    %43 = vector.extract_strided_slice %39 {offsets = [0, 0], sizes = [16, 8], strides = [1, 1]} : vector<16x128xf32> to vector<16x8xf32>
    %44 = vector.extract_strided_slice %23 {offsets = [0, 0], sizes = [16, 1], strides = [1, 1]} : vector<16x128xf32> to vector<16x1xf32>
    %45 = vector.broadcast %44 : vector<16x1xf32> to vector<16x8xf32>
    %46 = arith.mulf %45, %43 : vector<16x8xf32>
    %47 = arith.addf %42, %46 : vector<16x8xf32>
    %48 = vector.extract_strided_slice %23 {offsets = [0, 4], sizes = [16, 1], strides = [1, 1]} : vector<16x128xf32> to vector<16x1xf32>
    %49 = vector.broadcast %48 : vector<16x1xf32> to vector<16x8xf32>
    %50 = arith.mulf %49, %43 : vector<16x8xf32>
    %51 = arith.addf %42, %50 : vector<16x8xf32>
    %52 = vector.extract_strided_slice %39 {offsets = [0, 8], sizes = [16, 8], strides = [1, 1]} : vector<16x128xf32> to vector<16x8xf32>
    %53 = vector.extract_strided_slice %23 {offsets = [0, 1], sizes = [16, 1], strides = [1, 1]} : vector<16x128xf32> to vector<16x1xf32>
    %54 = vector.broadcast %53 : vector<16x1xf32> to vector<16x8xf32>
    %55 = arith.mulf %54, %52 : vector<16x8xf32>
    %56 = arith.addf %47, %55 : vector<16x8xf32>
    %57 = vector.extract_strided_slice %23 {offsets = [0, 5], sizes = [16, 1], strides = [1, 1]} : vector<16x128xf32> to vector<16x1xf32>
    %58 = vector.broadcast %57 : vector<16x1xf32> to vector<16x8xf32>
    %59 = arith.mulf %58, %52 : vector<16x8xf32>
    %60 = arith.addf %51, %59 : vector<16x8xf32>
    %61 = vector.extract_strided_slice %39 {offsets = [0, 16], sizes = [16, 8], strides = [1, 1]} : vector<16x128xf32> to vector<16x8xf32>
    %62 = vector.extract_strided_slice %23 {offsets = [0, 2], sizes = [16, 1], strides = [1, 1]} : vector<16x128xf32> to vector<16x1xf32>
    %63 = vector.broadcast %62 : vector<16x1xf32> to vector<16x8xf32>
    %64 = arith.mulf %63, %61 : vector<16x8xf32>
    %65 = arith.addf %56, %64 : vector<16x8xf32>
    %66 = vector.extract_strided_slice %23 {offsets = [0, 6], sizes = [16, 1], strides = [1, 1]} : vector<16x128xf32> to vector<16x1xf32>
    %67 = vector.broadcast %66 : vector<16x1xf32> to vector<16x8xf32>
    %68 = arith.mulf %67, %61 : vector<16x8xf32>
    %69 = arith.addf %60, %68 : vector<16x8xf32>
    %70 = vector.extract_strided_slice %39 {offsets = [0, 24], sizes = [16, 8], strides = [1, 1]} : vector<16x128xf32> to vector<16x8xf32>
    %71 = vector.extract_strided_slice %23 {offsets = [0, 3], sizes = [16, 1], strides = [1, 1]} : vector<16x128xf32> to vector<16x1xf32>
    %72 = vector.broadcast %71 : vector<16x1xf32> to vector<16x8xf32>
    %73 = arith.mulf %72, %70 : vector<16x8xf32>
    %74 = arith.addf %65, %73 : vector<16x8xf32>
    %75 = vector.extract_strided_slice %23 {offsets = [0, 7], sizes = [16, 1], strides = [1, 1]} : vector<16x128xf32> to vector<16x1xf32>
    %76 = vector.broadcast %75 : vector<16x1xf32> to vector<16x8xf32>
    %77 = arith.mulf %76, %70 : vector<16x8xf32>
    %78 = arith.addf %69, %77 : vector<16x8xf32>
    %79 = vector.extract_strided_slice %39 {offsets = [0, 32], sizes = [16, 8], strides = [1, 1]} : vector<16x128xf32> to vector<16x8xf32>
    %80 = vector.extract_strided_slice %27 {offsets = [0, 0], sizes = [16, 1], strides = [1, 1]} : vector<16x128xf32> to vector<16x1xf32>
    %81 = vector.broadcast %80 : vector<16x1xf32> to vector<16x8xf32>
    %82 = arith.mulf %81, %79 : vector<16x8xf32>
    %83 = arith.addf %74, %82 : vector<16x8xf32>
    %84 = vector.extract_strided_slice %27 {offsets = [0, 4], sizes = [16, 1], strides = [1, 1]} : vector<16x128xf32> to vector<16x1xf32>
    %85 = vector.broadcast %84 : vector<16x1xf32> to vector<16x8xf32>
    %86 = arith.mulf %85, %79 : vector<16x8xf32>
    %87 = arith.addf %78, %86 : vector<16x8xf32>
    %88 = vector.extract_strided_slice %39 {offsets = [0, 40], sizes = [16, 8], strides = [1, 1]} : vector<16x128xf32> to vector<16x8xf32>
    %89 = vector.extract_strided_slice %27 {offsets = [0, 1], sizes = [16, 1], strides = [1, 1]} : vector<16x128xf32> to vector<16x1xf32>
    %90 = vector.broadcast %89 : vector<16x1xf32> to vector<16x8xf32>
    %91 = arith.mulf %90, %88 : vector<16x8xf32>
    %92 = arith.addf %83, %91 : vector<16x8xf32>
    %93 = vector.extract_strided_slice %27 {offsets = [0, 5], sizes = [16, 1], strides = [1, 1]} : vector<16x128xf32> to vector<16x1xf32>
    %94 = vector.broadcast %93 : vector<16x1xf32> to vector<16x8xf32>
    %95 = arith.mulf %94, %88 : vector<16x8xf32>
    %96 = arith.addf %87, %95 : vector<16x8xf32>
    %97 = vector.extract_strided_slice %39 {offsets = [0, 48], sizes = [16, 8], strides = [1, 1]} : vector<16x128xf32> to vector<16x8xf32>
    %98 = vector.extract_strided_slice %27 {offsets = [0, 2], sizes = [16, 1], strides = [1, 1]} : vector<16x128xf32> to vector<16x1xf32>
    %99 = vector.broadcast %98 : vector<16x1xf32> to vector<16x8xf32>
    %100 = arith.mulf %99, %97 : vector<16x8xf32>
    %101 = arith.addf %92, %100 : vector<16x8xf32>
    %102 = vector.extract_strided_slice %27 {offsets = [0, 6], sizes = [16, 1], strides = [1, 1]} : vector<16x128xf32> to vector<16x1xf32>
    %103 = vector.broadcast %102 : vector<16x1xf32> to vector<16x8xf32>
    %104 = arith.mulf %103, %97 : vector<16x8xf32>
    %105 = arith.addf %96, %104 : vector<16x8xf32>
    %106 = vector.extract_strided_slice %39 {offsets = [0, 56], sizes = [16, 8], strides = [1, 1]} : vector<16x128xf32> to vector<16x8xf32>
    %107 = vector.extract_strided_slice %27 {offsets = [0, 3], sizes = [16, 1], strides = [1, 1]} : vector<16x128xf32> to vector<16x1xf32>
    %108 = vector.broadcast %107 : vector<16x1xf32> to vector<16x8xf32>
    %109 = arith.mulf %108, %106 : vector<16x8xf32>
    %110 = arith.addf %101, %109 : vector<16x8xf32>
    %111 = vector.extract_strided_slice %27 {offsets = [0, 7], sizes = [16, 1], strides = [1, 1]} : vector<16x128xf32> to vector<16x1xf32>
    %112 = vector.broadcast %111 : vector<16x1xf32> to vector<16x8xf32>
    %113 = arith.mulf %112, %106 : vector<16x8xf32>
    %114 = arith.addf %105, %113 : vector<16x8xf32>
    %115 = vector.extract_strided_slice %39 {offsets = [0, 64], sizes = [16, 8], strides = [1, 1]} : vector<16x128xf32> to vector<16x8xf32>
    %116 = vector.extract_strided_slice %36 {offsets = [0, 0], sizes = [16, 1], strides = [1, 1]} : vector<16x128xf32> to vector<16x1xf32>
    %117 = vector.broadcast %116 : vector<16x1xf32> to vector<16x8xf32>
    %118 = arith.mulf %117, %115 : vector<16x8xf32>
    %119 = arith.addf %110, %118 : vector<16x8xf32>
    %120 = vector.extract_strided_slice %36 {offsets = [0, 4], sizes = [16, 1], strides = [1, 1]} : vector<16x128xf32> to vector<16x1xf32>
    %121 = vector.broadcast %120 : vector<16x1xf32> to vector<16x8xf32>
    %122 = arith.mulf %121, %115 : vector<16x8xf32>
    %123 = arith.addf %114, %122 : vector<16x8xf32>
    %124 = vector.extract_strided_slice %39 {offsets = [0, 72], sizes = [16, 8], strides = [1, 1]} : vector<16x128xf32> to vector<16x8xf32>
    %125 = vector.extract_strided_slice %36 {offsets = [0, 1], sizes = [16, 1], strides = [1, 1]} : vector<16x128xf32> to vector<16x1xf32>
    %126 = vector.broadcast %125 : vector<16x1xf32> to vector<16x8xf32>
    %127 = arith.mulf %126, %124 : vector<16x8xf32>
    %128 = arith.addf %119, %127 : vector<16x8xf32>
    %129 = vector.extract_strided_slice %36 {offsets = [0, 5], sizes = [16, 1], strides = [1, 1]} : vector<16x128xf32> to vector<16x1xf32>
    %130 = vector.broadcast %129 : vector<16x1xf32> to vector<16x8xf32>
    %131 = arith.mulf %130, %124 : vector<16x8xf32>
    %132 = arith.addf %123, %131 : vector<16x8xf32>
    %133 = vector.extract_strided_slice %39 {offsets = [0, 80], sizes = [16, 8], strides = [1, 1]} : vector<16x128xf32> to vector<16x8xf32>
    %134 = vector.extract_strided_slice %36 {offsets = [0, 2], sizes = [16, 1], strides = [1, 1]} : vector<16x128xf32> to vector<16x1xf32>
    %135 = vector.broadcast %134 : vector<16x1xf32> to vector<16x8xf32>
    %136 = arith.mulf %135, %133 : vector<16x8xf32>
    %137 = arith.addf %128, %136 : vector<16x8xf32>
    %138 = vector.extract_strided_slice %36 {offsets = [0, 6], sizes = [16, 1], strides = [1, 1]} : vector<16x128xf32> to vector<16x1xf32>
    %139 = vector.broadcast %138 : vector<16x1xf32> to vector<16x8xf32>
    %140 = arith.mulf %139, %133 : vector<16x8xf32>
    %141 = arith.addf %132, %140 : vector<16x8xf32>
    %142 = vector.extract_strided_slice %39 {offsets = [0, 88], sizes = [16, 8], strides = [1, 1]} : vector<16x128xf32> to vector<16x8xf32>
    %143 = vector.extract_strided_slice %36 {offsets = [0, 3], sizes = [16, 1], strides = [1, 1]} : vector<16x128xf32> to vector<16x1xf32>
    %144 = vector.broadcast %143 : vector<16x1xf32> to vector<16x8xf32>
    %145 = arith.mulf %144, %142 : vector<16x8xf32>
    %146 = arith.addf %137, %145 : vector<16x8xf32>
    %147 = vector.extract_strided_slice %36 {offsets = [0, 7], sizes = [16, 1], strides = [1, 1]} : vector<16x128xf32> to vector<16x1xf32>
    %148 = vector.broadcast %147 : vector<16x1xf32> to vector<16x8xf32>
    %149 = arith.mulf %148, %142 : vector<16x8xf32>
    %150 = arith.addf %141, %149 : vector<16x8xf32>
    %151 = tpu.concatenate %146, %150, %0 in 1 : vector<16x8xf32>, vector<16x8xf32>, vector<16x112xf32> -> vector<16x128xf32>
    %152 = arith.index_cast %c0_i32 : i32 to index
    %c0_14 = arith.constant 0 : index
    %c0_15 = arith.constant 0 : index
    %153 = vector.load %arg6[%152, %c0_14, %c0_15] : memref<4x16x128xf32, #tpu.memory_space<vmem>>, vector<1x16x128xf32>
    %154 = vector.shape_cast %153 : vector<1x16x128xf32> to vector<16x128xf32>
    %155 = vector.shape_cast %151 : vector<16x128xf32> to vector<1x16x128xf32>
    tpu.vector_store %arg6[%152, %c0_14, %c0_15], %155 {strides = array<i32>} : memref<4x16x128xf32, #tpu.memory_space<vmem>>, vector<1x16x128xf32>,
    %c1_i32 = arith.constant 1 : i32
    %156 = arith.index_cast %c1_i32 : i32 to index
    %c0_16 = arith.constant 0 : index
    %c0_17 = arith.constant 0 : index
    %157 = vector.load %arg1[%156, %c0_16, %c0_17] : memref<4x1x16xf32, #tpu.memory_space<vmem>>, vector<1x1x16xf32>
    %158 = vector.shape_cast %157 : vector<1x1x16xf32> to vector<1x16xf32>
    %159 = arith.index_cast %c1_i32 : i32 to index
    %c0_18 = arith.constant 0 : index
    %c0_19 = arith.constant 0 : index
    %160 = vector.load %arg2[%159, %c0_18, %c0_19] : memref<4x16x1xf32, #tpu.memory_space<vmem>>, vector<1x16x1xf32>
    %161 = vector.shape_cast %160 : vector<1x16x1xf32> to vector<16x1xf32>
    %162 = vector.broadcast %161 : vector<16x1xf32> to vector<16x16xf32>
    %163 = vector.broadcast %158 : vector<1x16xf32> to vector<16x16xf32>
    %164 = arith.mulf %162, %163 : vector<16x16xf32>
    %cst_20 = arith.constant 0.000000e+00 : f32
    %165 = vector.broadcast %cst_20 : f32 to vector<16x16xf32>
    %166 = arith.maximumf %164, %165 : vector<16x16xf32>
    %cst_21 = arith.constant dense<0xFF800000> : vector<16xf32>
    %167 = vector.multi_reduction <maximumf>, %166, %cst_21 [1] : vector<16x16xf32> to vector<16xf32>
    %168 = vector.shape_cast %167 : vector<16xf32> to vector<16x1xf32>
    %169 = vector.broadcast %168 : vector<16x1xf32> to vector<16x16xf32>
    %170 = arith.subf %166, %169 : vector<16x16xf32>
    %171 = math.exp %170 : vector<16x16xf32>
    %cst_22 = arith.constant dense<0.000000e+00> : vector<16xf32>
    %172 = vector.multi_reduction <add>, %171, %cst_22 [1] : vector<16x16xf32> to vector<16xf32>
    %173 = vector.shape_cast %172 : vector<16xf32> to vector<16x1xf32>
    %174 = tpu.reciprocal %173 {approx = true} : vector<16x1xf32> -> vector<16x1xf32>
    %175 = arith.index_cast %c1_i32 : i32 to index
    %c0_23 = arith.constant 0 : index
    %c0_24 = arith.constant 0 : index
    %176 = vector.load %arg3[%175, %c0_23, %c0_24] : memref<4x16x128xbf16, #tpu.memory_space<vmem>>, vector<1x16x128xbf16>
    %177 = vector.shape_cast %176 : vector<1x16x128xbf16> to vector<16x128xbf16>
    %178 = arith.extf %177 : vector<16x128xbf16> to vector<16x128xf32>
    %179 = vector.broadcast %174 : vector<16x1xf32> to vector<16x16xf32>
    %180 = arith.mulf %171, %179 : vector<16x16xf32>
    %181 = arith.truncf %180 : vector<16x16xf32> to vector<16x16xbf16>
    %cst_25 = arith.constant dense<0.000000e+00> : vector<16x128xf32>
    %182 = tpu.matmul %181, %177, %cst_25 {dimension_numbers = #tpu.dot_dimension_numbers<[1], [0], [0], [1], [0, 0, 1, 1], [], []>} : vector<16x16xbf16>, vector<16x128xbf16>, vector<16x128xf32> -> vector<16x128xf32>
    %183 = arith.mulf %161, %161 : vector<16x1xf32>
    %184 = arith.subf %183, %168 : vector<16x1xf32>
    %185 = math.exp %184 : vector<16x1xf32>
    %186 = arith.mulf %185, %174 : vector<16x1xf32>
    %cst_26 = arith.constant 2.000000e+00 : f32
    %187 = vector.broadcast %cst_26 : f32 to vector<16x1xf32>
    %188 = arith.mulf %187, %186 : vector<16x1xf32>
    %189 = vector.broadcast %188 : vector<16x1xf32> to vector<16x128xf32>
    %190 = arith.mulf %189, %182 : vector<16x128xf32>
    %191 = arith.subf %190, %178 : vector<16x128xf32>
    %192 = arith.index_cast %c1_i32 : i32 to index
    %c0_27 = arith.constant 0 : index
    %c0_28 = arith.constant 0 : index
    %193 = vector.load %arg4[%192, %c0_27, %c0_28] : memref<4x16x128xf32, #tpu.memory_space<vmem>>, vector<1x16x128xf32>
    %194 = vector.shape_cast %193 : vector<1x16x128xf32> to vector<16x128xf32>
    %195 = arith.index_cast %c1_i32 : i32 to index
    %c0_29 = arith.constant 0 : index
    %c0_30 = arith.constant 0 : index
    %196 = vector.load %arg5[%195, %c0_29, %c0_30] : memref<4x16x8xf32, #tpu.memory_space<vmem>>, vector<1x16x8xf32>
    %197 = vector.shape_cast %196 : vector<1x16x8xf32> to vector<16x8xf32>
    %198 = vector.extract_strided_slice %194 {offsets = [0, 0], sizes = [16, 8], strides = [1, 1]} : vector<16x128xf32> to vector<16x8xf32>
    %199 = vector.extract_strided_slice %178 {offsets = [0, 0], sizes = [16, 1], strides = [1, 1]} : vector<16x128xf32> to vector<16x1xf32>
    %200 = vector.broadcast %199 : vector<16x1xf32> to vector<16x8xf32>
    %201 = arith.mulf %200, %198 : vector<16x8xf32>
    %202 = arith.addf %197, %201 : vector<16x8xf32>
    %203 = vector.extract_strided_slice %178 {offsets = [0, 4], sizes = [16, 1], strides = [1, 1]} : vector<16x128xf32> to vector<16x1xf32>
    %204 = vector.broadcast %203 : vector<16x1xf32> to vector<16x8xf32>
    %205 = arith.mulf %204, %198 : vector<16x8xf32>
    %206 = arith.addf %197, %205 : vector<16x8xf32>
    %207 = vector.extract_strided_slice %194 {offsets = [0, 8], sizes = [16, 8], strides = [1, 1]} : vector<16x128xf32> to vector<16x8xf32>
    %208 = vector.extract_strided_slice %178 {offsets = [0, 1], sizes = [16, 1], strides = [1, 1]} : vector<16x128xf32> to vector<16x1xf32>
    %209 = vector.broadcast %208 : vector<16x1xf32> to vector<16x8xf32>
    %210 = arith.mulf %209, %207 : vector<16x8xf32>
    %211 = arith.addf %202, %210 : vector<16x8xf32>
    %212 = vector.extract_strided_slice %178 {offsets = [0, 5], sizes = [16, 1], strides = [1, 1]} : vector<16x128xf32> to vector<16x1xf32>
    %213 = vector.broadcast %212 : vector<16x1xf32> to vector<16x8xf32>
    %214 = arith.mulf %213, %207 : vector<16x8xf32>
    %215 = arith.addf %206, %214 : vector<16x8xf32>
    %216 = vector.extract_strided_slice %194 {offsets = [0, 16], sizes = [16, 8], strides = [1, 1]} : vector<16x128xf32> to vector<16x8xf32>
    %217 = vector.extract_strided_slice %178 {offsets = [0, 2], sizes = [16, 1], strides = [1, 1]} : vector<16x128xf32> to vector<16x1xf32>
    %218 = vector.broadcast %217 : vector<16x1xf32> to vector<16x8xf32>
    %219 = arith.mulf %218, %216 : vector<16x8xf32>
    %220 = arith.addf %211, %219 : vector<16x8xf32>
    %221 = vector.extract_strided_slice %178 {offsets = [0, 6], sizes = [16, 1], strides = [1, 1]} : vector<16x128xf32> to vector<16x1xf32>
    %222 = vector.broadcast %221 : vector<16x1xf32> to vector<16x8xf32>
    %223 = arith.mulf %222, %216 : vector<16x8xf32>
    %224 = arith.addf %215, %223 : vector<16x8xf32>
    %225 = vector.extract_strided_slice %194 {offsets = [0, 24], sizes = [16, 8], strides = [1, 1]} : vector<16x128xf32> to vector<16x8xf32>
    %226 = vector.extract_strided_slice %178 {offsets = [0, 3], sizes = [16, 1], strides = [1, 1]} : vector<16x128xf32> to vector<16x1xf32>
    %227 = vector.broadcast %226 : vector<16x1xf32> to vector<16x8xf32>
    %228 = arith.mulf %227, %225 : vector<16x8xf32>
    %229 = arith.addf %220, %228 : vector<16x8xf32>
    %230 = vector.extract_strided_slice %178 {offsets = [0, 7], sizes = [16, 1], strides = [1, 1]} : vector<16x128xf32> to vector<16x1xf32>
    %231 = vector.broadcast %230 : vector<16x1xf32> to vector<16x8xf32>
    %232 = arith.mulf %231, %225 : vector<16x8xf32>
    %233 = arith.addf %224, %232 : vector<16x8xf32>
    %234 = vector.extract_strided_slice %194 {offsets = [0, 32], sizes = [16, 8], strides = [1, 1]} : vector<16x128xf32> to vector<16x8xf32>
    %235 = vector.extract_strided_slice %182 {offsets = [0, 0], sizes = [16, 1], strides = [1, 1]} : vector<16x128xf32> to vector<16x1xf32>
    %236 = vector.broadcast %235 : vector<16x1xf32> to vector<16x8xf32>
    %237 = arith.mulf %236, %234 : vector<16x8xf32>
    %238 = arith.addf %229, %237 : vector<16x8xf32>
    %239 = vector.extract_strided_slice %182 {offsets = [0, 4], sizes = [16, 1], strides = [1, 1]} : vector<16x128xf32> to vector<16x1xf32>
    %240 = vector.broadcast %239 : vector<16x1xf32> to vector<16x8xf32>
    %241 = arith.mulf %240, %234 : vector<16x8xf32>
    %242 = arith.addf %233, %241 : vector<16x8xf32>
    %243 = vector.extract_strided_slice %194 {offsets = [0, 40], sizes = [16, 8], strides = [1, 1]} : vector<16x128xf32> to vector<16x8xf32>
    %244 = vector.extract_strided_slice %182 {offsets = [0, 1], sizes = [16, 1], strides = [1, 1]} : vector<16x128xf32> to vector<16x1xf32>
    %245 = vector.broadcast %244 : vector<16x1xf32> to vector<16x8xf32>
    %246 = arith.mulf %245, %243 : vector<16x8xf32>
    %247 = arith.addf %238, %246 : vector<16x8xf32>
    %248 = vector.extract_strided_slice %182 {offsets = [0, 5], sizes = [16, 1], strides = [1, 1]} : vector<16x128xf32> to vector<16x1xf32>
    %249 = vector.broadcast %248 : vector<16x1xf32> to vector<16x8xf32>
    %250 = arith.mulf %249, %243 : vector<16x8xf32>
    %251 = arith.addf %242, %250 : vector<16x8xf32>
    %252 = vector.extract_strided_slice %194 {offsets = [0, 48], sizes = [16, 8], strides = [1, 1]} : vector<16x128xf32> to vector<16x8xf32>
    %253 = vector.extract_strided_slice %182 {offsets = [0, 2], sizes = [16, 1], strides = [1, 1]} : vector<16x128xf32> to vector<16x1xf32>
    %254 = vector.broadcast %253 : vector<16x1xf32> to vector<16x8xf32>
    %255 = arith.mulf %254, %252 : vector<16x8xf32>
    %256 = arith.addf %247, %255 : vector<16x8xf32>
    %257 = vector.extract_strided_slice %182 {offsets = [0, 6], sizes = [16, 1], strides = [1, 1]} : vector<16x128xf32> to vector<16x1xf32>
    %258 = vector.broadcast %257 : vector<16x1xf32> to vector<16x8xf32>
    %259 = arith.mulf %258, %252 : vector<16x8xf32>
    %260 = arith.addf %251, %259 : vector<16x8xf32>
    %261 = vector.extract_strided_slice %194 {offsets = [0, 56], sizes = [16, 8], strides = [1, 1]} : vector<16x128xf32> to vector<16x8xf32>
    %262 = vector.extract_strided_slice %182 {offsets = [0, 3], sizes = [16, 1], strides = [1, 1]} : vector<16x128xf32> to vector<16x1xf32>
    %263 = vector.broadcast %262 : vector<16x1xf32> to vector<16x8xf32>
    %264 = arith.mulf %263, %261 : vector<16x8xf32>
    %265 = arith.addf %256, %264 : vector<16x8xf32>
    %266 = vector.extract_strided_slice %182 {offsets = [0, 7], sizes = [16, 1], strides = [1, 1]} : vector<16x128xf32> to vector<16x1xf32>
    %267 = vector.broadcast %266 : vector<16x1xf32> to vector<16x8xf32>
    %268 = arith.mulf %267, %261 : vector<16x8xf32>
    %269 = arith.addf %260, %268 : vector<16x8xf32>
    %270 = vector.extract_strided_slice %194 {offsets = [0, 64], sizes = [16, 8], strides = [1, 1]} : vector<16x128xf32> to vector<16x8xf32>
    %271 = vector.extract_strided_slice %191 {offsets = [0, 0], sizes = [16, 1], strides = [1, 1]} : vector<16x128xf32> to vector<16x1xf32>
    %272 = vector.broadcast %271 : vector<16x1xf32> to vector<16x8xf32>
    %273 = arith.mulf %272, %270 : vector<16x8xf32>
    %274 = arith.addf %265, %273 : vector<16x8xf32>
    %275 = vector.extract_strided_slice %191 {offsets = [0, 4], sizes = [16, 1], strides = [1, 1]} : vector<16x128xf32> to vector<16x1xf32>
    %276 = vector.broadcast %275 : vector<16x1xf32> to vector<16x8xf32>
    %277 = arith.mulf %276, %270 : vector<16x8xf32>
    %278 = arith.addf %269, %277 : vector<16x8xf32>
    %279 = vector.extract_strided_slice %194 {offsets = [0, 72], sizes = [16, 8], strides = [1, 1]} : vector<16x128xf32> to vector<16x8xf32>
    %280 = vector.extract_strided_slice %191 {offsets = [0, 1], sizes = [16, 1], strides = [1, 1]} : vector<16x128xf32> to vector<16x1xf32>
    %281 = vector.broadcast %280 : vector<16x1xf32> to vector<16x8xf32>
    %282 = arith.mulf %281, %279 : vector<16x8xf32>
    %283 = arith.addf %274, %282 : vector<16x8xf32>
    %284 = vector.extract_strided_slice %191 {offsets = [0, 5], sizes = [16, 1], strides = [1, 1]} : vector<16x128xf32> to vector<16x1xf32>
    %285 = vector.broadcast %284 : vector<16x1xf32> to vector<16x8xf32>
    %286 = arith.mulf %285, %279 : vector<16x8xf32>
    %287 = arith.addf %278, %286 : vector<16x8xf32>
    %288 = vector.extract_strided_slice %194 {offsets = [0, 80], sizes = [16, 8], strides = [1, 1]} : vector<16x128xf32> to vector<16x8xf32>
    %289 = vector.extract_strided_slice %191 {offsets = [0, 2], sizes = [16, 1], strides = [1, 1]} : vector<16x128xf32> to vector<16x1xf32>
    %290 = vector.broadcast %289 : vector<16x1xf32> to vector<16x8xf32>
    %291 = arith.mulf %290, %288 : vector<16x8xf32>
    %292 = arith.addf %283, %291 : vector<16x8xf32>
    %293 = vector.extract_strided_slice %191 {offsets = [0, 6], sizes = [16, 1], strides = [1, 1]} : vector<16x128xf32> to vector<16x1xf32>
    %294 = vector.broadcast %293 : vector<16x1xf32> to vector<16x8xf32>
    %295 = arith.mulf %294, %288 : vector<16x8xf32>
    %296 = arith.addf %287, %295 : vector<16x8xf32>
    %297 = vector.extract_strided_slice %194 {offsets = [0, 88], sizes = [16, 8], strides = [1, 1]} : vector<16x128xf32> to vector<16x8xf32>
    %298 = vector.extract_strided_slice %191 {offsets = [0, 3], sizes = [16, 1], strides = [1, 1]} : vector<16x128xf32> to vector<16x1xf32>
    %299 = vector.broadcast %298 : vector<16x1xf32> to vector<16x8xf32>
    %300 = arith.mulf %299, %297 : vector<16x8xf32>
    %301 = arith.addf %292, %300 : vector<16x8xf32>
    %302 = vector.extract_strided_slice %191 {offsets = [0, 7], sizes = [16, 1], strides = [1, 1]} : vector<16x128xf32> to vector<16x1xf32>
    %303 = vector.broadcast %302 : vector<16x1xf32> to vector<16x8xf32>
    %304 = arith.mulf %303, %297 : vector<16x8xf32>
    %305 = arith.addf %296, %304 : vector<16x8xf32>
    %306 = tpu.concatenate %301, %305, %0 in 1 : vector<16x8xf32>, vector<16x8xf32>, vector<16x112xf32> -> vector<16x128xf32>
    %307 = arith.index_cast %c1_i32 : i32 to index
    %c0_31 = arith.constant 0 : index
    %c0_32 = arith.constant 0 : index
    %308 = vector.load %arg6[%307, %c0_31, %c0_32] : memref<4x16x128xf32, #tpu.memory_space<vmem>>, vector<1x16x128xf32>
    %309 = vector.shape_cast %308 : vector<1x16x128xf32> to vector<16x128xf32>
    %310 = vector.shape_cast %306 : vector<16x128xf32> to vector<1x16x128xf32>
    tpu.vector_store %arg6[%307, %c0_31, %c0_32], %310 {strides = array<i32>} : memref<4x16x128xf32, #tpu.memory_space<vmem>>, vector<1x16x128xf32>,
    %c2_i32 = arith.constant 2 : i32
    %311 = arith.index_cast %c2_i32 : i32 to index
    %c0_33 = arith.constant 0 : index
    %c0_34 = arith.constant 0 : index
    %312 = vector.load %arg1[%311, %c0_33, %c0_34] : memref<4x1x16xf32, #tpu.memory_space<vmem>>, vector<1x1x16xf32>
    %313 = vector.shape_cast %312 : vector<1x1x16xf32> to vector<1x16xf32>
    %314 = arith.index_cast %c2_i32 : i32 to index
    %c0_35 = arith.constant 0 : index
    %c0_36 = arith.constant 0 : index
    %315 = vector.load %arg2[%314, %c0_35, %c0_36] : memref<4x16x1xf32, #tpu.memory_space<vmem>>, vector<1x16x1xf32>
    %316 = vector.shape_cast %315 : vector<1x16x1xf32> to vector<16x1xf32>
    %317 = vector.broadcast %316 : vector<16x1xf32> to vector<16x16xf32>
    %318 = vector.broadcast %313 : vector<1x16xf32> to vector<16x16xf32>
    %319 = arith.mulf %317, %318 : vector<16x16xf32>
    %cst_37 = arith.constant 0.000000e+00 : f32
    %320 = vector.broadcast %cst_37 : f32 to vector<16x16xf32>
    %321 = arith.maximumf %319, %320 : vector<16x16xf32>
    %cst_38 = arith.constant dense<0xFF800000> : vector<16xf32>
    %322 = vector.multi_reduction <maximumf>, %321, %cst_38 [1] : vector<16x16xf32> to vector<16xf32>
    %323 = vector.shape_cast %322 : vector<16xf32> to vector<16x1xf32>
    %324 = vector.broadcast %323 : vector<16x1xf32> to vector<16x16xf32>
    %325 = arith.subf %321, %324 : vector<16x16xf32>
    %326 = math.exp %325 : vector<16x16xf32>
    %cst_39 = arith.constant dense<0.000000e+00> : vector<16xf32>
    %327 = vector.multi_reduction <add>, %326, %cst_39 [1] : vector<16x16xf32> to vector<16xf32>
    %328 = vector.shape_cast %327 : vector<16xf32> to vector<16x1xf32>
    %329 = tpu.reciprocal %328 {approx = true} : vector<16x1xf32> -> vector<16x1xf32>
    %330 = arith.index_cast %c2_i32 : i32 to index
    %c0_40 = arith.constant 0 : index
    %c0_41 = arith.constant 0 : index
    %331 = vector.load %arg3[%330, %c0_40, %c0_41] : memref<4x16x128xbf16, #tpu.memory_space<vmem>>, vector<1x16x128xbf16>
    %332 = vector.shape_cast %331 : vector<1x16x128xbf16> to vector<16x128xbf16>
    %333 = arith.extf %332 : vector<16x128xbf16> to vector<16x128xf32>
    %334 = vector.broadcast %329 : vector<16x1xf32> to vector<16x16xf32>
    %335 = arith.mulf %326, %334 : vector<16x16xf32>
    %336 = arith.truncf %335 : vector<16x16xf32> to vector<16x16xbf16>
    %cst_42 = arith.constant dense<0.000000e+00> : vector<16x128xf32>
    %337 = tpu.matmul %336, %332, %cst_42 {dimension_numbers = #tpu.dot_dimension_numbers<[1], [0], [0], [1], [0, 0, 1, 1], [], []>} : vector<16x16xbf16>, vector<16x128xbf16>, vector<16x128xf32> -> vector<16x128xf32>
    %338 = arith.mulf %316, %316 : vector<16x1xf32>
    %339 = arith.subf %338, %323 : vector<16x1xf32>
    %340 = math.exp %339 : vector<16x1xf32>
    %341 = arith.mulf %340, %329 : vector<16x1xf32>
    %cst_43 = arith.constant 2.000000e+00 : f32
    %342 = vector.broadcast %cst_43 : f32 to vector<16x1xf32>
    %343 = arith.mulf %342, %341 : vector<16x1xf32>
    %344 = vector.broadcast %343 : vector<16x1xf32> to vector<16x128xf32>
    %345 = arith.mulf %344, %337 : vector<16x128xf32>
    %346 = arith.subf %345, %333 : vector<16x128xf32>
    %347 = arith.index_cast %c2_i32 : i32 to index
    %c0_44 = arith.constant 0 : index
    %c0_45 = arith.constant 0 : index
    %348 = vector.load %arg4[%347, %c0_44, %c0_45] : memref<4x16x128xf32, #tpu.memory_space<vmem>>, vector<1x16x128xf32>
    %349 = vector.shape_cast %348 : vector<1x16x128xf32> to vector<16x128xf32>
    %350 = arith.index_cast %c2_i32 : i32 to index
    %c0_46 = arith.constant 0 : index
    %c0_47 = arith.constant 0 : index
    %351 = vector.load %arg5[%350, %c0_46, %c0_47] : memref<4x16x8xf32, #tpu.memory_space<vmem>>, vector<1x16x8xf32>
    %352 = vector.shape_cast %351 : vector<1x16x8xf32> to vector<16x8xf32>
    %353 = vector.extract_strided_slice %349 {offsets = [0, 0], sizes = [16, 8], strides = [1, 1]} : vector<16x128xf32> to vector<16x8xf32>
    %354 = vector.extract_strided_slice %333 {offsets = [0, 0], sizes = [16, 1], strides = [1, 1]} : vector<16x128xf32> to vector<16x1xf32>
    %355 = vector.broadcast %354 : vector<16x1xf32> to vector<16x8xf32>
    %356 = arith.mulf %355, %353 : vector<16x8xf32>
    %357 = arith.addf %352, %356 : vector<16x8xf32>
    %358 = vector.extract_strided_slice %333 {offsets = [0, 4], sizes = [16, 1], strides = [1, 1]} : vector<16x128xf32> to vector<16x1xf32>
    %359 = vector.broadcast %358 : vector<16x1xf32> to vector<16x8xf32>
    %360 = arith.mulf %359, %353 : vector<16x8xf32>
    %361 = arith.addf %352, %360 : vector<16x8xf32>
    %362 = vector.extract_strided_slice %349 {offsets = [0, 8], sizes = [16, 8], strides = [1, 1]} : vector<16x128xf32> to vector<16x8xf32>
    %363 = vector.extract_strided_slice %333 {offsets = [0, 1], sizes = [16, 1], strides = [1, 1]} : vector<16x128xf32> to vector<16x1xf32>
    %364 = vector.broadcast %363 : vector<16x1xf32> to vector<16x8xf32>
    %365 = arith.mulf %364, %362 : vector<16x8xf32>
    %366 = arith.addf %357, %365 : vector<16x8xf32>
    %367 = vector.extract_strided_slice %333 {offsets = [0, 5], sizes = [16, 1], strides = [1, 1]} : vector<16x128xf32> to vector<16x1xf32>
    %368 = vector.broadcast %367 : vector<16x1xf32> to vector<16x8xf32>
    %369 = arith.mulf %368, %362 : vector<16x8xf32>
    %370 = arith.addf %361, %369 : vector<16x8xf32>
    %371 = vector.extract_strided_slice %349 {offsets = [0, 16], sizes = [16, 8], strides = [1, 1]} : vector<16x128xf32> to vector<16x8xf32>
    %372 = vector.extract_strided_slice %333 {offsets = [0, 2], sizes = [16, 1], strides = [1, 1]} : vector<16x128xf32> to vector<16x1xf32>
    %373 = vector.broadcast %372 : vector<16x1xf32> to vector<16x8xf32>
    %374 = arith.mulf %373, %371 : vector<16x8xf32>
    %375 = arith.addf %366, %374 : vector<16x8xf32>
    %376 = vector.extract_strided_slice %333 {offsets = [0, 6], sizes = [16, 1], strides = [1, 1]} : vector<16x128xf32> to vector<16x1xf32>
    %377 = vector.broadcast %376 : vector<16x1xf32> to vector<16x8xf32>
    %378 = arith.mulf %377, %371 : vector<16x8xf32>
    %379 = arith.addf %370, %378 : vector<16x8xf32>
    %380 = vector.extract_strided_slice %349 {offsets = [0, 24], sizes = [16, 8], strides = [1, 1]} : vector<16x128xf32> to vector<16x8xf32>
    %381 = vector.extract_strided_slice %333 {offsets = [0, 3], sizes = [16, 1], strides = [1, 1]} : vector<16x128xf32> to vector<16x1xf32>
    %382 = vector.broadcast %381 : vector<16x1xf32> to vector<16x8xf32>
    %383 = arith.mulf %382, %380 : vector<16x8xf32>
    %384 = arith.addf %375, %383 : vector<16x8xf32>
    %385 = vector.extract_strided_slice %333 {offsets = [0, 7], sizes = [16, 1], strides = [1, 1]} : vector<16x128xf32> to vector<16x1xf32>
    %386 = vector.broadcast %385 : vector<16x1xf32> to vector<16x8xf32>
    %387 = arith.mulf %386, %380 : vector<16x8xf32>
    %388 = arith.addf %379, %387 : vector<16x8xf32>
    %389 = vector.extract_strided_slice %349 {offsets = [0, 32], sizes = [16, 8], strides = [1, 1]} : vector<16x128xf32> to vector<16x8xf32>
    %390 = vector.extract_strided_slice %337 {offsets = [0, 0], sizes = [16, 1], strides = [1, 1]} : vector<16x128xf32> to vector<16x1xf32>
    %391 = vector.broadcast %390 : vector<16x1xf32> to vector<16x8xf32>
    %392 = arith.mulf %391, %389 : vector<16x8xf32>
    %393 = arith.addf %384, %392 : vector<16x8xf32>
    %394 = vector.extract_strided_slice %337 {offsets = [0, 4], sizes = [16, 1], strides = [1, 1]} : vector<16x128xf32> to vector<16x1xf32>
    %395 = vector.broadcast %394 : vector<16x1xf32> to vector<16x8xf32>
    %396 = arith.mulf %395, %389 : vector<16x8xf32>
    %397 = arith.addf %388, %396 : vector<16x8xf32>
    %398 = vector.extract_strided_slice %349 {offsets = [0, 40], sizes = [16, 8], strides = [1, 1]} : vector<16x128xf32> to vector<16x8xf32>
    %399 = vector.extract_strided_slice %337 {offsets = [0, 1], sizes = [16, 1], strides = [1, 1]} : vector<16x128xf32> to vector<16x1xf32>
    %400 = vector.broadcast %399 : vector<16x1xf32> to vector<16x8xf32>
    %401 = arith.mulf %400, %398 : vector<16x8xf32>
    %402 = arith.addf %393, %401 : vector<16x8xf32>
    %403 = vector.extract_strided_slice %337 {offsets = [0, 5], sizes = [16, 1], strides = [1, 1]} : vector<16x128xf32> to vector<16x1xf32>
    %404 = vector.broadcast %403 : vector<16x1xf32> to vector<16x8xf32>
    %405 = arith.mulf %404, %398 : vector<16x8xf32>
    %406 = arith.addf %397, %405 : vector<16x8xf32>
    %407 = vector.extract_strided_slice %349 {offsets = [0, 48], sizes = [16, 8], strides = [1, 1]} : vector<16x128xf32> to vector<16x8xf32>
    %408 = vector.extract_strided_slice %337 {offsets = [0, 2], sizes = [16, 1], strides = [1, 1]} : vector<16x128xf32> to vector<16x1xf32>
    %409 = vector.broadcast %408 : vector<16x1xf32> to vector<16x8xf32>
    %410 = arith.mulf %409, %407 : vector<16x8xf32>
    %411 = arith.addf %402, %410 : vector<16x8xf32>
    %412 = vector.extract_strided_slice %337 {offsets = [0, 6], sizes = [16, 1], strides = [1, 1]} : vector<16x128xf32> to vector<16x1xf32>
    %413 = vector.broadcast %412 : vector<16x1xf32> to vector<16x8xf32>
    %414 = arith.mulf %413, %407 : vector<16x8xf32>
    %415 = arith.addf %406, %414 : vector<16x8xf32>
    %416 = vector.extract_strided_slice %349 {offsets = [0, 56], sizes = [16, 8], strides = [1, 1]} : vector<16x128xf32> to vector<16x8xf32>
    %417 = vector.extract_strided_slice %337 {offsets = [0, 3], sizes = [16, 1], strides = [1, 1]} : vector<16x128xf32> to vector<16x1xf32>
    %418 = vector.broadcast %417 : vector<16x1xf32> to vector<16x8xf32>
    %419 = arith.mulf %418, %416 : vector<16x8xf32>
    %420 = arith.addf %411, %419 : vector<16x8xf32>
    %421 = vector.extract_strided_slice %337 {offsets = [0, 7], sizes = [16, 1], strides = [1, 1]} : vector<16x128xf32> to vector<16x1xf32>
    %422 = vector.broadcast %421 : vector<16x1xf32> to vector<16x8xf32>
    %423 = arith.mulf %422, %416 : vector<16x8xf32>
    %424 = arith.addf %415, %423 : vector<16x8xf32>
    %425 = vector.extract_strided_slice %349 {offsets = [0, 64], sizes = [16, 8], strides = [1, 1]} : vector<16x128xf32> to vector<16x8xf32>
    %426 = vector.extract_strided_slice %346 {offsets = [0, 0], sizes = [16, 1], strides = [1, 1]} : vector<16x128xf32> to vector<16x1xf32>
    %427 = vector.broadcast %426 : vector<16x1xf32> to vector<16x8xf32>
    %428 = arith.mulf %427, %425 : vector<16x8xf32>
    %429 = arith.addf %420, %428 : vector<16x8xf32>
    %430 = vector.extract_strided_slice %346 {offsets = [0, 4], sizes = [16, 1], strides = [1, 1]} : vector<16x128xf32> to vector<16x1xf32>
    %431 = vector.broadcast %430 : vector<16x1xf32> to vector<16x8xf32>
    %432 = arith.mulf %431, %425 : vector<16x8xf32>
    %433 = arith.addf %424, %432 : vector<16x8xf32>
    %434 = vector.extract_strided_slice %349 {offsets = [0, 72], sizes = [16, 8], strides = [1, 1]} : vector<16x128xf32> to vector<16x8xf32>
    %435 = vector.extract_strided_slice %346 {offsets = [0, 1], sizes = [16, 1], strides = [1, 1]} : vector<16x128xf32> to vector<16x1xf32>
    %436 = vector.broadcast %435 : vector<16x1xf32> to vector<16x8xf32>
    %437 = arith.mulf %436, %434 : vector<16x8xf32>
    %438 = arith.addf %429, %437 : vector<16x8xf32>
    %439 = vector.extract_strided_slice %346 {offsets = [0, 5], sizes = [16, 1], strides = [1, 1]} : vector<16x128xf32> to vector<16x1xf32>
    %440 = vector.broadcast %439 : vector<16x1xf32> to vector<16x8xf32>
    %441 = arith.mulf %440, %434 : vector<16x8xf32>
    %442 = arith.addf %433, %441 : vector<16x8xf32>
    %443 = vector.extract_strided_slice %349 {offsets = [0, 80], sizes = [16, 8], strides = [1, 1]} : vector<16x128xf32> to vector<16x8xf32>
    %444 = vector.extract_strided_slice %346 {offsets = [0, 2], sizes = [16, 1], strides = [1, 1]} : vector<16x128xf32> to vector<16x1xf32>
    %445 = vector.broadcast %444 : vector<16x1xf32> to vector<16x8xf32>
    %446 = arith.mulf %445, %443 : vector<16x8xf32>
    %447 = arith.addf %438, %446 : vector<16x8xf32>
    %448 = vector.extract_strided_slice %346 {offsets = [0, 6], sizes = [16, 1], strides = [1, 1]} : vector<16x128xf32> to vector<16x1xf32>
    %449 = vector.broadcast %448 : vector<16x1xf32> to vector<16x8xf32>
    %450 = arith.mulf %449, %443 : vector<16x8xf32>
    %451 = arith.addf %442, %450 : vector<16x8xf32>
    %452 = vector.extract_strided_slice %349 {offsets = [0, 88], sizes = [16, 8], strides = [1, 1]} : vector<16x128xf32> to vector<16x8xf32>
    %453 = vector.extract_strided_slice %346 {offsets = [0, 3], sizes = [16, 1], strides = [1, 1]} : vector<16x128xf32> to vector<16x1xf32>
    %454 = vector.broadcast %453 : vector<16x1xf32> to vector<16x8xf32>
    %455 = arith.mulf %454, %452 : vector<16x8xf32>
    %456 = arith.addf %447, %455 : vector<16x8xf32>
    %457 = vector.extract_strided_slice %346 {offsets = [0, 7], sizes = [16, 1], strides = [1, 1]} : vector<16x128xf32> to vector<16x1xf32>
    %458 = vector.broadcast %457 : vector<16x1xf32> to vector<16x8xf32>
    %459 = arith.mulf %458, %452 : vector<16x8xf32>
    %460 = arith.addf %451, %459 : vector<16x8xf32>
    %461 = tpu.concatenate %456, %460, %0 in 1 : vector<16x8xf32>, vector<16x8xf32>, vector<16x112xf32> -> vector<16x128xf32>
    %462 = arith.index_cast %c2_i32 : i32 to index
    %c0_48 = arith.constant 0 : index
    %c0_49 = arith.constant 0 : index
    %463 = vector.load %arg6[%462, %c0_48, %c0_49] : memref<4x16x128xf32, #tpu.memory_space<vmem>>, vector<1x16x128xf32>
    %464 = vector.shape_cast %463 : vector<1x16x128xf32> to vector<16x128xf32>
    %465 = vector.shape_cast %461 : vector<16x128xf32> to vector<1x16x128xf32>
    tpu.vector_store %arg6[%462, %c0_48, %c0_49], %465 {strides = array<i32>} : memref<4x16x128xf32, #tpu.memory_space<vmem>>, vector<1x16x128xf32>,
    %c3_i32 = arith.constant 3 : i32
    %466 = arith.index_cast %c3_i32 : i32 to index
    %c0_50 = arith.constant 0 : index
    %c0_51 = arith.constant 0 : index
    %467 = vector.load %arg1[%466, %c0_50, %c0_51] : memref<4x1x16xf32, #tpu.memory_space<vmem>>, vector<1x1x16xf32>
    %468 = vector.shape_cast %467 : vector<1x1x16xf32> to vector<1x16xf32>
    %469 = arith.index_cast %c3_i32 : i32 to index
    %c0_52 = arith.constant 0 : index
    %c0_53 = arith.constant 0 : index
    %470 = vector.load %arg2[%469, %c0_52, %c0_53] : memref<4x16x1xf32, #tpu.memory_space<vmem>>, vector<1x16x1xf32>
    %471 = vector.shape_cast %470 : vector<1x16x1xf32> to vector<16x1xf32>
    %472 = vector.broadcast %471 : vector<16x1xf32> to vector<16x16xf32>
    %473 = vector.broadcast %468 : vector<1x16xf32> to vector<16x16xf32>
    %474 = arith.mulf %472, %473 : vector<16x16xf32>
    %cst_54 = arith.constant 0.000000e+00 : f32
    %475 = vector.broadcast %cst_54 : f32 to vector<16x16xf32>
    %476 = arith.maximumf %474, %475 : vector<16x16xf32>
    %cst_55 = arith.constant dense<0xFF800000> : vector<16xf32>
    %477 = vector.multi_reduction <maximumf>, %476, %cst_55 [1] : vector<16x16xf32> to vector<16xf32>
    %478 = vector.shape_cast %477 : vector<16xf32> to vector<16x1xf32>
    %479 = vector.broadcast %478 : vector<16x1xf32> to vector<16x16xf32>
    %480 = arith.subf %476, %479 : vector<16x16xf32>
    %481 = math.exp %480 : vector<16x16xf32>
    %cst_56 = arith.constant dense<0.000000e+00> : vector<16xf32>
    %482 = vector.multi_reduction <add>, %481, %cst_56 [1] : vector<16x16xf32> to vector<16xf32>
    %483 = vector.shape_cast %482 : vector<16xf32> to vector<16x1xf32>
    %484 = tpu.reciprocal %483 {approx = true} : vector<16x1xf32> -> vector<16x1xf32>
    %485 = arith.index_cast %c3_i32 : i32 to index
    %c0_57 = arith.constant 0 : index
    %c0_58 = arith.constant 0 : index
    %486 = vector.load %arg3[%485, %c0_57, %c0_58] : memref<4x16x128xbf16, #tpu.memory_space<vmem>>, vector<1x16x128xbf16>
    %487 = vector.shape_cast %486 : vector<1x16x128xbf16> to vector<16x128xbf16>
    %488 = arith.extf %487 : vector<16x128xbf16> to vector<16x128xf32>
    %489 = vector.broadcast %484 : vector<16x1xf32> to vector<16x16xf32>
    %490 = arith.mulf %481, %489 : vector<16x16xf32>
    %491 = arith.truncf %490 : vector<16x16xf32> to vector<16x16xbf16>
    %cst_59 = arith.constant dense<0.000000e+00> : vector<16x128xf32>
    %492 = tpu.matmul %491, %487, %cst_59 {dimension_numbers = #tpu.dot_dimension_numbers<[1], [0], [0], [1], [0, 0, 1, 1], [], []>} : vector<16x16xbf16>, vector<16x128xbf16>, vector<16x128xf32> -> vector<16x128xf32>
    %493 = arith.mulf %471, %471 : vector<16x1xf32>
    %494 = arith.subf %493, %478 : vector<16x1xf32>
    %495 = math.exp %494 : vector<16x1xf32>
    %496 = arith.mulf %495, %484 : vector<16x1xf32>
    %cst_60 = arith.constant 2.000000e+00 : f32
    %497 = vector.broadcast %cst_60 : f32 to vector<16x1xf32>
    %498 = arith.mulf %497, %496 : vector<16x1xf32>
    %499 = vector.broadcast %498 : vector<16x1xf32> to vector<16x128xf32>
    %500 = arith.mulf %499, %492 : vector<16x128xf32>
    %501 = arith.subf %500, %488 : vector<16x128xf32>
    %502 = arith.index_cast %c3_i32 : i32 to index
    %c0_61 = arith.constant 0 : index
    %c0_62 = arith.constant 0 : index
    %503 = vector.load %arg4[%502, %c0_61, %c0_62] : memref<4x16x128xf32, #tpu.memory_space<vmem>>, vector<1x16x128xf32>
    %504 = vector.shape_cast %503 : vector<1x16x128xf32> to vector<16x128xf32>
    %505 = arith.index_cast %c3_i32 : i32 to index
    %c0_63 = arith.constant 0 : index
    %c0_64 = arith.constant 0 : index
    %506 = vector.load %arg5[%505, %c0_63, %c0_64] : memref<4x16x8xf32, #tpu.memory_space<vmem>>, vector<1x16x8xf32>
    %507 = vector.shape_cast %506 : vector<1x16x8xf32> to vector<16x8xf32>
    %508 = vector.extract_strided_slice %504 {offsets = [0, 0], sizes = [16, 8], strides = [1, 1]} : vector<16x128xf32> to vector<16x8xf32>
    %509 = vector.extract_strided_slice %488 {offsets = [0, 0], sizes = [16, 1], strides = [1, 1]} : vector<16x128xf32> to vector<16x1xf32>
    %510 = vector.broadcast %509 : vector<16x1xf32> to vector<16x8xf32>
    %511 = arith.mulf %510, %508 : vector<16x8xf32>
    %512 = arith.addf %507, %511 : vector<16x8xf32>
    %513 = vector.extract_strided_slice %488 {offsets = [0, 4], sizes = [16, 1], strides = [1, 1]} : vector<16x128xf32> to vector<16x1xf32>
    %514 = vector.broadcast %513 : vector<16x1xf32> to vector<16x8xf32>
    %515 = arith.mulf %514, %508 : vector<16x8xf32>
    %516 = arith.addf %507, %515 : vector<16x8xf32>
    %517 = vector.extract_strided_slice %504 {offsets = [0, 8], sizes = [16, 8], strides = [1, 1]} : vector<16x128xf32> to vector<16x8xf32>
    %518 = vector.extract_strided_slice %488 {offsets = [0, 1], sizes = [16, 1], strides = [1, 1]} : vector<16x128xf32> to vector<16x1xf32>
    %519 = vector.broadcast %518 : vector<16x1xf32> to vector<16x8xf32>
    %520 = arith.mulf %519, %517 : vector<16x8xf32>
    %521 = arith.addf %512, %520 : vector<16x8xf32>
    %522 = vector.extract_strided_slice %488 {offsets = [0, 5], sizes = [16, 1], strides = [1, 1]} : vector<16x128xf32> to vector<16x1xf32>
    %523 = vector.broadcast %522 : vector<16x1xf32> to vector<16x8xf32>
    %524 = arith.mulf %523, %517 : vector<16x8xf32>
    %525 = arith.addf %516, %524 : vector<16x8xf32>
    %526 = vector.extract_strided_slice %504 {offsets = [0, 16], sizes = [16, 8], strides = [1, 1]} : vector<16x128xf32> to vector<16x8xf32>
    %527 = vector.extract_strided_slice %488 {offsets = [0, 2], sizes = [16, 1], strides = [1, 1]} : vector<16x128xf32> to vector<16x1xf32>
    %528 = vector.broadcast %527 : vector<16x1xf32> to vector<16x8xf32>
    %529 = arith.mulf %528, %526 : vector<16x8xf32>
    %530 = arith.addf %521, %529 : vector<16x8xf32>
    %531 = vector.extract_strided_slice %488 {offsets = [0, 6], sizes = [16, 1], strides = [1, 1]} : vector<16x128xf32> to vector<16x1xf32>
    %532 = vector.broadcast %531 : vector<16x1xf32> to vector<16x8xf32>
    %533 = arith.mulf %532, %526 : vector<16x8xf32>
    %534 = arith.addf %525, %533 : vector<16x8xf32>
    %535 = vector.extract_strided_slice %504 {offsets = [0, 24], sizes = [16, 8], strides = [1, 1]} : vector<16x128xf32> to vector<16x8xf32>
    %536 = vector.extract_strided_slice %488 {offsets = [0, 3], sizes = [16, 1], strides = [1, 1]} : vector<16x128xf32> to vector<16x1xf32>
    %537 = vector.broadcast %536 : vector<16x1xf32> to vector<16x8xf32>
    %538 = arith.mulf %537, %535 : vector<16x8xf32>
    %539 = arith.addf %530, %538 : vector<16x8xf32>
    %540 = vector.extract_strided_slice %488 {offsets = [0, 7], sizes = [16, 1], strides = [1, 1]} : vector<16x128xf32> to vector<16x1xf32>
    %541 = vector.broadcast %540 : vector<16x1xf32> to vector<16x8xf32>
    %542 = arith.mulf %541, %535 : vector<16x8xf32>
    %543 = arith.addf %534, %542 : vector<16x8xf32>
    %544 = vector.extract_strided_slice %504 {offsets = [0, 32], sizes = [16, 8], strides = [1, 1]} : vector<16x128xf32> to vector<16x8xf32>
    %545 = vector.extract_strided_slice %492 {offsets = [0, 0], sizes = [16, 1], strides = [1, 1]} : vector<16x128xf32> to vector<16x1xf32>
    %546 = vector.broadcast %545 : vector<16x1xf32> to vector<16x8xf32>
    %547 = arith.mulf %546, %544 : vector<16x8xf32>
    %548 = arith.addf %539, %547 : vector<16x8xf32>
    %549 = vector.extract_strided_slice %492 {offsets = [0, 4], sizes = [16, 1], strides = [1, 1]} : vector<16x128xf32> to vector<16x1xf32>
    %550 = vector.broadcast %549 : vector<16x1xf32> to vector<16x8xf32>
    %551 = arith.mulf %550, %544 : vector<16x8xf32>
    %552 = arith.addf %543, %551 : vector<16x8xf32>
    %553 = vector.extract_strided_slice %504 {offsets = [0, 40], sizes = [16, 8], strides = [1, 1]} : vector<16x128xf32> to vector<16x8xf32>
    %554 = vector.extract_strided_slice %492 {offsets = [0, 1], sizes = [16, 1], strides = [1, 1]} : vector<16x128xf32> to vector<16x1xf32>
    %555 = vector.broadcast %554 : vector<16x1xf32> to vector<16x8xf32>
    %556 = arith.mulf %555, %553 : vector<16x8xf32>
    %557 = arith.addf %548, %556 : vector<16x8xf32>
    %558 = vector.extract_strided_slice %492 {offsets = [0, 5], sizes = [16, 1], strides = [1, 1]} : vector<16x128xf32> to vector<16x1xf32>
    %559 = vector.broadcast %558 : vector<16x1xf32> to vector<16x8xf32>
    %560 = arith.mulf %559, %553 : vector<16x8xf32>
    %561 = arith.addf %552, %560 : vector<16x8xf32>
    %562 = vector.extract_strided_slice %504 {offsets = [0, 48], sizes = [16, 8], strides = [1, 1]} : vector<16x128xf32> to vector<16x8xf32>
    %563 = vector.extract_strided_slice %492 {offsets = [0, 2], sizes = [16, 1], strides = [1, 1]} : vector<16x128xf32> to vector<16x1xf32>
    %564 = vector.broadcast %563 : vector<16x1xf32> to vector<16x8xf32>
    %565 = arith.mulf %564, %562 : vector<16x8xf32>
    %566 = arith.addf %557, %565 : vector<16x8xf32>
    %567 = vector.extract_strided_slice %492 {offsets = [0, 6], sizes = [16, 1], strides = [1, 1]} : vector<16x128xf32> to vector<16x1xf32>
    %568 = vector.broadcast %567 : vector<16x1xf32> to vector<16x8xf32>
    %569 = arith.mulf %568, %562 : vector<16x8xf32>
    %570 = arith.addf %561, %569 : vector<16x8xf32>
    %571 = vector.extract_strided_slice %504 {offsets = [0, 56], sizes = [16, 8], strides = [1, 1]} : vector<16x128xf32> to vector<16x8xf32>
    %572 = vector.extract_strided_slice %492 {offsets = [0, 3], sizes = [16, 1], strides = [1, 1]} : vector<16x128xf32> to vector<16x1xf32>
    %573 = vector.broadcast %572 : vector<16x1xf32> to vector<16x8xf32>
    %574 = arith.mulf %573, %571 : vector<16x8xf32>
    %575 = arith.addf %566, %574 : vector<16x8xf32>
    %576 = vector.extract_strided_slice %492 {offsets = [0, 7], sizes = [16, 1], strides = [1, 1]} : vector<16x128xf32> to vector<16x1xf32>
    %577 = vector.broadcast %576 : vector<16x1xf32> to vector<16x8xf32>
    %578 = arith.mulf %577, %571 : vector<16x8xf32>
    %579 = arith.addf %570, %578 : vector<16x8xf32>
    %580 = vector.extract_strided_slice %504 {offsets = [0, 64], sizes = [16, 8], strides = [1, 1]} : vector<16x128xf32> to vector<16x8xf32>
    %581 = vector.extract_strided_slice %501 {offsets = [0, 0], sizes = [16, 1], strides = [1, 1]} : vector<16x128xf32> to vector<16x1xf32>
    %582 = vector.broadcast %581 : vector<16x1xf32> to vector<16x8xf32>
    %583 = arith.mulf %582, %580 : vector<16x8xf32>
    %584 = arith.addf %575, %583 : vector<16x8xf32>
    %585 = vector.extract_strided_slice %501 {offsets = [0, 4], sizes = [16, 1], strides = [1, 1]} : vector<16x128xf32> to vector<16x1xf32>
    %586 = vector.broadcast %585 : vector<16x1xf32> to vector<16x8xf32>
    %587 = arith.mulf %586, %580 : vector<16x8xf32>
    %588 = arith.addf %579, %587 : vector<16x8xf32>
    %589 = vector.extract_strided_slice %504 {offsets = [0, 72], sizes = [16, 8], strides = [1, 1]} : vector<16x128xf32> to vector<16x8xf32>
    %590 = vector.extract_strided_slice %501 {offsets = [0, 1], sizes = [16, 1], strides = [1, 1]} : vector<16x128xf32> to vector<16x1xf32>
    %591 = vector.broadcast %590 : vector<16x1xf32> to vector<16x8xf32>
    %592 = arith.mulf %591, %589 : vector<16x8xf32>
    %593 = arith.addf %584, %592 : vector<16x8xf32>
    %594 = vector.extract_strided_slice %501 {offsets = [0, 5], sizes = [16, 1], strides = [1, 1]} : vector<16x128xf32> to vector<16x1xf32>
    %595 = vector.broadcast %594 : vector<16x1xf32> to vector<16x8xf32>
    %596 = arith.mulf %595, %589 : vector<16x8xf32>
    %597 = arith.addf %588, %596 : vector<16x8xf32>
    %598 = vector.extract_strided_slice %504 {offsets = [0, 80], sizes = [16, 8], strides = [1, 1]} : vector<16x128xf32> to vector<16x8xf32>
    %599 = vector.extract_strided_slice %501 {offsets = [0, 2], sizes = [16, 1], strides = [1, 1]} : vector<16x128xf32> to vector<16x1xf32>
    %600 = vector.broadcast %599 : vector<16x1xf32> to vector<16x8xf32>
    %601 = arith.mulf %600, %598 : vector<16x8xf32>
    %602 = arith.addf %593, %601 : vector<16x8xf32>
    %603 = vector.extract_strided_slice %501 {offsets = [0, 6], sizes = [16, 1], strides = [1, 1]} : vector<16x128xf32> to vector<16x1xf32>
    %604 = vector.broadcast %603 : vector<16x1xf32> to vector<16x8xf32>
    %605 = arith.mulf %604, %598 : vector<16x8xf32>
    %606 = arith.addf %597, %605 : vector<16x8xf32>
    %607 = vector.extract_strided_slice %504 {offsets = [0, 88], sizes = [16, 8], strides = [1, 1]} : vector<16x128xf32> to vector<16x8xf32>
    %608 = vector.extract_strided_slice %501 {offsets = [0, 3], sizes = [16, 1], strides = [1, 1]} : vector<16x128xf32> to vector<16x1xf32>
    %609 = vector.broadcast %608 : vector<16x1xf32> to vector<16x8xf32>
    %610 = arith.mulf %609, %607 : vector<16x8xf32>
    %611 = arith.addf %602, %610 : vector<16x8xf32>
    %612 = vector.extract_strided_slice %501 {offsets = [0, 7], sizes = [16, 1], strides = [1, 1]} : vector<16x128xf32> to vector<16x1xf32>
    %613 = vector.broadcast %612 : vector<16x1xf32> to vector<16x8xf32>
    %614 = arith.mulf %613, %607 : vector<16x8xf32>
    %615 = arith.addf %606, %614 : vector<16x8xf32>
    %616 = tpu.concatenate %611, %615, %0 in 1 : vector<16x8xf32>, vector<16x8xf32>, vector<16x112xf32> -> vector<16x128xf32>
    %617 = arith.index_cast %c3_i32 : i32 to index
    %c0_65 = arith.constant 0 : index
    %c0_66 = arith.constant 0 : index
    %618 = vector.load %arg6[%617, %c0_65, %c0_66] : memref<4x16x128xf32, #tpu.memory_space<vmem>>, vector<1x16x128xf32>
    %619 = vector.shape_cast %618 : vector<1x16x128xf32> to vector<16x128xf32>
    %620 = vector.shape_cast %616 : vector<16x128xf32> to vector<1x16x128xf32>
    tpu.vector_store %arg6[%617, %c0_65, %c0_66], %620 {strides = array<i32>} : memref<4x16x128xf32, #tpu.memory_space<vmem>>, vector<1x16x128xf32>,
    %c4_i32 = arith.constant 4 : i32
    return
  }
  func.func @transform_0(%arg0: i32) -> (i32, i32, i32) {
    %c0_i32 = arith.constant 0 : i32
    %c0_i32_0 = arith.constant 0 : i32
    %c0_i32_1 = arith.constant 0 : i32
    return %arg0, %c0_i32, %c0_i32_0 : i32, i32, i32
  }
  func.func @transform_1(%arg0: i32) -> (i32, i32, i32) {
    %c0_i32 = arith.constant 0 : i32
    %c0_i32_0 = arith.constant 0 : i32
    %c0_i32_1 = arith.constant 0 : i32
    return %arg0, %c0_i32, %c0_i32_0 : i32, i32, i32
  }
  func.func @transform_2(%arg0: i32) -> (i32, i32, i32) {
    %c0_i32 = arith.constant 0 : i32
    %c0_i32_0 = arith.constant 0 : i32
    %c0_i32_1 = arith.constant 0 : i32
    return %arg0, %c0_i32, %c0_i32_0 : i32, i32, i32
  }
  func.func @transform_3(%arg0: i32) -> (i32, i32, i32) {
    %c0_i32 = arith.constant 0 : i32
    %c0_i32_0 = arith.constant 0 : i32
    %c0_i32_1 = arith.constant 0 : i32
    return %arg0, %c0_i32, %c0_i32_0 : i32, i32, i32
  }
  func.func @transform_4(%arg0: i32) -> (i32, i32, i32) {
    %c0_i32 = arith.constant 0 : i32
    %c0_i32_0 = arith.constant 0 : i32
    %c0_i32_1 = arith.constant 0 : i32
    return %arg0, %c0_i32, %c0_i32_0 : i32, i32, i32
  }
  func.func @transform_5(%arg0: i32) -> (i32, i32, i32) {
    %c0_i32 = arith.constant 0 : i32
    %c0_i32_0 = arith.constant 0 : i32
    %c0_i32_1 = arith.constant 0 : i32
    return %arg0, %c0_i32, %c0_i32_0 : i32, i32, i32
  }
}

</mosaic_0001>

<llo_original>
// kernel: tpu_custom_call.1
$region0: #{tpu_custom_call.1}
  #allocation0 [shape = 'u32[]', space=smem, size = 0x4, offset = 0x4, fixed_abs, tag = 'smem constant byte address 0x4 - core index']
  #allocation1 [shape = 'u32[72,128]{1,0:T(1,128)}', space=vmem, size = 0x9000, scoped, tag = 'internal scratch']
  %s0 = inlined_call_operand.vmem [shape: f32[8,1,16], index: 0, kind: input, shape index: {}]
  %s1 = inlined_call_operand.vmem [shape: f32[8,16,1], index: 1, kind: input, shape index: {}]
  %s2 = inlined_call_operand.vmem [shape: bf16[8,16,128], index: 2, kind: input, shape index: {}]
  %s3 = inlined_call_operand.vmem [shape: f32[8,16,128], index: 3, kind: input, shape index: {}]
  %s4 = inlined_call_operand.vmem [shape: f32[8,16,8], index: 4, kind: input, shape index: {}]
  %s5 = inlined_call_operand.hbm [shape: f32[8,16,128], index: 5, kind: output, shape index: {}]
  %s6 = sld [smem:[#allocation0]]
  $region53: #{tpu_custom_call.1} parent=0
    _
  %s8 = ssub.s32 1, %s6
  %s9 = scalar_select 0, %s8, %s6
  $region1: #{tpu_custom_call.1} parent=0
    #allocation2 [shape = 'u8[65536]{0}', space=vmem, size = 0x10000, scoped, tag = 'output window, operand 0']
    #allocation3 [shape = 's32[2]{0}', space=sflag, size = 0x8, scoped, tag = 'scoped memory for tpu_custom_call.1']
    %10 = vsyncpa [#allocation3], 0
    %s11 = scalar_lea.sflag [#allocation3], 1
    %12 = vsyncpa %s11, 0
    loop: start=0, step=1, limit=4
    $region2: #{tpu_custom_call.1} parent=1 // loop_pre_header
      _
    $region3: #{tpu_custom_call.1} parent=1 // loop_header
      %s14 = sphi 0, %s18
      %p15 = scmp.ge.s32.totalorder %s14, 4
      %s24 = sphi 0, %s26
      %s27 = sphi 0, %s24
      %s28 = sphi 0, %s27
      %s44 = sphi 0, %s28
      %s50 = sphi 0, %s52
      %s53 = sphi 0, %s50
      %s54 = sphi 0, %s53
      %s70 = sphi 0, %s54
      %s76 = sphi 0, %s78
      %s79 = sphi 0, %s76
      %s80 = sphi 0, %s79
      %s96 = sphi 0, %s80
      %s102 = sphi 0, %s104
      %s105 = sphi 0, %s102
      %s106 = sphi 0, %s105
      %s122 = sphi 0, %s106
      %s128 = sphi 0, %s130
      %s131 = sphi 0, %s128
      %s132 = sphi 0, %s131
      %s148 = sphi 0, %s132
      %s154 = sphi 0, %s156
      %s157 = sphi 0, %s154
      %s158 = sphi 0, %s157
      %s174 = sphi 0, %s158
    $region4: #{tpu_custom_call.1} parent=1 // loop_header_branch
      %17 = sbr.rel (%p15) target = $region8
    $region5: #{tpu_custom_call.1} parent=1 // loop_body
      %s19 = ssub.s32 %s14, 1
      %s20 = ssub.s32 %s14, 2
      %s21 = sadd.s32 %s14, 1
      %s22 = ssub.s32 %s14, %s21
      %p23 = scmp.eq.s32.totalorder %s22, 0
      %s25 = sadd.s32 %s24, 1
      %s26 = scalar_select %p23, %s24, %s25
      %p29 = pneg %p23
      %p30 = scmp.eq.s32.totalorder %s14, 1
      %p31 = por %p29, %p30
      %p32 = scmp.ne.s32.totalorder %s24, %s27
      %p33 = scmp.eq.s32.totalorder %s14, 0
      %p34 = por %p32, %p33
      %p35 = scmp.ne.s32.totalorder %s24, %s27
      %p36 = scmp.eq.s32.totalorder %s19, 1
      %p37 = por %p35, %p36
      %p38 = scmp.ne.s32.totalorder %s27, %s28
      %p39 = scmp.eq.s32.totalorder %s19, 0
      %p40 = por %p38, %p39
      %p41 = scmp.ne.s32.totalorder %s27, %s28
      %p42 = scmp.eq.s32.totalorder %s20, 1
      %p43 = por %p41, %p42
      %p45 = scmp.ne.s32.totalorder %s28, %s44
      %p46 = scmp.eq.s32.totalorder %s20, 0
      %p47 = por %p45, %p46
      %s48 = ssub.s32 %s14, %s21
      %p49 = scmp.eq.s32.totalorder %s48, 0
      %s51 = sadd.s32 %s50, 1
      %s52 = scalar_select %p49, %s50, %s51
      %p55 = pneg %p49
      %p56 = scmp.eq.s32.totalorder %s14, 1
      %p57 = por %p55, %p56
      %p58 = scmp.ne.s32.totalorder %s50, %s53
      %p59 = scmp.eq.s32.totalorder %s14, 0
      %p60 = por %p58, %p59
      %p61 = scmp.ne.s32.totalorder %s50, %s53
      %p62 = scmp.eq.s32.totalorder %s19, 1
      %p63 = por %p61, %p62
      %p64 = scmp.ne.s32.totalorder %s53, %s54
      %p65 = scmp.eq.s32.totalorder %s19, 0
      %p66 = por %p64, %p65
      %p67 = scmp.ne.s32.totalorder %s53, %s54
      %p68 = scmp.eq.s32.totalorder %s20, 1
      %p69 = por %p67, %p68
      %p71 = scmp.ne.s32.totalorder %s54, %s70
      %p72 = scmp.eq.s32.totalorder %s20, 0
      %p73 = por %p71, %p72
      %s74 = ssub.s32 %s14, %s21
      %p75 = scmp.eq.s32.totalorder %s74, 0
      %s77 = sadd.s32 %s76, 1
      %s78 = scalar_select %p75, %s76, %s77
      %p81 = pneg %p75
      %p82 = scmp.eq.s32.totalorder %s14, 1
      %p83 = por %p81, %p82
      %p84 = scmp.ne.s32.totalorder %s76, %s79
      %p85 = scmp.eq.s32.totalorder %s14, 0
      %p86 = por %p84, %p85
      %p87 = scmp.ne.s32.totalorder %s76, %s79
      %p88 = scmp.eq.s32.totalorder %s19, 1
      %p89 = por %p87, %p88
      %p90 = scmp.ne.s32.totalorder %s79, %s80
      %p91 = scmp.eq.s32.totalorder %s19, 0
      %p92 = por %p90, %p91
      %p93 = scmp.ne.s32.totalorder %s79, %s80
      %p94 = scmp.eq.s32.totalorder %s20, 1
      %p95 = por %p93, %p94
      %p97 = scmp.ne.s32.totalorder %s80, %s96
      %p98 = scmp.eq.s32.totalorder %s20, 0
      %p99 = por %p97, %p98
      %s100 = ssub.s32 %s14, %s21
      %p101 = scmp.eq.s32.totalorder %s100, 0
      %s103 = sadd.s32 %s102, 1
      %s104 = scalar_select %p101, %s102, %s103
      %p107 = pneg %p101
      %p108 = scmp.eq.s32.totalorder %s14, 1
      %p109 = por %p107, %p108
      %p110 = scmp.ne.s32.totalorder %s102, %s105
      %p111 = scmp.eq.s32.totalorder %s14, 0
      %p112 = por %p110, %p111
      %p113 = scmp.ne.s32.totalorder %s102, %s105
      %p114 = scmp.eq.s32.totalorder %s19, 1
      %p115 = por %p113, %p114
      %p116 = scmp.ne.s32.totalorder %s105, %s106
      %p117 = scmp.eq.s32.totalorder %s19, 0
      %p118 = por %p116, %p117
      %p119 = scmp.ne.s32.totalorder %s105, %s106
      %p120 = scmp.eq.s32.totalorder %s20, 1
      %p121 = por %p119, %p120
      %p123 = scmp.ne.s32.totalorder %s106, %s122
      %p124 = scmp.eq.s32.totalorder %s20, 0
      %p125 = por %p123, %p124
      %s126 = ssub.s32 %s14, %s21
      %p127 = scmp.eq.s32.totalorder %s126, 0
      %s129 = sadd.s32 %s128, 1
      %s130 = scalar_select %p127, %s128, %s129
      %p133 = pneg %p127
      %p134 = scmp.eq.s32.totalorder %s14, 1
      %p135 = por %p133, %p134
      %p136 = scmp.ne.s32.totalorder %s128, %s131
      %p137 = scmp.eq.s32.totalorder %s14, 0
      %p138 = por %p136, %p137
      %p139 = scmp.ne.s32.totalorder %s128, %s131
      %p140 = scmp.eq.s32.totalorder %s19, 1
      %p141 = por %p139, %p140
      %p142 = scmp.ne.s32.totalorder %s131, %s132
      %p143 = scmp.eq.s32.totalorder %s19, 0
      %p144 = por %p142, %p143
      %p145 = scmp.ne.s32.totalorder %s131, %s132
      %p146 = scmp.eq.s32.totalorder %s20, 1
      %p147 = por %p145, %p146
      %p149 = scmp.ne.s32.totalorder %s132, %s148
      %p150 = scmp.eq.s32.totalorder %s20, 0
      %p151 = por %p149, %p150
      %s152 = ssub.s32 %s14, %s21
      %p153 = scmp.eq.s32.totalorder %s152, 0
      %s155 = sadd.s32 %s154, 1
      %s156 = scalar_select %p153, %s154, %s155
      %p159 = pneg %p153
      %p160 = scmp.eq.s32.totalorder %s14, 1
      %p161 = por %p159, %p160
      %p162 = scmp.ne.s32.totalorder %s154, %s157
      %p163 = scmp.eq.s32.totalorder %s14, 0
      %p164 = por %p162, %p163
      %p165 = scmp.ne.s32.totalorder %s154, %s157
      %p166 = scmp.eq.s32.totalorder %s19, 1
      %p167 = por %p165, %p166
      %p168 = scmp.ne.s32.totalorder %s157, %s158
      %p169 = scmp.eq.s32.totalorder %s19, 0
      %p170 = por %p168, %p169
      %p171 = scmp.ne.s32.totalorder %s157, %s158
      %p172 = scmp.eq.s32.totalorder %s20, 1
      %p173 = por %p171, %p172
      %p175 = scmp.ne.s32.totalorder %s158, %s174
      %p176 = scmp.eq.s32.totalorder %s20, 0
      %p177 = por %p175, %p176
      %p178 = scmp.le.s32.totalorder 1, %s14
      %p179 = scmp.lt.s32.totalorder %s14, 3
      %p180 = pnand %p178, %p179
      %p181 = pneg %p180
      // Predicated region
      $region9: #{tpu_custom_call.1} parent=5 // pred_check
        _
      $region10: #{tpu_custom_call.1} parent=5 // pred_check_branch
        %183 = sbr.rel (%p180) target = $region12
      $region11: #{tpu_custom_call.1} parent=5 // pred_region
        %s184 = ssub.s32 %s14, 1
      $region12: #{tpu_custom_call.1} parent=5 // pred_fallthru
        _
      %p185 = scmp.lt.s32.totalorder %s14, 2
      // Predicated region
      $region13: #{tpu_custom_call.1} parent=5 // pred_check
        %p186 = pneg %p185
      $region14: #{tpu_custom_call.1} parent=5 // pred_check_branch
        %188 = sbr.rel (%p186) target = $region16
      $region15: #{tpu_custom_call.1} parent=5 // pred_region
        // Predicated region
        $region17: #{tpu_custom_call.1} parent=15 // pred_check
          %p189 = pneg %p34
        $region18: #{tpu_custom_call.1} parent=15 // pred_check_branch
          %191 = sbr.rel (%p189) target = $region20
        $region19: #{tpu_custom_call.1} parent=15 // pred_region
          %s192 = smul.u32 4, %s14
          %p193 = scmp.lt.s32.totalorder %s192, 7
          %s194 = scalar_select %p193, %s192, 7
          %s195 = scalar_lea.vmem %s0, %s194
          %s196 = smul.u32 4, %s14
        $region20: #{tpu_custom_call.1} parent=15 // pred_fallthru
          _
        // Predicated region
        $region21: #{tpu_custom_call.1} parent=15 // pred_check
          %p197 = pneg %p60
        $region22: #{tpu_custom_call.1} parent=15 // pred_check_branch
          %199 = sbr.rel (%p197) target = $region24
        $region23: #{tpu_custom_call.1} parent=15 // pred_region
          %s200 = smul.u32 4, %s14
          %p201 = scmp.lt.s32.totalorder %s200, 7
          %s202 = scalar_select %p201, %s200, 7
          %s203 = smul.addr %s202, 2
          %s204 = smul.addr %s203, 8
          %s205 = scalar_lea.vmem %s1, %s204
          %s206 = smul.u32 4, %s14
        $region24: #{tpu_custom_call.1} parent=15 // pred_fallthru
          _
        // Predicated region
        $region25: #{tpu_custom_call.1} parent=15 // pred_check
          %p207 = pneg %p86
        $region26: #{tpu_custom_call.1} parent=15 // pred_check_branch
          %209 = sbr.rel (%p207) target = $region28
        $region27: #{tpu_custom_call.1} parent=15 // pred_region
          %s210 = smul.u32 4, %s14
          %p211 = scmp.lt.s32.totalorder %s210, 7
          %s212 = scalar_select %p211, %s210, 7
          %s213 = smul.addr %s212, 2
          %s214 = smul.addr %s213, 4
          %s215 = scalar_lea.vmem %s2, %s214
          %s216 = smul.u32 4, %s14
        $region28: #{tpu_custom_call.1} parent=15 // pred_fallthru
          _
        // Predicated region
        $region29: #{tpu_custom_call.1} parent=15 // pred_check
          %p217 = pneg %p112
        $region30: #{tpu_custom_call.1} parent=15 // pred_check_branch
          %219 = sbr.rel (%p217) target = $region32
        $region31: #{tpu_custom_call.1} parent=15 // pred_region
          %s220 = smul.u32 4, %s14
          %p221 = scmp.lt.s32.totalorder %s220, 7
          %s222 = scalar_select %p221, %s220, 7
          %s223 = smul.addr %s222, 2
          %s224 = smul.addr %s223, 8
          %s225 = scalar_lea.vmem %s3, %s224
          %s226 = smul.u32 4, %s14
        $region32: #{tpu_custom_call.1} parent=15 // pred_fallthru
          _
        // Predicated region
        $region33: #{tpu_custom_call.1} parent=15 // pred_check
          %p227 = pneg %p138
        $region34: #{tpu_custom_call.1} parent=15 // pred_check_branch
          %229 = sbr.rel (%p227) target = $region36
        $region35: #{tpu_custom_call.1} parent=15 // pred_region
          %s230 = smul.u32 4, %s14
          %p231 = scmp.lt.s32.totalorder %s230, 7
          %s232 = scalar_select %p231, %s230, 7
          %s233 = smul.addr %s232, 2
          %s234 = smul.addr %s233, 8
          %s235 = scalar_lea.vmem %s4, %s234
          %s236 = smul.u32 4, %s14
        $region36: #{tpu_custom_call.1} parent=15 // pred_fallthru
          _
      $region16: #{tpu_custom_call.1} parent=5 // pred_fallthru
        _
      %p237 = scmp.le.s32.totalorder 1, %s14
      %p238 = scmp.lt.s32.totalorder %s14, 3
      %p239 = pnand %p237, %p238
      %p240 = pneg %p239
      // Predicated region
      $region37: #{tpu_custom_call.1} parent=5 // pred_check
        _
      $region38: #{tpu_custom_call.1} parent=5 // pred_check_branch
        %242 = sbr.rel (%p239) target = $region40
      $region39: #{tpu_custom_call.1} parent=5 // pred_region
        %s243 = ssub.s32 %s14, 1
        %s244 = smul.u32 4, %s19
        %p245 = scmp.lt.s32.totalorder %s244, 7
        %s246 = scalar_select %p245, %s244, 7
        %s247 = scalar_lea.vmem %s0, %s246
        %p248 = pneg %p40
        %p249 = pneg %p37
        %s250 = smul.u32 4, %s19
        %p251 = scmp.lt.s32.totalorder %s250, 7
        %s252 = scalar_select %p251, %s250, 7
        %s253 = smul.addr %s252, 2
        %s254 = smul.addr %s253, 8
        %s255 = scalar_lea.vmem %s1, %s254
        %p256 = pneg %p66
        %p257 = pneg %p63
        %s258 = smul.u32 4, %s19
        %p259 = scmp.lt.s32.totalorder %s258, 7
        %s260 = scalar_select %p259, %s258, 7
        %s261 = smul.addr %s260, 2
        %s262 = smul.addr %s261, 4
        %s263 = scalar_lea.vmem %s2, %s262
        %p264 = pneg %p92
        %p265 = pneg %p89
        %s266 = smul.u32 4, %s19
        %p267 = scmp.lt.s32.totalorder %s266, 7
        %s268 = scalar_select %p267, %s266, 7
        %s269 = smul.addr %s268, 2
        %s270 = smul.addr %s269, 8
        %s271 = scalar_lea.vmem %s3, %s270
        %p272 = pneg %p118
        %p273 = pneg %p115
        %s274 = smul.u32 4, %s19
        %p275 = scmp.lt.s32.totalorder %s274, 7
        %s276 = scalar_select %p275, %s274, 7
        %s277 = smul.addr %s276, 2
        %s278 = smul.addr %s277, 8
        %s279 = scalar_lea.vmem %s4, %s278
        %p280 = pneg %p144
        %p281 = pneg %p141
        %p282 = pneg %p170
        %p283 = pneg %p167
        %s284 = sand.u32 %s157, 1
        %s285 = scalar_lea.sflag [#allocation3], %s284
        %s286 = sand.u32 %s157, 1
        %s287 = smul.addr %s286, 64
        %s288 = scalar_lea.vmem [#allocation2], %s287
        %s289 = smul.u32 4, %s19
        %p290 = scmp.lt.s32.totalorder %s289, 7
        %s291 = scalar_select %p290, %s289, 7
        %s292 = scalar_lea.vmem %s0, %s291
        %s293 = smul.u32 4, %s19
        %s294 = smul.u32 4, %s19
        %p295 = scmp.lt.s32.totalorder %s294, 7
        %s296 = scalar_select %p295, %s294, 7
        %s297 = smul.addr %s296, 2
        %s298 = smul.addr %s297, 8
        %s299 = scalar_lea.vmem %s1, %s298
        %s300 = smul.u32 4, %s19
        %s301 = smul.u32 4, %s19
        %p302 = scmp.lt.s32.totalorder %s301, 7
        %s303 = scalar_select %p302, %s301, 7
        %s304 = smul.addr %s303, 2
        %s305 = smul.addr %s304, 4
        %s306 = scalar_lea.vmem %s2, %s305
        %s307 = smul.u32 4, %s19
        %s308 = smul.u32 4, %s19
        %p309 = scmp.lt.s32.totalorder %s308, 7
        %s310 = scalar_select %p309, %s308, 7
        %s311 = smul.addr %s310, 2
        %s312 = smul.addr %s311, 8
        %s313 = scalar_lea.vmem %s3, %s312
        %s314 = smul.u32 4, %s19
        %s315 = smul.u32 4, %s19
        %p316 = scmp.lt.s32.totalorder %s315, 7
        %s317 = scalar_select %p316, %s315, 7
        %s318 = smul.addr %s317, 2
        %s319 = smul.addr %s318, 8
        %s320 = scalar_lea.vmem %s4, %s319
        %s321 = smul.u32 4, %s19
        %s322 = smul.u32 4, %s19
        %v324 = vld [vmem:[%s292] sm:$0x1]
        %v325 = vld [vmem:[%s299] sm:$0xff]
        %v326 = vld [vmem:[%s299 + $0x8] sm:$0xff]
        %328 = vset.pattern.permute.xlu0 0
        %329 = vperm.xlu0 %328, %v325
        %v330 = vpop.permute.xlu0 %329
        %333 = vset.pattern.permute.xlu0 0
        %334 = vperm.xlu0 %333, %v326
        %v335 = vpop.permute.xlu0 %334
        %v338 = vperm.slane %v324, 0
        %v340 = vmul.f32 %v330, %v338
        %v341 = vmul.f32 %v335, %v338
        %v342 = vmax.f32 %v340, 0.0
        %v343 = vmax.f32 %v341, 0.0
        %vm344 = vcmask 130048
        %v345 = vsel %vm344, %v342, -inf
        %346 = vmax.xlane.f32.xlu0 %v345
        %v347 = vpop.xlane.xlu0 %346
        %v348 = vsel %vm344, %v343, -inf
        %349 = vmax.xlane.f32.xlu0 %v348
        %v350 = vpop.xlane.xlu0 %349
        %v351 = vsub.f32 %v342, %v347
        %v352 = vsub.f32 %v343, %v350
        %v353 = vmul.f32 %v351, 1.442695
        %v354 = vpow.pop %v353
        %v355 = vmul.f32 %v352, 1.442695
        %v356 = vpow.pop %v355
        %v357 = vsel %vm344, %v354, 0.0
        %358 = vadd.xlane.f32.xlu0 %v357
        %v359 = vpop.xlane.xlu0 %358
        %v360 = vsel %vm344, %v356, 0.0
        %361 = vadd.xlane.f32.xlu0 %v360
        %v362 = vpop.xlane.xlu0 %361
        %v363 = vrcp.pop %v359
        %v364 = vrcp.pop %v362
        %v365 = vld [vmem:[%s306] sm:$0xf]
        %v366 = vld [vmem:[%s306 + $0x4] sm:$0xf]
        %v367 = vunpack.c.l.bf16 %v365
        %v368 = vunpack.c.l.bf16 %v366
        %v369 = vmul.f32 %v354, %v363
        %v370 = vmul.f32 %v356, %v364
        %v371 = vpack.c.bf16 %v370, %v369
        %v374 = vunpack.c.l.b16 %v365
        %v375 = vunpack.c.l.b16 %v366
        %v376 = vpack.c.b16 %v375, %v374
        %v379 = vsel %vm344, %v371, 0
        %381 = vmatpush.bf16.msra.mxu0 0
        %382 = vmatpush.bf16.msra.mxu0 0
        %383 = vmatpush.bf16.msra.mxu0 0
        %384 = vmatpush.bf16.msra.mxu0 0
        %385 = vmatpush.bf16.msra.mxu0 0
        %386 = vmatpush.bf16.msra.mxu0 0
        %387 = vmatpush.bf16.msra.mxu0 0
        %388 = vmatpush.bf16.msra.mxu0 %v376
        %389 = vmatmul.bf16.gmra.mxu0 %v379
        %v390 = vpop.f32.mrf.mxu0
        %v391 = vadd.f32 0.0, %v390
        %v392 = vpop.f32.mrf.mxu0
        %v393 = vadd.f32 0.0, %v392
        %394 = vdwg.mxu0
        %v395 = vmul.f32 %v325, %v325
        %v396 = vmul.f32 %v326, %v326
        %v397 = vsub.f32 %v395, %v347
        %v398 = vsub.f32 %v396, %v350
        %v399 = vmul.f32 %v397, 1.442695
        %v400 = vpow.pop %v399
        %v401 = vmul.f32 %v398, 1.442695
        %v402 = vpow.pop %v401
        %v403 = vmul.f32 %v400, %v363
        %v404 = vmul.f32 %v402, %v364
        %v405 = vmul.f32 %v403, 2.0
        %v406 = vmul.f32 %v404, 2.0
        %408 = vset.pattern.permute.xlu0 0
        %409 = vperm.xlu0 %408, %v405
        %v410 = vpop.permute.xlu0 %409
        %413 = vset.pattern.permute.xlu0 0
        %414 = vperm.xlu0 %413, %v406
        %v415 = vpop.permute.xlu0 %414
        %v417 = vmul.f32 %v410, %v391
        %v418 = vmul.f32 %v415, %v393
        %v419 = vsub.f32 %v417, %v367
        %v420 = vsub.f32 %v418, %v368
        %v421 = vld [vmem:[%s313] sm:$0xff]
        %v422 = vld [vmem:[%s313 + $0x8] sm:$0xff]
        %v423 = vld [vmem:[%s320] sm:$0xff]
        %v424 = vld [vmem:[%s320 + $0x8] sm:$0xff]
        %426 = vset.pattern.permute.xlu0 0
        %427 = vperm.xlu0 %426, %v367
        %v428 = vpop.permute.xlu0 %427
        %431 = vset.pattern.permute.xlu0 0
        %432 = vperm.xlu0 %431, %v368
        %v433 = vpop.permute.xlu0 %432
        %v435 = vmul.f32 %v428, %v421
        %v436 = vmul.f32 %v433, %v422
        %v437 = vadd.f32 %v423, %v435
        %v438 = vadd.f32 %v424, %v436
        %439 = vset.pattern.permute.xlu0 4
        %440 = vperm.xlu0 %439, %v367
        %v441 = vpop.permute.xlu0 %440
        %443 = vset.pattern.permute.xlu0 4
        %444 = vperm.xlu0 %443, %v368
        %v445 = vpop.permute.xlu0 %444
        %v447 = vmul.f32 %v441, %v421
        %v448 = vmul.f32 %v445, %v422
        %v449 = vadd.f32 %v423, %v447
        %v450 = vadd.f32 %v424, %v448
        %451 = vset.pattern.permute.xlu0 1
        %452 = vperm.xlu0 %451, %v367
        %v453 = vpop.permute.xlu0 %452
        %455 = vset.pattern.permute.xlu0 1
        %456 = vperm.xlu0 %455, %v368
        %v457 = vpop.permute.xlu0 %456
        %v459 = vmul.f32 %v453, %v421
        %v460 = vmul.f32 %v457, %v422
        %463 = vrot.lane.b32.xlu0 %v459, 120
        %v464 = vpop.permute.xlu0 %463
        %465 = vrot.lane.b32.xlu0 %v460, 120
        %v466 = vpop.permute.xlu0 %465
        %v469 = vadd.f32 %v437, %v464
        %v470 = vadd.f32 %v438, %v466
        %471 = vset.pattern.permute.xlu0 5
        %472 = vperm.xlu0 %471, %v367
        %v473 = vpop.permute.xlu0 %472
        %475 = vset.pattern.permute.xlu0 5
        %476 = vperm.xlu0 %475, %v368
        %v477 = vpop.permute.xlu0 %476
        %v479 = vmul.f32 %v473, %v421
        %v480 = vmul.f32 %v477, %v422
        %483 = vrot.lane.b32.xlu0 %v479, 120
        %v484 = vpop.permute.xlu0 %483
        %485 = vrot.lane.b32.xlu0 %v480, 120
        %v486 = vpop.permute.xlu0 %485
        %v489 = vadd.f32 %v449, %v484
        %v490 = vadd.f32 %v450, %v486
        %491 = vset.pattern.permute.xlu0 2
        %492 = vperm.xlu0 %491, %v367
        %v493 = vpop.permute.xlu0 %492
        %495 = vset.pattern.permute.xlu0 2
        %496 = vperm.xlu0 %495, %v368
        %v497 = vpop.permute.xlu0 %496
        %v499 = vmul.f32 %v493, %v421
        %v500 = vmul.f32 %v497, %v422
        %503 = vrot.lane.b32.xlu0 %v499, 112
        %v504 = vpop.permute.xlu0 %503
        %505 = vrot.lane.b32.xlu0 %v500, 112
        %v506 = vpop.permute.xlu0 %505
        %v509 = vadd.f32 %v469, %v504
        %v510 = vadd.f32 %v470, %v506
        %511 = vset.pattern.permute.xlu0 6
        %512 = vperm.xlu0 %511, %v367
        %v513 = vpop.permute.xlu0 %512
        %515 = vset.pattern.permute.xlu0 6
        %516 = vperm.xlu0 %515, %v368
        %v517 = vpop.permute.xlu0 %516
        %v519 = vmul.f32 %v513, %v421
        %v520 = vmul.f32 %v517, %v422
        %523 = vrot.lane.b32.xlu0 %v519, 112
        %v524 = vpop.permute.xlu0 %523
        %525 = vrot.lane.b32.xlu0 %v520, 112
        %v526 = vpop.permute.xlu0 %525
        %v529 = vadd.f32 %v489, %v524
        %v530 = vadd.f32 %v490, %v526
        %531 = vset.pattern.permute.xlu0 3
        %532 = vperm.xlu0 %531, %v367
        %v533 = vpop.permute.xlu0 %532
        %535 = vset.pattern.permute.xlu0 3
        %536 = vperm.xlu0 %535, %v368
        %v537 = vpop.permute.xlu0 %536
        %v539 = vmul.f32 %v533, %v421
        %v540 = vmul.f32 %v537, %v422
        %543 = vrot.lane.b32.xlu0 %v539, 104
        %v544 = vpop.permute.xlu0 %543
        %545 = vrot.lane.b32.xlu0 %v540, 104
        %v546 = vpop.permute.xlu0 %545
        %v549 = vadd.f32 %v509, %v544
        %v550 = vadd.f32 %v510, %v546
        %551 = vset.pattern.permute.xlu0 7
        %552 = vperm.xlu0 %551, %v367
        %v553 = vpop.permute.xlu0 %552
        %555 = vset.pattern.permute.xlu0 7
        %556 = vperm.xlu0 %555, %v368
        %v557 = vpop.permute.xlu0 %556
        %v559 = vmul.f32 %v553, %v421
        %v560 = vmul.f32 %v557, %v422
        %563 = vrot.lane.b32.xlu0 %v559, 104
        %v564 = vpop.permute.xlu0 %563
        %565 = vrot.lane.b32.xlu0 %v560, 104
        %v566 = vpop.permute.xlu0 %565
        %v569 = vadd.f32 %v529, %v564
        %v570 = vadd.f32 %v530, %v566
        %572 = vset.pattern.permute.xlu0 0
        %573 = vperm.xlu0 %572, %v391
        %v574 = vpop.permute.xlu0 %573
        %577 = vset.pattern.permute.xlu0 0
        %578 = vperm.xlu0 %577, %v393
        %v579 = vpop.permute.xlu0 %578
        %v581 = vmul.f32 %v574, %v421
        %v582 = vmul.f32 %v579, %v422
        %585 = vrot.lane.b32.xlu0 %v581, 96
        %v586 = vpop.permute.xlu0 %585
        %587 = vrot.lane.b32.xlu0 %v582, 96
        %v588 = vpop.permute.xlu0 %587
        %v591 = vadd.f32 %v549, %v586
        %v592 = vadd.f32 %v550, %v588
        %593 = vset.pattern.permute.xlu0 4
        %594 = vperm.xlu0 %593, %v391
        %v595 = vpop.permute.xlu0 %594
        %597 = vset.pattern.permute.xlu0 4
        %598 = vperm.xlu0 %597, %v393
        %v599 = vpop.permute.xlu0 %598
        %v601 = vmul.f32 %v595, %v421
        %v602 = vmul.f32 %v599, %v422
        %605 = vrot.lane.b32.xlu0 %v601, 96
        %v606 = vpop.permute.xlu0 %605
        %607 = vrot.lane.b32.xlu0 %v602, 96
        %v608 = vpop.permute.xlu0 %607
        %v611 = vadd.f32 %v569, %v606
        %v612 = vadd.f32 %v570, %v608
        %613 = vset.pattern.permute.xlu0 1
        %614 = vperm.xlu0 %613, %v391
        %v615 = vpop.permute.xlu0 %614
        %617 = vset.pattern.permute.xlu0 1
        %618 = vperm.xlu0 %617, %v393
        %v619 = vpop.permute.xlu0 %618
        %v621 = vmul.f32 %v615, %v421
        %v622 = vmul.f32 %v619, %v422
        %625 = vrot.lane.b32.xlu0 %v621, 88
        %v626 = vpop.permute.xlu0 %625
        %627 = vrot.lane.b32.xlu0 %v622, 88
        %v628 = vpop.permute.xlu0 %627
        %v631 = vadd.f32 %v591, %v626
        %v632 = vadd.f32 %v592, %v628
        %633 = vset.pattern.permute.xlu0 5
        %634 = vperm.xlu0 %633, %v391
        %v635 = vpop.permute.xlu0 %634
        %637 = vset.pattern.permute.xlu0 5
        %638 = vperm.xlu0 %637, %v393
        %v639 = vpop.permute.xlu0 %638
        %v641 = vmul.f32 %v635, %v421
        %v642 = vmul.f32 %v639, %v422
        %645 = vrot.lane.b32.xlu0 %v641, 88
        %v646 = vpop.permute.xlu0 %645
        %647 = vrot.lane.b32.xlu0 %v642, 88
        %v648 = vpop.permute.xlu0 %647
        %v651 = vadd.f32 %v611, %v646
        %v652 = vadd.f32 %v612, %v648
        %653 = vset.pattern.permute.xlu0 2
        %654 = vperm.xlu0 %653, %v391
        %v655 = vpop.permute.xlu0 %654
        %657 = vset.pattern.permute.xlu0 2
        %658 = vperm.xlu0 %657, %v393
        %v659 = vpop.permute.xlu0 %658
        %v661 = vmul.f32 %v655, %v421
        %v662 = vmul.f32 %v659, %v422
        %665 = vrot.lane.b32.xlu0 %v661, 80
        %v666 = vpop.permute.xlu0 %665
        %667 = vrot.lane.b32.xlu0 %v662, 80
        %v668 = vpop.permute.xlu0 %667
        %v671 = vadd.f32 %v631, %v666
        %v672 = vadd.f32 %v632, %v668
        %673 = vset.pattern.permute.xlu0 6
        %674 = vperm.xlu0 %673, %v391
        %v675 = vpop.permute.xlu0 %674
        %677 = vset.pattern.permute.xlu0 6
        %678 = vperm.xlu0 %677, %v393
        %v679 = vpop.permute.xlu0 %678
        %v681 = vmul.f32 %v675, %v421
        %v682 = vmul.f32 %v679, %v422
        %685 = vrot.lane.b32.xlu0 %v681, 80
        %v686 = vpop.permute.xlu0 %685
        %687 = vrot.lane.b32.xlu0 %v682, 80
        %v688 = vpop.permute.xlu0 %687
        %v691 = vadd.f32 %v651, %v686
        %v692 = vadd.f32 %v652, %v688
        %693 = vset.pattern.permute.xlu0 3
        %694 = vperm.xlu0 %693, %v391
        %v695 = vpop.permute.xlu0 %694
        %697 = vset.pattern.permute.xlu0 3
        %698 = vperm.xlu0 %697, %v393
        %v699 = vpop.permute.xlu0 %698
        %v701 = vmul.f32 %v695, %v421
        %v702 = vmul.f32 %v699, %v422
        %705 = vrot.lane.b32.xlu0 %v701, 72
        %v706 = vpop.permute.xlu0 %705
        %707 = vrot.lane.b32.xlu0 %v702, 72
        %v708 = vpop.permute.xlu0 %707
        %v711 = vadd.f32 %v671, %v706
        %v712 = vadd.f32 %v672, %v708
        %713 = vset.pattern.permute.xlu0 7
        %714 = vperm.xlu0 %713, %v391
        %v715 = vpop.permute.xlu0 %714
        %717 = vset.pattern.permute.xlu0 7
        %718 = vperm.xlu0 %717, %v393
        %v719 = vpop.permute.xlu0 %718
        %v721 = vmul.f32 %v715, %v421
        %v722 = vmul.f32 %v719, %v422
        %725 = vrot.lane.b32.xlu0 %v721, 72
        %v726 = vpop.permute.xlu0 %725
        %727 = vrot.lane.b32.xlu0 %v722, 72
        %v728 = vpop.permute.xlu0 %727
        %v731 = vadd.f32 %v691, %v726
        %v732 = vadd.f32 %v692, %v728
        %734 = vset.pattern.permute.xlu0 0
        %735 = vperm.xlu0 %734, %v419
        %v736 = vpop.permute.xlu0 %735
        %739 = vset.pattern.permute.xlu0 0
        %740 = vperm.xlu0 %739, %v420
        %v741 = vpop.permute.xlu0 %740
        %v743 = vmul.f32 %v736, %v421
        %v744 = vmul.f32 %v741, %v422
        %747 = vrot.lane.b32.xlu0 %v743, 64
        %v748 = vpop.permute.xlu0 %747
        %749 = vrot.lane.b32.xlu0 %v744, 64
        %v750 = vpop.permute.xlu0 %749
        %v753 = vadd.f32 %v711, %v748
        %v754 = vadd.f32 %v712, %v750
        %755 = vset.pattern.permute.xlu0 4
        %756 = vperm.xlu0 %755, %v419
        %v757 = vpop.permute.xlu0 %756
        %759 = vset.pattern.permute.xlu0 4
        %760 = vperm.xlu0 %759, %v420
        %v761 = vpop.permute.xlu0 %760
        %v763 = vmul.f32 %v757, %v421
        %v764 = vmul.f32 %v761, %v422
        %767 = vrot.lane.b32.xlu0 %v763, 64
        %v768 = vpop.permute.xlu0 %767
        %769 = vrot.lane.b32.xlu0 %v764, 64
        %v770 = vpop.permute.xlu0 %769
        %v773 = vadd.f32 %v731, %v768
        %v774 = vadd.f32 %v732, %v770
        %775 = vset.pattern.permute.xlu0 1
        %776 = vperm.xlu0 %775, %v419
        %v777 = vpop.permute.xlu0 %776
        %779 = vset.pattern.permute.xlu0 1
        %780 = vperm.xlu0 %779, %v420
        %v781 = vpop.permute.xlu0 %780
        %v783 = vmul.f32 %v777, %v421
        %v784 = vmul.f32 %v781, %v422
        %787 = vrot.lane.b32.xlu0 %v783, 56
        %v788 = vpop.permute.xlu0 %787
        %789 = vrot.lane.b32.xlu0 %v784, 56
        %v790 = vpop.permute.xlu0 %789
        %v793 = vadd.f32 %v753, %v788
        %v794 = vadd.f32 %v754, %v790
        %795 = vset.pattern.permute.xlu0 5
        %796 = vperm.xlu0 %795, %v419
        %v797 = vpop.permute.xlu0 %796
        %799 = vset.pattern.permute.xlu0 5
        %800 = vperm.xlu0 %799, %v420
        %v801 = vpop.permute.xlu0 %800
        %v803 = vmul.f32 %v797, %v421
        %v804 = vmul.f32 %v801, %v422
        %807 = vrot.lane.b32.xlu0 %v803, 56
        %v808 = vpop.permute.xlu0 %807
        %809 = vrot.lane.b32.xlu0 %v804, 56
        %v810 = vpop.permute.xlu0 %809
        %v813 = vadd.f32 %v773, %v808
        %v814 = vadd.f32 %v774, %v810
        %815 = vset.pattern.permute.xlu0 2
        %816 = vperm.xlu0 %815, %v419
        %v817 = vpop.permute.xlu0 %816
        %819 = vset.pattern.permute.xlu0 2
        %820 = vperm.xlu0 %819, %v420
        %v821 = vpop.permute.xlu0 %820
        %v823 = vmul.f32 %v817, %v421
        %v824 = vmul.f32 %v821, %v422
        %827 = vrot.lane.b32.xlu0 %v823, 48
        %v828 = vpop.permute.xlu0 %827
        %829 = vrot.lane.b32.xlu0 %v824, 48
        %v830 = vpop.permute.xlu0 %829
        %v833 = vadd.f32 %v793, %v828
        %v834 = vadd.f32 %v794, %v830
        %835 = vset.pattern.permute.xlu0 6
        %836 = vperm.xlu0 %835, %v419
        %v837 = vpop.permute.xlu0 %836
        %839 = vset.pattern.permute.xlu0 6
        %840 = vperm.xlu0 %839, %v420
        %v841 = vpop.permute.xlu0 %840
        %v843 = vmul.f32 %v837, %v421
        %v844 = vmul.f32 %v841, %v422
        %847 = vrot.lane.b32.xlu0 %v843, 48
        %v848 = vpop.permute.xlu0 %847
        %849 = vrot.lane.b32.xlu0 %v844, 48
        %v850 = vpop.permute.xlu0 %849
        %v853 = vadd.f32 %v813, %v848
        %v854 = vadd.f32 %v814, %v850
        %855 = vset.pattern.permute.xlu0 3
        %856 = vperm.xlu0 %855, %v419
        %v857 = vpop.permute.xlu0 %856
        %859 = vset.pattern.permute.xlu0 3
        %860 = vperm.xlu0 %859, %v420
        %v861 = vpop.permute.xlu0 %860
        %v863 = vmul.f32 %v857, %v421
        %v864 = vmul.f32 %v861, %v422
        %867 = vrot.lane.b32.xlu0 %v863, 40
        %v868 = vpop.permute.xlu0 %867
        %869 = vrot.lane.b32.xlu0 %v864, 40
        %v870 = vpop.permute.xlu0 %869
        %v873 = vadd.f32 %v833, %v868
        %v874 = vadd.f32 %v834, %v870
        %875 = vset.pattern.permute.xlu0 7
        %876 = vperm.xlu0 %875, %v419
        %v877 = vpop.permute.xlu0 %876
        %879 = vset.pattern.permute.xlu0 7
        %880 = vperm.xlu0 %879, %v420
        %v881 = vpop.permute.xlu0 %880
        %v883 = vmul.f32 %v877, %v421
        %v884 = vmul.f32 %v881, %v422
        %887 = vrot.lane.b32.xlu0 %v883, 40
        %v888 = vpop.permute.xlu0 %887
        %889 = vrot.lane.b32.xlu0 %v884, 40
        %v890 = vpop.permute.xlu0 %889
        %v893 = vadd.f32 %v853, %v888
        %v894 = vadd.f32 %v854, %v890
        %897 = vrot.lane.b32.xlu0 %v893, 8
        %v898 = vpop.permute.xlu0 %897
        %899 = vrot.lane.b32.xlu0 %v894, 8
        %v900 = vpop.permute.xlu0 %899
        %vm903 = vcmask 64512
        %v904 = vsel %vm903, %v873, %v898
        %v905 = vsel %vm903, %v874, %v900
        %v906 = vsel %vm344, %v904, 0.0
        %v907 = vsel %vm344, %v905, 0.0
        %908 = vst [vmem:[%s288] sm:$0xff] %v906
        %909 = vst [vmem:[%s288 + $0x8] sm:$0xff] %v907
        %s910 = scalar_lea.vmem %s292, 1
        %v911 = vld [vmem:[%s910] sm:$0x1]
        %s912 = scalar_lea.vmem %s299, 16
        %v913 = vld [vmem:[%s912] sm:$0xff]
        %v914 = vld [vmem:[%s912 + $0x8] sm:$0xff]
        %916 = vset.pattern.permute.xlu0 0
        %917 = vperm.xlu0 %916, %v913
        %v918 = vpop.permute.xlu0 %917
        %921 = vset.pattern.permute.xlu0 0
        %922 = vperm.xlu0 %921, %v914
        %v923 = vpop.permute.xlu0 %922
        %v926 = vperm.slane %v911, 0
        %v928 = vmul.f32 %v918, %v926
        %v929 = vmul.f32 %v923, %v926
        %v930 = vmax.f32 %v928, 0.0
        %v931 = vmax.f32 %v929, 0.0
        %v932 = vsel %vm344, %v930, -inf
        %933 = vmax.xlane.f32.xlu0 %v932
        %v934 = vpop.xlane.xlu0 %933
        %v935 = vsel %vm344, %v931, -inf
        %936 = vmax.xlane.f32.xlu0 %v935
        %v937 = vpop.xlane.xlu0 %936
        %v938 = vsub.f32 %v930, %v934
        %v939 = vsub.f32 %v931, %v937
        %v940 = vmul.f32 %v938, 1.442695
        %v941 = vpow.pop %v940
        %v942 = vmul.f32 %v939, 1.442695
        %v943 = vpow.pop %v942
        %v944 = vsel %vm344, %v941, 0.0
        %945 = vadd.xlane.f32.xlu0 %v944
        %v946 = vpop.xlane.xlu0 %945
        %v947 = vsel %vm344, %v943, 0.0
        %948 = vadd.xlane.f32.xlu0 %v947
        %v949 = vpop.xlane.xlu0 %948
        %v950 = vrcp.pop %v946
        %v951 = vrcp.pop %v949
        %s952 = scalar_lea.vmem %s306, 8
        %v953 = vld [vmem:[%s952] sm:$0xf]
        %v954 = vld [vmem:[%s952 + $0x4] sm:$0xf]
        %v955 = vunpack.c.l.bf16 %v953
        %v956 = vunpack.c.l.bf16 %v954
        %v957 = vmul.f32 %v941, %v950
        %v958 = vmul.f32 %v943, %v951
        %v959 = vpack.c.bf16 %v958, %v957
        %v962 = vunpack.c.l.b16 %v953
        %v963 = vunpack.c.l.b16 %v954
        %v964 = vpack.c.b16 %v963, %v962
        %v967 = vsel %vm344, %v959, 0
        %969 = vmatpush.bf16.msra.mxu0 0
        %970 = vmatpush.bf16.msra.mxu0 0
        %971 = vmatpush.bf16.msra.mxu0 0
        %972 = vmatpush.bf16.msra.mxu0 0
        %973 = vmatpush.bf16.msra.mxu0 0
        %974 = vmatpush.bf16.msra.mxu0 0
        %975 = vmatpush.bf16.msra.mxu0 0
        %976 = vmatpush.bf16.msra.mxu0 %v964
        %977 = vmatmul.bf16.gmra.mxu0 %v967
        %v978 = vpop.f32.mrf.mxu0
        %v979 = vadd.f32 0.0, %v978
        %v980 = vpop.f32.mrf.mxu0
        %v981 = vadd.f32 0.0, %v980
        %982 = vdwg.mxu0
        %v983 = vmul.f32 %v913, %v913
        %v984 = vmul.f32 %v914, %v914
        %v985 = vsub.f32 %v983, %v934
        %v986 = vsub.f32 %v984, %v937
        %v987 = vmul.f32 %v985, 1.442695
        %v988 = vpow.pop %v987
        %v989 = vmul.f32 %v986, 1.442695
        %v990 = vpow.pop %v989
        %v991 = vmul.f32 %v988, %v950
        %v992 = vmul.f32 %v990, %v951
        %v993 = vmul.f32 %v991, 2.0
        %v994 = vmul.f32 %v992, 2.0
        %996 = vset.pattern.permute.xlu0 0
        %997 = vperm.xlu0 %996, %v993
        %v998 = vpop.permute.xlu0 %997
        %1001 = vset.pattern.permute.xlu0 0
        %1002 = vperm.xlu0 %1001, %v994
        %v1003 = vpop.permute.xlu0 %1002
        %v1005 = vmul.f32 %v998, %v979
        %v1006 = vmul.f32 %v1003, %v981
        %v1007 = vsub.f32 %v1005, %v955
        %v1008 = vsub.f32 %v1006, %v956
        %s1009 = scalar_lea.vmem %s313, 16
        %v1010 = vld [vmem:[%s1009] sm:$0xff]
        %v1011 = vld [vmem:[%s1009 + $0x8] sm:$0xff]
        %s1012 = scalar_lea.vmem %s320, 16
        %v1013 = vld [vmem:[%s1012] sm:$0xff]
        %v1014 = vld [vmem:[%s1012 + $0x8] sm:$0xff]
        %1016 = vset.pattern.permute.xlu0 0
        %1017 = vperm.xlu0 %1016, %v955
        %v1018 = vpop.permute.xlu0 %1017
        %1021 = vset.pattern.permute.xlu0 0
        %1022 = vperm.xlu0 %1021, %v956
        %v1023 = vpop.permute.xlu0 %1022
        %v1025 = vmul.f32 %v1018, %v1010
        %v1026 = vmul.f32 %v1023, %v1011
        %v1027 = vadd.f32 %v1013, %v1025
        %v1028 = vadd.f32 %v1014, %v1026
        %1029 = vset.pattern.permute.xlu0 4
        %1030 = vperm.xlu0 %1029, %v955
        %v1031 = vpop.permute.xlu0 %1030
        %1033 = vset.pattern.permute.xlu0 4
        %1034 = vperm.xlu0 %1033, %v956
        %v1035 = vpop.permute.xlu0 %1034
        %v1037 = vmul.f32 %v1031, %v1010
        %v1038 = vmul.f32 %v1035, %v1011
        %v1039 = vadd.f32 %v1013, %v1037
        %v1040 = vadd.f32 %v1014, %v1038
        %1041 = vset.pattern.permute.xlu0 1
        %1042 = vperm.xlu0 %1041, %v955
        %v1043 = vpop.permute.xlu0 %1042
        %1045 = vset.pattern.permute.xlu0 1
        %1046 = vperm.xlu0 %1045, %v956
        %v1047 = vpop.permute.xlu0 %1046
        %v1049 = vmul.f32 %v1043, %v1010
        %v1050 = vmul.f32 %v1047, %v1011
        %1053 = vrot.lane.b32.xlu0 %v1049, 120
        %v1054 = vpop.permute.xlu0 %1053
        %1055 = vrot.lane.b32.xlu0 %v1050, 120
        %v1056 = vpop.permute.xlu0 %1055
        %v1059 = vadd.f32 %v1027, %v1054
        %v1060 = vadd.f32 %v1028, %v1056
        %1061 = vset.pattern.permute.xlu0 5
        %1062 = vperm.xlu0 %1061, %v955
        %v1063 = vpop.permute.xlu0 %1062
        %1065 = vset.pattern.permute.xlu0 5
        %1066 = vperm.xlu0 %1065, %v956
        %v1067 = vpop.permute.xlu0 %1066
        %v1069 = vmul.f32 %v1063, %v1010
        %v1070 = vmul.f32 %v1067, %v1011
        %1073 = vrot.lane.b32.xlu0 %v1069, 120
        %v1074 = vpop.permute.xlu0 %1073
        %1075 = vrot.lane.b32.xlu0 %v1070, 120
        %v1076 = vpop.permute.xlu0 %1075
        %v1079 = vadd.f32 %v1039, %v1074
        %v1080 = vadd.f32 %v1040, %v1076
        %1081 = vset.pattern.permute.xlu0 2
        %1082 = vperm.xlu0 %1081, %v955
        %v1083 = vpop.permute.xlu0 %1082
        %1085 = vset.pattern.permute.xlu0 2
        %1086 = vperm.xlu0 %1085, %v956
        %v1087 = vpop.permute.xlu0 %1086
        %v1089 = vmul.f32 %v1083, %v1010
        %v1090 = vmul.f32 %v1087, %v1011
        %1093 = vrot.lane.b32.xlu0 %v1089, 112
        %v1094 = vpop.permute.xlu0 %1093
        %1095 = vrot.lane.b32.xlu0 %v1090, 112
        %v1096 = vpop.permute.xlu0 %1095
        %v1099 = vadd.f32 %v1059, %v1094
        %v1100 = vadd.f32 %v1060, %v1096
        %1101 = vset.pattern.permute.xlu0 6
        %1102 = vperm.xlu0 %1101, %v955
        %v1103 = vpop.permute.xlu0 %1102
        %1105 = vset.pattern.permute.xlu0 6
        %1106 = vperm.xlu0 %1105, %v956
        %v1107 = vpop.permute.xlu0 %1106
        %v1109 = vmul.f32 %v1103, %v1010
        %v1110 = vmul.f32 %v1107, %v1011
        %1113 = vrot.lane.b32.xlu0 %v1109, 112
        %v1114 = vpop.permute.xlu0 %1113
        %1115 = vrot.lane.b32.xlu0 %v1110, 112
        %v1116 = vpop.permute.xlu0 %1115
        %v1119 = vadd.f32 %v1079, %v1114
        %v1120 = vadd.f32 %v1080, %v1116
        %1121 = vset.pattern.permute.xlu0 3
        %1122 = vperm.xlu0 %1121, %v955
        %v1123 = vpop.permute.xlu0 %1122
        %1125 = vset.pattern.permute.xlu0 3
        %1126 = vperm.xlu0 %1125, %v956
        %v1127 = vpop.permute.xlu0 %1126
        %v1129 = vmul.f32 %v1123, %v1010
        %v1130 = vmul.f32 %v1127, %v1011
        %1133 = vrot.lane.b32.xlu0 %v1129, 104
        %v1134 = vpop.permute.xlu0 %1133
        %1135 = vrot.lane.b32.xlu0 %v1130, 104
        %v1136 = vpop.permute.xlu0 %1135
        %v1139 = vadd.f32 %v1099, %v1134
        %v1140 = vadd.f32 %v1100, %v1136
        %1141 = vset.pattern.permute.xlu0 7
        %1142 = vperm.xlu0 %1141, %v955
        %v1143 = vpop.permute.xlu0 %1142
        %1145 = vset.pattern.permute.xlu0 7
        %1146 = vperm.xlu0 %1145, %v956
        %v1147 = vpop.permute.xlu0 %1146
        %v1149 = vmul.f32 %v1143, %v1010
        %v1150 = vmul.f32 %v1147, %v1011
        %1153 = vrot.lane.b32.xlu0 %v1149, 104
        %v1154 = vpop.permute.xlu0 %1153
        %1155 = vrot.lane.b32.xlu0 %v1150, 104
        %v1156 = vpop.permute.xlu0 %1155
        %v1159 = vadd.f32 %v1119, %v1154
        %v1160 = vadd.f32 %v1120, %v1156
        %1162 = vset.pattern.permute.xlu0 0
        %1163 = vperm.xlu0 %1162, %v979
        %v1164 = vpop.permute.xlu0 %1163
        %1167 = vset.pattern.permute.xlu0 0
        %1168 = vperm.xlu0 %1167, %v981
        %v1169 = vpop.permute.xlu0 %1168
        %v1171 = vmul.f32 %v1164, %v1010
        %v1172 = vmul.f32 %v1169, %v1011
        %1175 = vrot.lane.b32.xlu0 %v1171, 96
        %v1176 = vpop.permute.xlu0 %1175
        %1177 = vrot.lane.b32.xlu0 %v1172, 96
        %v1178 = vpop.permute.xlu0 %1177
        %v1181 = vadd.f32 %v1139, %v1176
        %v1182 = vadd.f32 %v1140, %v1178
        %1183 = vset.pattern.permute.xlu0 4
        %1184 = vperm.xlu0 %1183, %v979
        %v1185 = vpop.permute.xlu0 %1184
        %1187 = vset.pattern.permute.xlu0 4
        %1188 = vperm.xlu0 %1187, %v981
        %v1189 = vpop.permute.xlu0 %1188
        %v1191 = vmul.f32 %v1185, %v1010
        %v1192 = vmul.f32 %v1189, %v1011
        %1195 = vrot.lane.b32.xlu0 %v1191, 96
        %v1196 = vpop.permute.xlu0 %1195
        %1197 = vrot.lane.b32.xlu0 %v1192, 96
        %v1198 = vpop.permute.xlu0 %1197
        %v1201 = vadd.f32 %v1159, %v1196
        %v1202 = vadd.f32 %v1160, %v1198
        %1203 = vset.pattern.permute.xlu0 1
        %1204 = vperm.xlu0 %1203, %v979
        %v1205 = vpop.permute.xlu0 %1204
        %1207 = vset.pattern.permute.xlu0 1
        %1208 = vperm.xlu0 %1207, %v981
        %v1209 = vpop.permute.xlu0 %1208
        %v1211 = vmul.f32 %v1205, %v1010
        %v1212 = vmul.f32 %v1209, %v1011
        %1215 = vrot.lane.b32.xlu0 %v1211, 88
        %v1216 = vpop.permute.xlu0 %1215
        %1217 = vrot.lane.b32.xlu0 %v1212, 88
        %v1218 = vpop.permute.xlu0 %1217
        %v1221 = vadd.f32 %v1181, %v1216
        %v1222 = vadd.f32 %v1182, %v1218
        %1223 = vset.pattern.permute.xlu0 5
        %1224 = vperm.xlu0 %1223, %v979
        %v1225 = vpop.permute.xlu0 %1224
        %1227 = vset.pattern.permute.xlu0 5
        %1228 = vperm.xlu0 %1227, %v981
        %v1229 = vpop.permute.xlu0 %1228
        %v1231 = vmul.f32 %v1225, %v1010
        %v1232 = vmul.f32 %v1229, %v1011
        %1235 = vrot.lane.b32.xlu0 %v1231, 88
        %v1236 = vpop.permute.xlu0 %1235
        %1237 = vrot.lane.b32.xlu0 %v1232, 88
        %v1238 = vpop.permute.xlu0 %1237
        %v1241 = vadd.f32 %v1201, %v1236
        %v1242 = vadd.f32 %v1202, %v1238
        %1243 = vset.pattern.permute.xlu0 2
        %1244 = vperm.xlu0 %1243, %v979
        %v1245 = vpop.permute.xlu0 %1244
        %1247 = vset.pattern.permute.xlu0 2
        %1248 = vperm.xlu0 %1247, %v981
        %v1249 = vpop.permute.xlu0 %1248
        %v1251 = vmul.f32 %v1245, %v1010
        %v1252 = vmul.f32 %v1249, %v1011
        %1255 = vrot.lane.b32.xlu0 %v1251, 80
        %v1256 = vpop.permute.xlu0 %1255
        %1257 = vrot.lane.b32.xlu0 %v1252, 80
        %v1258 = vpop.permute.xlu0 %1257
        %v1261 = vadd.f32 %v1221, %v1256
        %v1262 = vadd.f32 %v1222, %v1258
        %1263 = vset.pattern.permute.xlu0 6
        %1264 = vperm.xlu0 %1263, %v979
        %v1265 = vpop.permute.xlu0 %1264
        %1267 = vset.pattern.permute.xlu0 6
        %1268 = vperm.xlu0 %1267, %v981
        %v1269 = vpop.permute.xlu0 %1268
        %v1271 = vmul.f32 %v1265, %v1010
        %v1272 = vmul.f32 %v1269, %v1011
        %1275 = vrot.lane.b32.xlu0 %v1271, 80
        %v1276 = vpop.permute.xlu0 %1275
        %1277 = vrot.lane.b32.xlu0 %v1272, 80
        %v1278 = vpop.permute.xlu0 %1277
        %v1281 = vadd.f32 %v1241, %v1276
        %v1282 = vadd.f32 %v1242, %v1278
        %1283 = vset.pattern.permute.xlu0 3
        %1284 = vperm.xlu0 %1283, %v979
        %v1285 = vpop.permute.xlu0 %1284
        %1287 = vset.pattern.permute.xlu0 3
        %1288 = vperm.xlu0 %1287, %v981
        %v1289 = vpop.permute.xlu0 %1288
        %v1291 = vmul.f32 %v1285, %v1010
        %v1292 = vmul.f32 %v1289, %v1011
        %1295 = vrot.lane.b32.xlu0 %v1291, 72
        %v1296 = vpop.permute.xlu0 %1295
        %1297 = vrot.lane.b32.xlu0 %v1292, 72
        %v1298 = vpop.permute.xlu0 %1297
        %v1301 = vadd.f32 %v1261, %v1296
        %v1302 = vadd.f32 %v1262, %v1298
        %1303 = vset.pattern.permute.xlu0 7
        %1304 = vperm.xlu0 %1303, %v979
        %v1305 = vpop.permute.xlu0 %1304
        %1307 = vset.pattern.permute.xlu0 7
        %1308 = vperm.xlu0 %1307, %v981
        %v1309 = vpop.permute.xlu0 %1308
        %v1311 = vmul.f32 %v1305, %v1010
        %v1312 = vmul.f32 %v1309, %v1011
        %1315 = vrot.lane.b32.xlu0 %v1311, 72
        %v1316 = vpop.permute.xlu0 %1315
        %1317 = vrot.lane.b32.xlu0 %v1312, 72
        %v1318 = vpop.permute.xlu0 %1317
        %v1321 = vadd.f32 %v1281, %v1316
        %v1322 = vadd.f32 %v1282, %v1318
        %1324 = vset.pattern.permute.xlu0 0
        %1325 = vperm.xlu0 %1324, %v1007
        %v1326 = vpop.permute.xlu0 %1325
        %1329 = vset.pattern.permute.xlu0 0
        %1330 = vperm.xlu0 %1329, %v1008
        %v1331 = vpop.permute.xlu0 %1330
        %v1333 = vmul.f32 %v1326, %v1010
        %v1334 = vmul.f32 %v1331, %v1011
        %1337 = vrot.lane.b32.xlu0 %v1333, 64
        %v1338 = vpop.permute.xlu0 %1337
        %1339 = vrot.lane.b32.xlu0 %v1334, 64
        %v1340 = vpop.permute.xlu0 %1339
        %v1343 = vadd.f32 %v1301, %v1338
        %v1344 = vadd.f32 %v1302, %v1340
        %1345 = vset.pattern.permute.xlu0 4
        %1346 = vperm.xlu0 %1345, %v1007
        %v1347 = vpop.permute.xlu0 %1346
        %1349 = vset.pattern.permute.xlu0 4
        %1350 = vperm.xlu0 %1349, %v1008
        %v1351 = vpop.permute.xlu0 %1350
        %v1353 = vmul.f32 %v1347, %v1010
        %v1354 = vmul.f32 %v1351, %v1011
        %1357 = vrot.lane.b32.xlu0 %v1353, 64
        %v1358 = vpop.permute.xlu0 %1357
        %1359 = vrot.lane.b32.xlu0 %v1354, 64
        %v1360 = vpop.permute.xlu0 %1359
        %v1363 = vadd.f32 %v1321, %v1358
        %v1364 = vadd.f32 %v1322, %v1360
        %1365 = vset.pattern.permute.xlu0 1
        %1366 = vperm.xlu0 %1365, %v1007
        %v1367 = vpop.permute.xlu0 %1366
        %1369 = vset.pattern.permute.xlu0 1
        %1370 = vperm.xlu0 %1369, %v1008
        %v1371 = vpop.permute.xlu0 %1370
        %v1373 = vmul.f32 %v1367, %v1010
        %v1374 = vmul.f32 %v1371, %v1011
        %1377 = vrot.lane.b32.xlu0 %v1373, 56
        %v1378 = vpop.permute.xlu0 %1377
        %1379 = vrot.lane.b32.xlu0 %v1374, 56
        %v1380 = vpop.permute.xlu0 %1379
        %v1383 = vadd.f32 %v1343, %v1378
        %v1384 = vadd.f32 %v1344, %v1380
        %1385 = vset.pattern.permute.xlu0 5
        %1386 = vperm.xlu0 %1385, %v1007
        %v1387 = vpop.permute.xlu0 %1386
        %1389 = vset.pattern.permute.xlu0 5
        %1390 = vperm.xlu0 %1389, %v1008
        %v1391 = vpop.permute.xlu0 %1390
        %v1393 = vmul.f32 %v1387, %v1010
        %v1394 = vmul.f32 %v1391, %v1011
        %1397 = vrot.lane.b32.xlu0 %v1393, 56
        %v1398 = vpop.permute.xlu0 %1397
        %1399 = vrot.lane.b32.xlu0 %v1394, 56
        %v1400 = vpop.permute.xlu0 %1399
        %v1403 = vadd.f32 %v1363, %v1398
        %v1404 = vadd.f32 %v1364, %v1400
        %1405 = vset.pattern.permute.xlu0 2
        %1406 = vperm.xlu0 %1405, %v1007
        %v1407 = vpop.permute.xlu0 %1406
        %1409 = vset.pattern.permute.xlu0 2
        %1410 = vperm.xlu0 %1409, %v1008
        %v1411 = vpop.permute.xlu0 %1410
        %v1413 = vmul.f32 %v1407, %v1010
        %v1414 = vmul.f32 %v1411, %v1011
        %1417 = vrot.lane.b32.xlu0 %v1413, 48
        %v1418 = vpop.permute.xlu0 %1417
        %1419 = vrot.lane.b32.xlu0 %v1414, 48
        %v1420 = vpop.permute.xlu0 %1419
        %v1423 = vadd.f32 %v1383, %v1418
        %v1424 = vadd.f32 %v1384, %v1420
        %1425 = vset.pattern.permute.xlu0 6
        %1426 = vperm.xlu0 %1425, %v1007
        %v1427 = vpop.permute.xlu0 %1426
        %1429 = vset.pattern.permute.xlu0 6
        %1430 = vperm.xlu0 %1429, %v1008
        %v1431 = vpop.permute.xlu0 %1430
        %v1433 = vmul.f32 %v1427, %v1010
        %v1434 = vmul.f32 %v1431, %v1011
        %1437 = vrot.lane.b32.xlu0 %v1433, 48
        %v1438 = vpop.permute.xlu0 %1437
        %1439 = vrot.lane.b32.xlu0 %v1434, 48
        %v1440 = vpop.permute.xlu0 %1439
        %v1443 = vadd.f32 %v1403, %v1438
        %v1444 = vadd.f32 %v1404, %v1440
        %1445 = vset.pattern.permute.xlu0 3
        %1446 = vperm.xlu0 %1445, %v1007
        %v1447 = vpop.permute.xlu0 %1446
        %1449 = vset.pattern.permute.xlu0 3
        %1450 = vperm.xlu0 %1449, %v1008
        %v1451 = vpop.permute.xlu0 %1450
        %v1453 = vmul.f32 %v1447, %v1010
        %v1454 = vmul.f32 %v1451, %v1011
        %1457 = vrot.lane.b32.xlu0 %v1453, 40
        %v1458 = vpop.permute.xlu0 %1457
        %1459 = vrot.lane.b32.xlu0 %v1454, 40
        %v1460 = vpop.permute.xlu0 %1459
        %v1463 = vadd.f32 %v1423, %v1458
        %v1464 = vadd.f32 %v1424, %v1460
        %1465 = vset.pattern.permute.xlu0 7
        %1466 = vperm.xlu0 %1465, %v1007
        %v1467 = vpop.permute.xlu0 %1466
        %1469 = vset.pattern.permute.xlu0 7
        %1470 = vperm.xlu0 %1469, %v1008
        %v1471 = vpop.permute.xlu0 %1470
        %v1473 = vmul.f32 %v1467, %v1010
        %v1474 = vmul.f32 %v1471, %v1011
        %1477 = vrot.lane.b32.xlu0 %v1473, 40
        %v1478 = vpop.permute.xlu0 %1477
        %1479 = vrot.lane.b32.xlu0 %v1474, 40
        %v1480 = vpop.permute.xlu0 %1479
        %v1483 = vadd.f32 %v1443, %v1478
        %v1484 = vadd.f32 %v1444, %v1480
        %1487 = vrot.lane.b32.xlu0 %v1483, 8
        %v1488 = vpop.permute.xlu0 %1487
        %1489 = vrot.lane.b32.xlu0 %v1484, 8
        %v1490 = vpop.permute.xlu0 %1489
        %v1493 = vsel %vm903, %v1463, %v1488
        %v1494 = vsel %vm903, %v1464, %v1490
        %v1495 = vsel %vm344, %v1493, 0.0
        %v1496 = vsel %vm344, %v1494, 0.0
        %s1497 = scalar_lea.vmem %s288, 16 [#allocation2]
        %1498 = vst [vmem:[%s1497] sm:$0xff] %v1495
        %1499 = vst [vmem:[%s1497 + $0x8] sm:$0xff] %v1496
        %s1500 = scalar_lea.vmem %s292, 2
        %v1501 = vld [vmem:[%s1500] sm:$0x1]
        %s1502 = scalar_lea.vmem %s299, 32
        %v1503 = vld [vmem:[%s1502] sm:$0xff]
        %v1504 = vld [vmem:[%s1502 + $0x8] sm:$0xff]
        %1506 = vset.pattern.permute.xlu0 0
        %1507 = vperm.xlu0 %1506, %v1503
        %v1508 = vpop.permute.xlu0 %1507
        %1511 = vset.pattern.permute.xlu0 0
        %1512 = vperm.xlu0 %1511, %v1504
        %v1513 = vpop.permute.xlu0 %1512
        %v1516 = vperm.slane %v1501, 0
        %v1518 = vmul.f32 %v1508, %v1516
        %v1519 = vmul.f32 %v1513, %v1516
        %v1520 = vmax.f32 %v1518, 0.0
        %v1521 = vmax.f32 %v1519, 0.0
        %v1522 = vsel %vm344, %v1520, -inf
        %1523 = vmax.xlane.f32.xlu0 %v1522
        %v1524 = vpop.xlane.xlu0 %1523
        %v1525 = vsel %vm344, %v1521, -inf
        %1526 = vmax.xlane.f32.xlu0 %v1525
        %v1527 = vpop.xlane.xlu0 %1526
        %v1528 = vsub.f32 %v1520, %v1524
        %v1529 = vsub.f32 %v1521, %v1527
        %v1530 = vmul.f32 %v1528, 1.442695
        %v1531 = vpow.pop %v1530
        %v1532 = vmul.f32 %v1529, 1.442695
        %v1533 = vpow.pop %v1532
        %v1534 = vsel %vm344, %v1531, 0.0
        %1535 = vadd.xlane.f32.xlu0 %v1534
        %v1536 = vpop.xlane.xlu0 %1535
        %v1537 = vsel %vm344, %v1533, 0.0
        %1538 = vadd.xlane.f32.xlu0 %v1537
        %v1539 = vpop.xlane.xlu0 %1538
        %v1540 = vrcp.pop %v1536
        %v1541 = vrcp.pop %v1539
        %s1542 = scalar_lea.vmem %s306, 16
        %v1543 = vld [vmem:[%s1542] sm:$0xf]
        %v1544 = vld [vmem:[%s1542 + $0x4] sm:$0xf]
        %v1545 = vunpack.c.l.bf16 %v1543
        %v1546 = vunpack.c.l.bf16 %v1544
        %v1547 = vmul.f32 %v1531, %v1540
        %v1548 = vmul.f32 %v1533, %v1541
        %v1549 = vpack.c.bf16 %v1548, %v1547
        %v1552 = vunpack.c.l.b16 %v1543
        %v1553 = vunpack.c.l.b16 %v1544
        %v1554 = vpack.c.b16 %v1553, %v1552
        %v1557 = vsel %vm344, %v1549, 0
        %1559 = vmatpush.bf16.msra.mxu0 0
        %1560 = vmatpush.bf16.msra.mxu0 0
        %1561 = vmatpush.bf16.msra.mxu0 0
        %1562 = vmatpush.bf16.msra.mxu0 0
        %1563 = vmatpush.bf16.msra.mxu0 0
        %1564 = vmatpush.bf16.msra.mxu0 0
        %1565 = vmatpush.bf16.msra.mxu0 0
        %1566 = vmatpush.bf16.msra.mxu0 %v1554
        %1567 = vmatmul.bf16.gmra.mxu0 %v1557
        %v1568 = vpop.f32.mrf.mxu0
        %v1569 = vadd.f32 0.0, %v1568
        %v1570 = vpop.f32.mrf.mxu0
        %v1571 = vadd.f32 0.0, %v1570
        %1572 = vdwg.mxu0
        %v1573 = vmul.f32 %v1503, %v1503
        %v1574 = vmul.f32 %v1504, %v1504
        %v1575 = vsub.f32 %v1573, %v1524
        %v1576 = vsub.f32 %v1574, %v1527
        %v1577 = vmul.f32 %v1575, 1.442695
        %v1578 = vpow.pop %v1577
        %v1579 = vmul.f32 %v1576, 1.442695
        %v1580 = vpow.pop %v1579
        %v1581 = vmul.f32 %v1578, %v1540
        %v1582 = vmul.f32 %v1580, %v1541
        %v1583 = vmul.f32 %v1581, 2.0
        %v1584 = vmul.f32 %v1582, 2.0
        %1586 = vset.pattern.permute.xlu0 0
        %1587 = vperm.xlu0 %1586, %v1583
        %v1588 = vpop.permute.xlu0 %1587
        %1591 = vset.pattern.permute.xlu0 0
        %1592 = vperm.xlu0 %1591, %v1584
        %v1593 = vpop.permute.xlu0 %1592
        %v1595 = vmul.f32 %v1588, %v1569
        %v1596 = vmul.f32 %v1593, %v1571
        %v1597 = vsub.f32 %v1595, %v1545
        %v1598 = vsub.f32 %v1596, %v1546
        %s1599 = scalar_lea.vmem %s313, 32
        %v1600 = vld [vmem:[%s1599] sm:$0xff]
        %v1601 = vld [vmem:[%s1599 + $0x8] sm:$0xff]
        %s1602 = scalar_lea.vmem %s320, 32
        %v1603 = vld [vmem:[%s1602] sm:$0xff]
        %v1604 = vld [vmem:[%s1602 + $0x8] sm:$0xff]
        %1606 = vset.pattern.permute.xlu0 0
        %1607 = vperm.xlu0 %1606, %v1545
        %v1608 = vpop.permute.xlu0 %1607
        %1611 = vset.pattern.permute.xlu0 0
        %1612 = vperm.xlu0 %1611, %v1546
        %v1613 = vpop.permute.xlu0 %1612
        %v1615 = vmul.f32 %v1608, %v1600
        %v1616 = vmul.f32 %v1613, %v1601
        %v1617 = vadd.f32 %v1603, %v1615
        %v1618 = vadd.f32 %v1604, %v1616
        %1619 = vset.pattern.permute.xlu0 4
        %1620 = vperm.xlu0 %1619, %v1545
        %v1621 = vpop.permute.xlu0 %1620
        %1623 = vset.pattern.permute.xlu0 4
        %1624 = vperm.xlu0 %1623, %v1546
        %v1625 = vpop.permute.xlu0 %1624
        %v1627 = vmul.f32 %v1621, %v1600
        %v1628 = vmul.f32 %v1625, %v1601
        %v1629 = vadd.f32 %v1603, %v1627
        %v1630 = vadd.f32 %v1604, %v1628
        %1631 = vset.pattern.permute.xlu0 1
        %1632 = vperm.xlu0 %1631, %v1545
        %v1633 = vpop.permute.xlu0 %1632
        %1635 = vset.pattern.permute.xlu0 1
        %1636 = vperm.xlu0 %1635, %v1546
        %v1637 = vpop.permute.xlu0 %1636
        %v1639 = vmul.f32 %v1633, %v1600
        %v1640 = vmul.f32 %v1637, %v1601
        %1643 = vrot.lane.b32.xlu0 %v1639, 120
        %v1644 = vpop.permute.xlu0 %1643
        %1645 = vrot.lane.b32.xlu0 %v1640, 120
        %v1646 = vpop.permute.xlu0 %1645
        %v1649 = vadd.f32 %v1617, %v1644
        %v1650 = vadd.f32 %v1618, %v1646
        %1651 = vset.pattern.permute.xlu0 5
        %1652 = vperm.xlu0 %1651, %v1545
        %v1653 = vpop.permute.xlu0 %1652
        %1655 = vset.pattern.permute.xlu0 5
        %1656 = vperm.xlu0 %1655, %v1546
        %v1657 = vpop.permute.xlu0 %1656
        %v1659 = vmul.f32 %v1653, %v1600
        %v1660 = vmul.f32 %v1657, %v1601
        %1663 = vrot.lane.b32.xlu0 %v1659, 120
        %v1664 = vpop.permute.xlu0 %1663
        %1665 = vrot.lane.b32.xlu0 %v1660, 120
        %v1666 = vpop.permute.xlu0 %1665
        %v1669 = vadd.f32 %v1629, %v1664
        %v1670 = vadd.f32 %v1630, %v1666
        %1671 = vset.pattern.permute.xlu0 2
        %1672 = vperm.xlu0 %1671, %v1545
        %v1673 = vpop.permute.xlu0 %1672
        %1675 = vset.pattern.permute.xlu0 2
        %1676 = vperm.xlu0 %1675, %v1546
        %v1677 = vpop.permute.xlu0 %1676
        %v1679 = vmul.f32 %v1673, %v1600
        %v1680 = vmul.f32 %v1677, %v1601
        %1683 = vrot.lane.b32.xlu0 %v1679, 112
        %v1684 = vpop.permute.xlu0 %1683
        %1685 = vrot.lane.b32.xlu0 %v1680, 112
        %v1686 = vpop.permute.xlu0 %1685
        %v1689 = vadd.f32 %v1649, %v1684
        %v1690 = vadd.f32 %v1650, %v1686
        %1691 = vset.pattern.permute.xlu0 6
        %1692 = vperm.xlu0 %1691, %v1545
        %v1693 = vpop.permute.xlu0 %1692
        %1695 = vset.pattern.permute.xlu0 6
        %1696 = vperm.xlu0 %1695, %v1546
        %v1697 = vpop.permute.xlu0 %1696
        %v1699 = vmul.f32 %v1693, %v1600
        %v1700 = vmul.f32 %v1697, %v1601
        %1703 = vrot.lane.b32.xlu0 %v1699, 112
        %v1704 = vpop.permute.xlu0 %1703
        %1705 = vrot.lane.b32.xlu0 %v1700, 112
        %v1706 = vpop.permute.xlu0 %1705
        %v1709 = vadd.f32 %v1669, %v1704
        %v1710 = vadd.f32 %v1670, %v1706
        %1711 = vset.pattern.permute.xlu0 3
        %1712 = vperm.xlu0 %1711, %v1545
        %v1713 = vpop.permute.xlu0 %1712
        %1715 = vset.pattern.permute.xlu0 3
        %1716 = vperm.xlu0 %1715, %v1546
        %v1717 = vpop.permute.xlu0 %1716
        %v1719 = vmul.f32 %v1713, %v1600
        %v1720 = vmul.f32 %v1717, %v1601
        %1723 = vrot.lane.b32.xlu0 %v1719, 104
        %v1724 = vpop.permute.xlu0 %1723
        %1725 = vrot.lane.b32.xlu0 %v1720, 104
        %v1726 = vpop.permute.xlu0 %1725
        %v1729 = vadd.f32 %v1689, %v1724
        %v1730 = vadd.f32 %v1690, %v1726
        %1731 = vset.pattern.permute.xlu0 7
        %1732 = vperm.xlu0 %1731, %v1545
        %v1733 = vpop.permute.xlu0 %1732
        %1735 = vset.pattern.permute.xlu0 7
        %1736 = vperm.xlu0 %1735, %v1546
        %v1737 = vpop.permute.xlu0 %1736
        %v1739 = vmul.f32 %v1733, %v1600
        %v1740 = vmul.f32 %v1737, %v1601
        %1743 = vrot.lane.b32.xlu0 %v1739, 104
        %v1744 = vpop.permute.xlu0 %1743
        %1745 = vrot.lane.b32.xlu0 %v1740, 104
        %v1746 = vpop.permute.xlu0 %1745
        %v1749 = vadd.f32 %v1709, %v1744
        %v1750 = vadd.f32 %v1710, %v1746
        %1752 = vset.pattern.permute.xlu0 0
        %1753 = vperm.xlu0 %1752, %v1569
        %v1754 = vpop.permute.xlu0 %1753
        %1757 = vset.pattern.permute.xlu0 0
        %1758 = vperm.xlu0 %1757, %v1571
        %v1759 = vpop.permute.xlu0 %1758
        %v1761 = vmul.f32 %v1754, %v1600
        %v1762 = vmul.f32 %v1759, %v1601
        %1765 = vrot.lane.b32.xlu0 %v1761, 96
        %v1766 = vpop.permute.xlu0 %1765
        %1767 = vrot.lane.b32.xlu0 %v1762, 96
        %v1768 = vpop.permute.xlu0 %1767
        %v1771 = vadd.f32 %v1729, %v1766
        %v1772 = vadd.f32 %v1730, %v1768
        %1773 = vset.pattern.permute.xlu0 4
        %1774 = vperm.xlu0 %1773, %v1569
        %v1775 = vpop.permute.xlu0 %1774
        %1777 = vset.pattern.permute.xlu0 4
        %1778 = vperm.xlu0 %1777, %v1571
        %v1779 = vpop.permute.xlu0 %1778
        %v1781 = vmul.f32 %v1775, %v1600
        %v1782 = vmul.f32 %v1779, %v1601
        %1785 = vrot.lane.b32.xlu0 %v1781, 96
        %v1786 = vpop.permute.xlu0 %1785
        %1787 = vrot.lane.b32.xlu0 %v1782, 96
        %v1788 = vpop.permute.xlu0 %1787
        %v1791 = vadd.f32 %v1749, %v1786
        %v1792 = vadd.f32 %v1750, %v1788
        %1793 = vset.pattern.permute.xlu0 1
        %1794 = vperm.xlu0 %1793, %v1569
        %v1795 = vpop.permute.xlu0 %1794
        %1797 = vset.pattern.permute.xlu0 1
        %1798 = vperm.xlu0 %1797, %v1571
        %v1799 = vpop.permute.xlu0 %1798
        %v1801 = vmul.f32 %v1795, %v1600
        %v1802 = vmul.f32 %v1799, %v1601
        %1805 = vrot.lane.b32.xlu0 %v1801, 88
        %v1806 = vpop.permute.xlu0 %1805
        %1807 = vrot.lane.b32.xlu0 %v1802, 88
        %v1808 = vpop.permute.xlu0 %1807
        %v1811 = vadd.f32 %v1771, %v1806
        %v1812 = vadd.f32 %v1772, %v1808
        %1813 = vset.pattern.permute.xlu0 5
        %1814 = vperm.xlu0 %1813, %v1569
        %v1815 = vpop.permute.xlu0 %1814
        %1817 = vset.pattern.permute.xlu0 5
        %1818 = vperm.xlu0 %1817, %v1571
        %v1819 = vpop.permute.xlu0 %1818
        %v1821 = vmul.f32 %v1815, %v1600
        %v1822 = vmul.f32 %v1819, %v1601
        %1825 = vrot.lane.b32.xlu0 %v1821, 88
        %v1826 = vpop.permute.xlu0 %1825
        %1827 = vrot.lane.b32.xlu0 %v1822, 88
        %v1828 = vpop.permute.xlu0 %1827
        %v1831 = vadd.f32 %v1791, %v1826
        %v1832 = vadd.f32 %v1792, %v1828
        %1833 = vset.pattern.permute.xlu0 2
        %1834 = vperm.xlu0 %1833, %v1569
        %v1835 = vpop.permute.xlu0 %1834
        %1837 = vset.pattern.permute.xlu0 2
        %1838 = vperm.xlu0 %1837, %v1571
        %v1839 = vpop.permute.xlu0 %1838
        %v1841 = vmul.f32 %v1835, %v1600
        %v1842 = vmul.f32 %v1839, %v1601
        %1845 = vrot.lane.b32.xlu0 %v1841, 80
        %v1846 = vpop.permute.xlu0 %1845
        %1847 = vrot.lane.b32.xlu0 %v1842, 80
        %v1848 = vpop.permute.xlu0 %1847
        %v1851 = vadd.f32 %v1811, %v1846
        %v1852 = vadd.f32 %v1812, %v1848
        %1853 = vset.pattern.permute.xlu0 6
        %1854 = vperm.xlu0 %1853, %v1569
        %v1855 = vpop.permute.xlu0 %1854
        %1857 = vset.pattern.permute.xlu0 6
        %1858 = vperm.xlu0 %1857, %v1571
        %v1859 = vpop.permute.xlu0 %1858
        %v1861 = vmul.f32 %v1855, %v1600
        %v1862 = vmul.f32 %v1859, %v1601
        %1865 = vrot.lane.b32.xlu0 %v1861, 80
        %v1866 = vpop.permute.xlu0 %1865
        %1867 = vrot.lane.b32.xlu0 %v1862, 80
        %v1868 = vpop.permute.xlu0 %1867
        %v1871 = vadd.f32 %v1831, %v1866
        %v1872 = vadd.f32 %v1832, %v1868
        %1873 = vset.pattern.permute.xlu0 3
        %1874 = vperm.xlu0 %1873, %v1569
        %v1875 = vpop.permute.xlu0 %1874
        %1877 = vset.pattern.permute.xlu0 3
        %1878 = vperm.xlu0 %1877, %v1571
        %v1879 = vpop.permute.xlu0 %1878
        %v1881 = vmul.f32 %v1875, %v1600
        %v1882 = vmul.f32 %v1879, %v1601
        %1885 = vrot.lane.b32.xlu0 %v1881, 72
        %v1886 = vpop.permute.xlu0 %1885
        %1887 = vrot.lane.b32.xlu0 %v1882, 72
        %v1888 = vpop.permute.xlu0 %1887
        %v1891 = vadd.f32 %v1851, %v1886
        %v1892 = vadd.f32 %v1852, %v1888
        %1893 = vset.pattern.permute.xlu0 7
        %1894 = vperm.xlu0 %1893, %v1569
        %v1895 = vpop.permute.xlu0 %1894
        %1897 = vset.pattern.permute.xlu0 7
        %1898 = vperm.xlu0 %1897, %v1571
        %v1899 = vpop.permute.xlu0 %1898
        %v1901 = vmul.f32 %v1895, %v1600
        %v1902 = vmul.f32 %v1899, %v1601
        %1905 = vrot.lane.b32.xlu0 %v1901, 72
        %v1906 = vpop.permute.xlu0 %1905
        %1907 = vrot.lane.b32.xlu0 %v1902, 72
        %v1908 = vpop.permute.xlu0 %1907
        %v1911 = vadd.f32 %v1871, %v1906
        %v1912 = vadd.f32 %v1872, %v1908
        %1914 = vset.pattern.permute.xlu0 0
        %1915 = vperm.xlu0 %1914, %v1597
        %v1916 = vpop.permute.xlu0 %1915
        %1919 = vset.pattern.permute.xlu0 0
        %1920 = vperm.xlu0 %1919, %v1598
        %v1921 = vpop.permute.xlu0 %1920
        %v1923 = vmul.f32 %v1916, %v1600
        %v1924 = vmul.f32 %v1921, %v1601
        %1927 = vrot.lane.b32.xlu0 %v1923, 64
        %v1928 = vpop.permute.xlu0 %1927
        %1929 = vrot.lane.b32.xlu0 %v1924, 64
        %v1930 = vpop.permute.xlu0 %1929
        %v1933 = vadd.f32 %v1891, %v1928
        %v1934 = vadd.f32 %v1892, %v1930
        %1935 = vset.pattern.permute.xlu0 4
        %1936 = vperm.xlu0 %1935, %v1597
        %v1937 = vpop.permute.xlu0 %1936
        %1939 = vset.pattern.permute.xlu0 4
        %1940 = vperm.xlu0 %1939, %v1598
        %v1941 = vpop.permute.xlu0 %1940
        %v1943 = vmul.f32 %v1937, %v1600
        %v1944 = vmul.f32 %v1941, %v1601
        %1947 = vrot.lane.b32.xlu0 %v1943, 64
        %v1948 = vpop.permute.xlu0 %1947
        %1949 = vrot.lane.b32.xlu0 %v1944, 64
        %v1950 = vpop.permute.xlu0 %1949
        %v1953 = vadd.f32 %v1911, %v1948
        %v1954 = vadd.f32 %v1912, %v1950
        %1955 = vset.pattern.permute.xlu0 1
        %1956 = vperm.xlu0 %1955, %v1597
        %v1957 = vpop.permute.xlu0 %1956
        %1959 = vset.pattern.permute.xlu0 1
        %1960 = vperm.xlu0 %1959, %v1598
        %v1961 = vpop.permute.xlu0 %1960
        %v1963 = vmul.f32 %v1957, %v1600
        %v1964 = vmul.f32 %v1961, %v1601
        %1967 = vrot.lane.b32.xlu0 %v1963, 56
        %v1968 = vpop.permute.xlu0 %1967
        %1969 = vrot.lane.b32.xlu0 %v1964, 56
        %v1970 = vpop.permute.xlu0 %1969
        %v1973 = vadd.f32 %v1933, %v1968
        %v1974 = vadd.f32 %v1934, %v1970
        %1975 = vset.pattern.permute.xlu0 5
        %1976 = vperm.xlu0 %1975, %v1597
        %v1977 = vpop.permute.xlu0 %1976
        %1979 = vset.pattern.permute.xlu0 5
        %1980 = vperm.xlu0 %1979, %v1598
        %v1981 = vpop.permute.xlu0 %1980
        %v1983 = vmul.f32 %v1977, %v1600
        %v1984 = vmul.f32 %v1981, %v1601
        %1987 = vrot.lane.b32.xlu0 %v1983, 56
        %v1988 = vpop.permute.xlu0 %1987
        %1989 = vrot.lane.b32.xlu0 %v1984, 56
        %v1990 = vpop.permute.xlu0 %1989
        %v1993 = vadd.f32 %v1953, %v1988
        %v1994 = vadd.f32 %v1954, %v1990
        %1995 = vset.pattern.permute.xlu0 2
        %1996 = vperm.xlu0 %1995, %v1597
        %v1997 = vpop.permute.xlu0 %1996
        %1999 = vset.pattern.permute.xlu0 2
        %2000 = vperm.xlu0 %1999, %v1598
        %v2001 = vpop.permute.xlu0 %2000
        %v2003 = vmul.f32 %v1997, %v1600
        %v2004 = vmul.f32 %v2001, %v1601
        %2007 = vrot.lane.b32.xlu0 %v2003, 48
        %v2008 = vpop.permute.xlu0 %2007
        %2009 = vrot.lane.b32.xlu0 %v2004, 48
        %v2010 = vpop.permute.xlu0 %2009
        %v2013 = vadd.f32 %v1973, %v2008
        %v2014 = vadd.f32 %v1974, %v2010
        %2015 = vset.pattern.permute.xlu0 6
        %2016 = vperm.xlu0 %2015, %v1597
        %v2017 = vpop.permute.xlu0 %2016
        %2019 = vset.pattern.permute.xlu0 6
        %2020 = vperm.xlu0 %2019, %v1598
        %v2021 = vpop.permute.xlu0 %2020
        %v2023 = vmul.f32 %v2017, %v1600
        %v2024 = vmul.f32 %v2021, %v1601
        %2027 = vrot.lane.b32.xlu0 %v2023, 48
        %v2028 = vpop.permute.xlu0 %2027
        %2029 = vrot.lane.b32.xlu0 %v2024, 48
        %v2030 = vpop.permute.xlu0 %2029
        %v2033 = vadd.f32 %v1993, %v2028
        %v2034 = vadd.f32 %v1994, %v2030
        %2035 = vset.pattern.permute.xlu0 3
        %2036 = vperm.xlu0 %2035, %v1597
        %v2037 = vpop.permute.xlu0 %2036
        %2039 = vset.pattern.permute.xlu0 3
        %2040 = vperm.xlu0 %2039, %v1598
        %v2041 = vpop.permute.xlu0 %2040
        %v2043 = vmul.f32 %v2037, %v1600
        %v2044 = vmul.f32 %v2041, %v1601
        %2047 = vrot.lane.b32.xlu0 %v2043, 40
        %v2048 = vpop.permute.xlu0 %2047
        %2049 = vrot.lane.b32.xlu0 %v2044, 40
        %v2050 = vpop.permute.xlu0 %2049
        %v2053 = vadd.f32 %v2013, %v2048
        %v2054 = vadd.f32 %v2014, %v2050
        %2055 = vset.pattern.permute.xlu0 7
        %2056 = vperm.xlu0 %2055, %v1597
        %v2057 = vpop.permute.xlu0 %2056
        %2059 = vset.pattern.permute.xlu0 7
        %2060 = vperm.xlu0 %2059, %v1598
        %v2061 = vpop.permute.xlu0 %2060
        %v2063 = vmul.f32 %v2057, %v1600
        %v2064 = vmul.f32 %v2061, %v1601
        %2067 = vrot.lane.b32.xlu0 %v2063, 40
        %v2068 = vpop.permute.xlu0 %2067
        %2069 = vrot.lane.b32.xlu0 %v2064, 40
        %v2070 = vpop.permute.xlu0 %2069
        %v2073 = vadd.f32 %v2033, %v2068
        %v2074 = vadd.f32 %v2034, %v2070
        %2077 = vrot.lane.b32.xlu0 %v2073, 8
        %v2078 = vpop.permute.xlu0 %2077
        %2079 = vrot.lane.b32.xlu0 %v2074, 8
        %v2080 = vpop.permute.xlu0 %2079
        %v2083 = vsel %vm903, %v2053, %v2078
        %v2084 = vsel %vm903, %v2054, %v2080
        %v2085 = vsel %vm344, %v2083, 0.0
        %v2086 = vsel %vm344, %v2084, 0.0
        %s2087 = scalar_lea.vmem %s288, 32 [#allocation2]
        %2088 = vst [vmem:[%s2087] sm:$0xff] %v2085
        %2089 = vst [vmem:[%s2087 + $0x8] sm:$0xff] %v2086
        %s2090 = scalar_lea.vmem %s292, 3
        %v2091 = vld [vmem:[%s2090] sm:$0x1]
        %s2092 = scalar_lea.vmem %s299, 48
        %v2093 = vld [vmem:[%s2092] sm:$0xff]
        %v2094 = vld [vmem:[%s2092 + $0x8] sm:$0xff]
        %2096 = vset.pattern.permute.xlu0 0
        %2097 = vperm.xlu0 %2096, %v2093
        %v2098 = vpop.permute.xlu0 %2097
        %2101 = vset.pattern.permute.xlu0 0
        %2102 = vperm.xlu0 %2101, %v2094
        %v2103 = vpop.permute.xlu0 %2102
        %v2106 = vperm.slane %v2091, 0
        %v2108 = vmul.f32 %v2098, %v2106
        %v2109 = vmul.f32 %v2103, %v2106
        %v2110 = vmax.f32 %v2108, 0.0
        %v2111 = vmax.f32 %v2109, 0.0
        %v2112 = vsel %vm344, %v2110, -inf
        %2113 = vmax.xlane.f32.xlu0 %v2112
        %v2114 = vpop.xlane.xlu0 %2113
        %v2115 = vsel %vm344, %v2111, -inf
        %2116 = vmax.xlane.f32.xlu0 %v2115
        %v2117 = vpop.xlane.xlu0 %2116
        %v2118 = vsub.f32 %v2110, %v2114
        %v2119 = vsub.f32 %v2111, %v2117
        %v2120 = vmul.f32 %v2118, 1.442695
        %v2121 = vpow.pop %v2120
        %v2122 = vmul.f32 %v2119, 1.442695
        %v2123 = vpow.pop %v2122
        %v2124 = vsel %vm344, %v2121, 0.0
        %2125 = vadd.xlane.f32.xlu0 %v2124
        %v2126 = vpop.xlane.xlu0 %2125
        %v2127 = vsel %vm344, %v2123, 0.0
        %2128 = vadd.xlane.f32.xlu0 %v2127
        %v2129 = vpop.xlane.xlu0 %2128
        %v2130 = vrcp.pop %v2126
        %v2131 = vrcp.pop %v2129
        %s2132 = scalar_lea.vmem %s306, 24
        %v2133 = vld [vmem:[%s2132] sm:$0xf]
        %v2134 = vld [vmem:[%s2132 + $0x4] sm:$0xf]
        %v2135 = vunpack.c.l.bf16 %v2133
        %v2136 = vunpack.c.l.bf16 %v2134
        %v2137 = vmul.f32 %v2121, %v2130
        %v2138 = vmul.f32 %v2123, %v2131
        %v2139 = vpack.c.bf16 %v2138, %v2137
        %v2142 = vunpack.c.l.b16 %v2133
        %v2143 = vunpack.c.l.b16 %v2134
        %v2144 = vpack.c.b16 %v2143, %v2142
        %v2147 = vsel %vm344, %v2139, 0
        %2149 = vmatpush.bf16.msra.mxu0 0
        %2150 = vmatpush.bf16.msra.mxu0 0
        %2151 = vmatpush.bf16.msra.mxu0 0
        %2152 = vmatpush.bf16.msra.mxu0 0
        %2153 = vmatpush.bf16.msra.mxu0 0
        %2154 = vmatpush.bf16.msra.mxu0 0
        %2155 = vmatpush.bf16.msra.mxu0 0
        %2156 = vmatpush.bf16.msra.mxu0 %v2144
        %2157 = vmatmul.bf16.gmra.mxu0 %v2147
        %v2158 = vpop.f32.mrf.mxu0
        %v2159 = vadd.f32 0.0, %v2158
        %v2160 = vpop.f32.mrf.mxu0
        %v2161 = vadd.f32 0.0, %v2160
        %2162 = vdwg.mxu0
        %v2163 = vmul.f32 %v2093, %v2093
        %v2164 = vmul.f32 %v2094, %v2094
        %v2165 = vsub.f32 %v2163, %v2114
        %v2166 = vsub.f32 %v2164, %v2117
        %v2167 = vmul.f32 %v2165, 1.442695
        %v2168 = vpow.pop %v2167
        %v2169 = vmul.f32 %v2166, 1.442695
        %v2170 = vpow.pop %v2169
        %v2171 = vmul.f32 %v2168, %v2130
        %v2172 = vmul.f32 %v2170, %v2131
        %v2173 = vmul.f32 %v2171, 2.0
        %v2174 = vmul.f32 %v2172, 2.0
        %2176 = vset.pattern.permute.xlu0 0
        %2177 = vperm.xlu0 %2176, %v2173
        %v2178 = vpop.permute.xlu0 %2177
        %2181 = vset.pattern.permute.xlu0 0
        %2182 = vperm.xlu0 %2181, %v2174
        %v2183 = vpop.permute.xlu0 %2182
        %v2185 = vmul.f32 %v2178, %v2159
        %v2186 = vmul.f32 %v2183, %v2161
        %v2187 = vsub.f32 %v2185, %v2135
        %v2188 = vsub.f32 %v2186, %v2136
        %s2189 = scalar_lea.vmem %s313, 48
        %v2190 = vld [vmem:[%s2189] sm:$0xff]
        %v2191 = vld [vmem:[%s2189 + $0x8] sm:$0xff]
        %s2192 = scalar_lea.vmem %s320, 48
        %v2193 = vld [vmem:[%s2192] sm:$0xff]
        %v2194 = vld [vmem:[%s2192 + $0x8] sm:$0xff]
        %2196 = vset.pattern.permute.xlu0 0
        %2197 = vperm.xlu0 %2196, %v2135
        %v2198 = vpop.permute.xlu0 %2197
        %2201 = vset.pattern.permute.xlu0 0
        %2202 = vperm.xlu0 %2201, %v2136
        %v2203 = vpop.permute.xlu0 %2202
        %v2205 = vmul.f32 %v2198, %v2190
        %v2206 = vmul.f32 %v2203, %v2191
        %v2207 = vadd.f32 %v2193, %v2205
        %v2208 = vadd.f32 %v2194, %v2206
        %2209 = vset.pattern.permute.xlu0 4
        %2210 = vperm.xlu0 %2209, %v2135
        %v2211 = vpop.permute.xlu0 %2210
        %2213 = vset.pattern.permute.xlu0 4
        %2214 = vperm.xlu0 %2213, %v2136
        %v2215 = vpop.permute.xlu0 %2214
        %v2217 = vmul.f32 %v2211, %v2190
        %v2218 = vmul.f32 %v2215, %v2191
        %v2219 = vadd.f32 %v2193, %v2217
        %v2220 = vadd.f32 %v2194, %v2218
        %2221 = vset.pattern.permute.xlu0 1
        %2222 = vperm.xlu0 %2221, %v2135
        %v2223 = vpop.permute.xlu0 %2222
        %2225 = vset.pattern.permute.xlu0 1
        %2226 = vperm.xlu0 %2225, %v2136
        %v2227 = vpop.permute.xlu0 %2226
        %v2229 = vmul.f32 %v2223, %v2190
        %v2230 = vmul.f32 %v2227, %v2191
        %2233 = vrot.lane.b32.xlu0 %v2229, 120
        %v2234 = vpop.permute.xlu0 %2233
        %2235 = vrot.lane.b32.xlu0 %v2230, 120
        %v2236 = vpop.permute.xlu0 %2235
        %v2239 = vadd.f32 %v2207, %v2234
        %v2240 = vadd.f32 %v2208, %v2236
        %2241 = vset.pattern.permute.xlu0 5
        %2242 = vperm.xlu0 %2241, %v2135
        %v2243 = vpop.permute.xlu0 %2242
        %2245 = vset.pattern.permute.xlu0 5
        %2246 = vperm.xlu0 %2245, %v2136
        %v2247 = vpop.permute.xlu0 %2246
        %v2249 = vmul.f32 %v2243, %v2190
        %v2250 = vmul.f32 %v2247, %v2191
        %2253 = vrot.lane.b32.xlu0 %v2249, 120
        %v2254 = vpop.permute.xlu0 %2253
        %2255 = vrot.lane.b32.xlu0 %v2250, 120
        %v2256 = vpop.permute.xlu0 %2255
        %v2259 = vadd.f32 %v2219, %v2254
        %v2260 = vadd.f32 %v2220, %v2256
        %2261 = vset.pattern.permute.xlu0 2
        %2262 = vperm.xlu0 %2261, %v2135
        %v2263 = vpop.permute.xlu0 %2262
        %2265 = vset.pattern.permute.xlu0 2
        %2266 = vperm.xlu0 %2265, %v2136
        %v2267 = vpop.permute.xlu0 %2266
        %v2269 = vmul.f32 %v2263, %v2190
        %v2270 = vmul.f32 %v2267, %v2191
        %2273 = vrot.lane.b32.xlu0 %v2269, 112
        %v2274 = vpop.permute.xlu0 %2273
        %2275 = vrot.lane.b32.xlu0 %v2270, 112
        %v2276 = vpop.permute.xlu0 %2275
        %v2279 = vadd.f32 %v2239, %v2274
        %v2280 = vadd.f32 %v2240, %v2276
        %2281 = vset.pattern.permute.xlu0 6
        %2282 = vperm.xlu0 %2281, %v2135
        %v2283 = vpop.permute.xlu0 %2282
        %2285 = vset.pattern.permute.xlu0 6
        %2286 = vperm.xlu0 %2285, %v2136
        %v2287 = vpop.permute.xlu0 %2286
        %v2289 = vmul.f32 %v2283, %v2190
        %v2290 = vmul.f32 %v2287, %v2191
        %2293 = vrot.lane.b32.xlu0 %v2289, 112
        %v2294 = vpop.permute.xlu0 %2293
        %2295 = vrot.lane.b32.xlu0 %v2290, 112
        %v2296 = vpop.permute.xlu0 %2295
        %v2299 = vadd.f32 %v2259, %v2294
        %v2300 = vadd.f32 %v2260, %v2296
        %2301 = vset.pattern.permute.xlu0 3
        %2302 = vperm.xlu0 %2301, %v2135
        %v2303 = vpop.permute.xlu0 %2302
        %2305 = vset.pattern.permute.xlu0 3
        %2306 = vperm.xlu0 %2305, %v2136
        %v2307 = vpop.permute.xlu0 %2306
        %v2309 = vmul.f32 %v2303, %v2190
        %v2310 = vmul.f32 %v2307, %v2191
        %2313 = vrot.lane.b32.xlu0 %v2309, 104
        %v2314 = vpop.permute.xlu0 %2313
        %2315 = vrot.lane.b32.xlu0 %v2310, 104
        %v2316 = vpop.permute.xlu0 %2315
        %v2319 = vadd.f32 %v2279, %v2314
        %v2320 = vadd.f32 %v2280, %v2316
        %2321 = vset.pattern.permute.xlu0 7
        %2322 = vperm.xlu0 %2321, %v2135
        %v2323 = vpop.permute.xlu0 %2322
        %2325 = vset.pattern.permute.xlu0 7
        %2326 = vperm.xlu0 %2325, %v2136
        %v2327 = vpop.permute.xlu0 %2326
        %v2329 = vmul.f32 %v2323, %v2190
        %v2330 = vmul.f32 %v2327, %v2191
        %2333 = vrot.lane.b32.xlu0 %v2329, 104
        %v2334 = vpop.permute.xlu0 %2333
        %2335 = vrot.lane.b32.xlu0 %v2330, 104
        %v2336 = vpop.permute.xlu0 %2335
        %v2339 = vadd.f32 %v2299, %v2334
        %v2340 = vadd.f32 %v2300, %v2336
        %2342 = vset.pattern.permute.xlu0 0
        %2343 = vperm.xlu0 %2342, %v2159
        %v2344 = vpop.permute.xlu0 %2343
        %2347 = vset.pattern.permute.xlu0 0
        %2348 = vperm.xlu0 %2347, %v2161
        %v2349 = vpop.permute.xlu0 %2348
        %v2351 = vmul.f32 %v2344, %v2190
        %v2352 = vmul.f32 %v2349, %v2191
        %2355 = vrot.lane.b32.xlu0 %v2351, 96
        %v2356 = vpop.permute.xlu0 %2355
        %2357 = vrot.lane.b32.xlu0 %v2352, 96
        %v2358 = vpop.permute.xlu0 %2357
        %v2361 = vadd.f32 %v2319, %v2356
        %v2362 = vadd.f32 %v2320, %v2358
        %2363 = vset.pattern.permute.xlu0 4
        %2364 = vperm.xlu0 %2363, %v2159
        %v2365 = vpop.permute.xlu0 %2364
        %2367 = vset.pattern.permute.xlu0 4
        %2368 = vperm.xlu0 %2367, %v2161
        %v2369 = vpop.permute.xlu0 %2368
        %v2371 = vmul.f32 %v2365, %v2190
        %v2372 = vmul.f32 %v2369, %v2191
        %2375 = vrot.lane.b32.xlu0 %v2371, 96
        %v2376 = vpop.permute.xlu0 %2375
        %2377 = vrot.lane.b32.xlu0 %v2372, 96
        %v2378 = vpop.permute.xlu0 %2377
        %v2381 = vadd.f32 %v2339, %v2376
        %v2382 = vadd.f32 %v2340, %v2378
        %2383 = vset.pattern.permute.xlu0 1
        %2384 = vperm.xlu0 %2383, %v2159
        %v2385 = vpop.permute.xlu0 %2384
        %2387 = vset.pattern.permute.xlu0 1
        %2388 = vperm.xlu0 %2387, %v2161
        %v2389 = vpop.permute.xlu0 %2388
        %v2391 = vmul.f32 %v2385, %v2190
        %v2392 = vmul.f32 %v2389, %v2191
        %2395 = vrot.lane.b32.xlu0 %v2391, 88
        %v2396 = vpop.permute.xlu0 %2395
        %2397 = vrot.lane.b32.xlu0 %v2392, 88
        %v2398 = vpop.permute.xlu0 %2397
        %v2401 = vadd.f32 %v2361, %v2396
        %v2402 = vadd.f32 %v2362, %v2398
        %2403 = vset.pattern.permute.xlu0 5
        %2404 = vperm.xlu0 %2403, %v2159
        %v2405 = vpop.permute.xlu0 %2404
        %2407 = vset.pattern.permute.xlu0 5
        %2408 = vperm.xlu0 %2407, %v2161
        %v2409 = vpop.permute.xlu0 %2408
        %v2411 = vmul.f32 %v2405, %v2190
        %v2412 = vmul.f32 %v2409, %v2191
        %2415 = vrot.lane.b32.xlu0 %v2411, 88
        %v2416 = vpop.permute.xlu0 %2415
        %2417 = vrot.lane.b32.xlu0 %v2412, 88
        %v2418 = vpop.permute.xlu0 %2417
        %v2421 = vadd.f32 %v2381, %v2416
        %v2422 = vadd.f32 %v2382, %v2418
        %2423 = vset.pattern.permute.xlu0 2
        %2424 = vperm.xlu0 %2423, %v2159
        %v2425 = vpop.permute.xlu0 %2424
        %2427 = vset.pattern.permute.xlu0 2
        %2428 = vperm.xlu0 %2427, %v2161
        %v2429 = vpop.permute.xlu0 %2428
        %v2431 = vmul.f32 %v2425, %v2190
        %v2432 = vmul.f32 %v2429, %v2191
        %2435 = vrot.lane.b32.xlu0 %v2431, 80
        %v2436 = vpop.permute.xlu0 %2435
        %2437 = vrot.lane.b32.xlu0 %v2432, 80
        %v2438 = vpop.permute.xlu0 %2437
        %v2441 = vadd.f32 %v2401, %v2436
        %v2442 = vadd.f32 %v2402, %v2438
        %2443 = vset.pattern.permute.xlu0 6
        %2444 = vperm.xlu0 %2443, %v2159
        %v2445 = vpop.permute.xlu0 %2444
        %2447 = vset.pattern.permute.xlu0 6
        %2448 = vperm.xlu0 %2447, %v2161
        %v2449 = vpop.permute.xlu0 %2448
        %v2451 = vmul.f32 %v2445, %v2190
        %v2452 = vmul.f32 %v2449, %v2191
        %2455 = vrot.lane.b32.xlu0 %v2451, 80
        %v2456 = vpop.permute.xlu0 %2455
        %2457 = vrot.lane.b32.xlu0 %v2452, 80
        %v2458 = vpop.permute.xlu0 %2457
        %v2461 = vadd.f32 %v2421, %v2456
        %v2462 = vadd.f32 %v2422, %v2458
        %2463 = vset.pattern.permute.xlu0 3
        %2464 = vperm.xlu0 %2463, %v2159
        %v2465 = vpop.permute.xlu0 %2464
        %2467 = vset.pattern.permute.xlu0 3
        %2468 = vperm.xlu0 %2467, %v2161
        %v2469 = vpop.permute.xlu0 %2468
        %v2471 = vmul.f32 %v2465, %v2190
        %v2472 = vmul.f32 %v2469, %v2191
        %2475 = vrot.lane.b32.xlu0 %v2471, 72
        %v2476 = vpop.permute.xlu0 %2475
        %2477 = vrot.lane.b32.xlu0 %v2472, 72
        %v2478 = vpop.permute.xlu0 %2477
        %v2481 = vadd.f32 %v2441, %v2476
        %v2482 = vadd.f32 %v2442, %v2478
        %2483 = vset.pattern.permute.xlu0 7
        %2484 = vperm.xlu0 %2483, %v2159
        %v2485 = vpop.permute.xlu0 %2484
        %2487 = vset.pattern.permute.xlu0 7
        %2488 = vperm.xlu0 %2487, %v2161
        %v2489 = vpop.permute.xlu0 %2488
        %v2491 = vmul.f32 %v2485, %v2190
        %v2492 = vmul.f32 %v2489, %v2191
        %2495 = vrot.lane.b32.xlu0 %v2491, 72
        %v2496 = vpop.permute.xlu0 %2495
        %2497 = vrot.lane.b32.xlu0 %v2492, 72
        %v2498 = vpop.permute.xlu0 %2497
        %v2501 = vadd.f32 %v2461, %v2496
        %v2502 = vadd.f32 %v2462, %v2498
        %2504 = vset.pattern.permute.xlu0 0
        %2505 = vperm.xlu0 %2504, %v2187
        %v2506 = vpop.permute.xlu0 %2505
        %2509 = vset.pattern.permute.xlu0 0
        %2510 = vperm.xlu0 %2509, %v2188
        %v2511 = vpop.permute.xlu0 %2510
        %v2513 = vmul.f32 %v2506, %v2190
        %v2514 = vmul.f32 %v2511, %v2191
        %2517 = vrot.lane.b32.xlu0 %v2513, 64
        %v2518 = vpop.permute.xlu0 %2517
        %2519 = vrot.lane.b32.xlu0 %v2514, 64
        %v2520 = vpop.permute.xlu0 %2519
        %v2523 = vadd.f32 %v2481, %v2518
        %v2524 = vadd.f32 %v2482, %v2520
        %2525 = vset.pattern.permute.xlu0 4
        %2526 = vperm.xlu0 %2525, %v2187
        %v2527 = vpop.permute.xlu0 %2526
        %2529 = vset.pattern.permute.xlu0 4
        %2530 = vperm.xlu0 %2529, %v2188
        %v2531 = vpop.permute.xlu0 %2530
        %v2533 = vmul.f32 %v2527, %v2190
        %v2534 = vmul.f32 %v2531, %v2191
        %2537 = vrot.lane.b32.xlu0 %v2533, 64
        %v2538 = vpop.permute.xlu0 %2537
        %2539 = vrot.lane.b32.xlu0 %v2534, 64
        %v2540 = vpop.permute.xlu0 %2539
        %v2543 = vadd.f32 %v2501, %v2538
        %v2544 = vadd.f32 %v2502, %v2540
        %2545 = vset.pattern.permute.xlu0 1
        %2546 = vperm.xlu0 %2545, %v2187
        %v2547 = vpop.permute.xlu0 %2546
        %2549 = vset.pattern.permute.xlu0 1
        %2550 = vperm.xlu0 %2549, %v2188
        %v2551 = vpop.permute.xlu0 %2550
        %v2553 = vmul.f32 %v2547, %v2190
        %v2554 = vmul.f32 %v2551, %v2191
        %2557 = vrot.lane.b32.xlu0 %v2553, 56
        %v2558 = vpop.permute.xlu0 %2557
        %2559 = vrot.lane.b32.xlu0 %v2554, 56
        %v2560 = vpop.permute.xlu0 %2559
        %v2563 = vadd.f32 %v2523, %v2558
        %v2564 = vadd.f32 %v2524, %v2560
        %2565 = vset.pattern.permute.xlu0 5
        %2566 = vperm.xlu0 %2565, %v2187
        %v2567 = vpop.permute.xlu0 %2566
        %2569 = vset.pattern.permute.xlu0 5
        %2570 = vperm.xlu0 %2569, %v2188
        %v2571 = vpop.permute.xlu0 %2570
        %v2573 = vmul.f32 %v2567, %v2190
        %v2574 = vmul.f32 %v2571, %v2191
        %2577 = vrot.lane.b32.xlu0 %v2573, 56
        %v2578 = vpop.permute.xlu0 %2577
        %2579 = vrot.lane.b32.xlu0 %v2574, 56
        %v2580 = vpop.permute.xlu0 %2579
        %v2583 = vadd.f32 %v2543, %v2578
        %v2584 = vadd.f32 %v2544, %v2580
        %2585 = vset.pattern.permute.xlu0 2
        %2586 = vperm.xlu0 %2585, %v2187
        %v2587 = vpop.permute.xlu0 %2586
        %2589 = vset.pattern.permute.xlu0 2
        %2590 = vperm.xlu0 %2589, %v2188
        %v2591 = vpop.permute.xlu0 %2590
        %v2593 = vmul.f32 %v2587, %v2190
        %v2594 = vmul.f32 %v2591, %v2191
        %2597 = vrot.lane.b32.xlu0 %v2593, 48
        %v2598 = vpop.permute.xlu0 %2597
        %2599 = vrot.lane.b32.xlu0 %v2594, 48
        %v2600 = vpop.permute.xlu0 %2599
        %v2603 = vadd.f32 %v2563, %v2598
        %v2604 = vadd.f32 %v2564, %v2600
        %2605 = vset.pattern.permute.xlu0 6
        %2606 = vperm.xlu0 %2605, %v2187
        %v2607 = vpop.permute.xlu0 %2606
        %2609 = vset.pattern.permute.xlu0 6
        %2610 = vperm.xlu0 %2609, %v2188
        %v2611 = vpop.permute.xlu0 %2610
        %v2613 = vmul.f32 %v2607, %v2190
        %v2614 = vmul.f32 %v2611, %v2191
        %2617 = vrot.lane.b32.xlu0 %v2613, 48
        %v2618 = vpop.permute.xlu0 %2617
        %2619 = vrot.lane.b32.xlu0 %v2614, 48
        %v2620 = vpop.permute.xlu0 %2619
        %v2623 = vadd.f32 %v2583, %v2618
        %v2624 = vadd.f32 %v2584, %v2620
        %2625 = vset.pattern.permute.xlu0 3
        %2626 = vperm.xlu0 %2625, %v2187
        %v2627 = vpop.permute.xlu0 %2626
        %2629 = vset.pattern.permute.xlu0 3
        %2630 = vperm.xlu0 %2629, %v2188
        %v2631 = vpop.permute.xlu0 %2630
        %v2633 = vmul.f32 %v2627, %v2190
        %v2634 = vmul.f32 %v2631, %v2191
        %2637 = vrot.lane.b32.xlu0 %v2633, 40
        %v2638 = vpop.permute.xlu0 %2637
        %2639 = vrot.lane.b32.xlu0 %v2634, 40
        %v2640 = vpop.permute.xlu0 %2639
        %v2643 = vadd.f32 %v2603, %v2638
        %v2644 = vadd.f32 %v2604, %v2640
        %2645 = vset.pattern.permute.xlu0 7
        %2646 = vperm.xlu0 %2645, %v2187
        %v2647 = vpop.permute.xlu0 %2646
        %2649 = vset.pattern.permute.xlu0 7
        %2650 = vperm.xlu0 %2649, %v2188
        %v2651 = vpop.permute.xlu0 %2650
        %v2653 = vmul.f32 %v2647, %v2190
        %v2654 = vmul.f32 %v2651, %v2191
        %2657 = vrot.lane.b32.xlu0 %v2653, 40
        %v2658 = vpop.permute.xlu0 %2657
        %2659 = vrot.lane.b32.xlu0 %v2654, 40
        %v2660 = vpop.permute.xlu0 %2659
        %v2663 = vadd.f32 %v2623, %v2658
        %v2664 = vadd.f32 %v2624, %v2660
        %2667 = vrot.lane.b32.xlu0 %v2663, 8
        %v2668 = vpop.permute.xlu0 %2667
        %2669 = vrot.lane.b32.xlu0 %v2664, 8
        %v2670 = vpop.permute.xlu0 %2669
        %v2673 = vsel %vm903, %v2643, %v2668
        %v2674 = vsel %vm903, %v2644, %v2670
        %v2675 = vsel %vm344, %v2673, 0.0
        %v2676 = vsel %vm344, %v2674, 0.0
        %s2677 = scalar_lea.vmem %s288, 48 [#allocation2]
        %2678 = vst [vmem:[%s2677] sm:$0xff] %v2675
        %2679 = vst [vmem:[%s2677 + $0x8] sm:$0xff] %v2676
        %s2680 = sand.u32 %s157, 1
        %s2681 = scalar_lea.sflag [#allocation3], %s2680
        %s2682 = sand.u32 %s157, 1
        %s2683 = smul.addr %s2682, 64
        %s2684 = scalar_lea.vmem [#allocation2], %s2683
        // Predicated region
        $region41: #{tpu_custom_call.1} parent=39 // pred_check
          %p2685 = pneg %p167
        $region42: #{tpu_custom_call.1} parent=39 // pred_check_branch
          %2687 = sbr.rel (%p2685) target = $region44
        $region43: #{tpu_custom_call.1} parent=39 // pred_region
          %s2688 = smul.u32 4, %s19
          %2690 = vsyncadd %s2681, 0
          %s2691 = smul.addr %s2688, 2
          %s2692 = smul.addr %s2691, 8
          %s2693 = scalar_lea.hbm %s5, %s2692
          %s2694 = sshll.u32 %s2684, 4
          %s2695 = int_to_ptr.vmem [resolvable:$true] %s2694
          %s2696 = sshll.u32 %s2693, 4
          %s2697 = int_to_ptr.hbm [resolvable:$true] %s2696
          %2702 = dma.vmem_to_hbm [thread:$0]  %s2695, 1024, %s2697, %s2681, 128, 128, 8
        $region44: #{tpu_custom_call.1} parent=39 // pred_fallthru
          _
      $region40: #{tpu_custom_call.1} parent=5 // pred_fallthru
        _
      %p2703 = scmp.le.s32.totalorder 2, %s14
      // Predicated region
      $region45: #{tpu_custom_call.1} parent=5 // pred_check
        %p2704 = pneg %p2703
      $region46: #{tpu_custom_call.1} parent=5 // pred_check_branch
        %2706 = sbr.rel (%p2704) target = $region48
      $region47: #{tpu_custom_call.1} parent=5 // pred_region
        %s2707 = ssub.s32 %s14, 2
        // Predicated region
        $region49: #{tpu_custom_call.1} parent=47 // pred_check
          %p2708 = pneg %p173
        $region50: #{tpu_custom_call.1} parent=47 // pred_check_branch
          %2710 = sbr.rel (%p2708) target = $region52
        $region51: #{tpu_custom_call.1} parent=47 // pred_region
          %s2711 = sand.u32 %s158, 1
          %s2712 = scalar_lea.sflag [#allocation3], %s2711
          %s2713 = sand.u32 %s158, 1
          %s2714 = smul.addr %s2713, 64
          %s2715 = scalar_lea.vmem [#allocation2], %s2714
          %2717 = dma.done %s2712, 1024
        $region52: #{tpu_custom_call.1} parent=47 // pred_fallthru
          _
      $region48: #{tpu_custom_call.1} parent=5 // pred_fallthru
        _
    $region6: #{tpu_custom_call.1} parent=1 // loop_footer
      %s18 = sadd.s32 1, %s14
    $region7: #{tpu_custom_call.1} parent=1 // loop_footer_branch
      %13 = sbr.rel target = $region3
    $region8: #{tpu_custom_call.1} parent=1 // loop_exit
      _
    %2718 = vsyncpa [#allocation3], 1
    %s2719 = scalar_lea.sflag [#allocation3], 1
    %2720 = vsyncpa %s2719, 1

</llo_original>
